<compile_context>
chip_gen: v6e
topology: v6e:2x2x1
jax: 0.10.0
libtpu: 0.0.40
codegen_flags: <defaults>
</compile_context>

<pallas_src>
import functools
import math

import jax
import jax.numpy as jnp
from jax.experimental import pallas as pl
from jax.experimental.pallas import tpu as pltpu

_NEG_INF = -1e30  # finite "minus infinity" (avoids inf-inf NaNs)
_SQRT1_2 = 1.0 / math.sqrt(2.0)
_VMEM_LIMIT = 32 * 1024 * 1024


# ----------------------------------------------------------------------------
# small helpers
# ----------------------------------------------------------------------------
def _round_up(x, m):
    return ((x + m - 1) // m) * m


def _layernorm(x, gamma, beta, eps=1e-5):
    mu = jnp.mean(x, axis=-1, keepdims=True)
    var = jnp.mean((x - mu) ** 2, axis=-1, keepdims=True)
    return (x - mu) * jax.lax.rsqrt(var + eps) * gamma + beta


def _erf_poly(z):
    # Exact-arithmetic Abramowitz & Stegun 7.1.26 (|err| < 1.5e-7); only used
    # as a fallback if lax.erf has no Mosaic lowering on this jax version.
    p = 0.3275911
    a1, a2, a3, a4, a5 = (0.254829592, -0.284496736, 1.421413741,
                          -1.453152027, 1.061405429)
    sign = jnp.where(z >= 0.0, 1.0, -1.0)
    az = jnp.abs(z)
    t = 1.0 / (1.0 + p * az)
    poly = ((((a5 * t + a4) * t + a3) * t + a2) * t + a1) * t
    return sign * (1.0 - poly * jnp.exp(-az * az))


def _erf_available():
    # Probe whether lax.erf lowers through Mosaic; decides the GELU path.
    def k(x_ref, o_ref):
        o_ref[...] = jax.lax.erf(x_ref[...])
    try:
        f = pl.pallas_call(k, out_shape=jax.ShapeDtypeStruct((8, 128), jnp.float32))
        jax.block_until_ready(jax.jit(f)(jnp.zeros((8, 128), jnp.float32)))
        return True
    except Exception:
        return False


_HAS_ERF = _erf_available()


def _gelu(x):
    # exact (erf-form) nn.GELU; erf routed to the EUP when supported.
    z = x * _SQRT1_2
    e = jax.lax.erf(z) if _HAS_ERF else _erf_poly(z)
    return 0.5 * x * (1.0 + e)


# ----------------------------------------------------------------------------
# kernel 1: patch embedding (projection + bias + cls token + pos embedding)
# ----------------------------------------------------------------------------
def _embed_kernel(p_ref, w_ref, add_ref, o_ref):
    # p_ref: (1, TT, K) bf16 (row 0 zeros for cls slot, trailing rows = pad)
    # w_ref: (K, D) bf16; add_ref: (TT, D) f32 (cls / bias / pos terms).
    o = jnp.dot(p_ref[0], w_ref[...], preferred_element_type=jnp.float32)
    o_ref[0] = (o + add_ref[...]).astype(o_ref.dtype)


def _embed(p_pad, wp, add, tile):
    B, T1p, K = p_pad.shape
    D = wp.shape[1]
    return pl.pallas_call(
        _embed_kernel,
        out_shape=jax.ShapeDtypeStruct((B, T1p, D), jnp.bfloat16),
        grid=(B, T1p // tile),
        in_specs=[
            pl.BlockSpec((1, tile, K), lambda b, t: (b, t, 0)),
            pl.BlockSpec((K, D), lambda b, t: (0, 0)),
            pl.BlockSpec((tile, D), lambda b, t: (t, 0)),
        ],
        out_specs=pl.BlockSpec((1, tile, D), lambda b, t: (b, t, 0)),
        compiler_params=pltpu.CompilerParams(
            dimension_semantics=("parallel", "parallel"),
            vmem_limit_bytes=_VMEM_LIMIT),
    )(p_pad, wp, add)


# ----------------------------------------------------------------------------
# kernel 2: fused QKV projection, lane-dense (B, T, D) outputs
# ----------------------------------------------------------------------------
def _qkv_kernel(x_ref, w_ref, q_ref, k_ref, v_ref):
    d = q_ref.shape[-1]
    y = jnp.dot(x_ref[0], w_ref[...], preferred_element_type=jnp.float32)
    q_ref[0] = y[:, :d].astype(q_ref.dtype)
    k_ref[0] = y[:, d:2 * d].astype(k_ref.dtype)
    v_ref[0] = y[:, 2 * d:3 * d].astype(v_ref.dtype)


def _qkv(tokens, wqkv, tile):
    B, T1p, D = tokens.shape
    out_sd = jax.ShapeDtypeStruct((B, T1p, D), jnp.bfloat16)
    spec = pl.BlockSpec((1, tile, D), lambda b, t: (b, t, 0))
    return pl.pallas_call(
        _qkv_kernel,
        out_shape=(out_sd, out_sd, out_sd),
        grid=(B, T1p // tile),
        in_specs=[spec, pl.BlockSpec((D, 3 * D), lambda b, t: (0, 0))],
        out_specs=(spec, spec, spec),
        compiler_params=pltpu.CompilerParams(
            dimension_semantics=("parallel", "parallel"),
            vmem_limit_bytes=_VMEM_LIMIT),
    )(tokens, wqkv)


# ----------------------------------------------------------------------------
# kernel 3: fused attention (full K/V per image) + Wo + LN1 + MLP(GELU) + LN2
# ----------------------------------------------------------------------------
def _block_kernel(x_ref, q_ref, k_ref, v_ref, wo_ref, g1_ref, b1_ref,
                  w1_ref, mb1_ref, w2_ref, mb2_ref, g2_ref, b2_ref, o_ref,
                  *, head_num, t_real, kv_len):
    D = x_ref.shape[-1]
    dh = D // head_num

    q2 = q_ref[0]                        # (TQ, D) bf16  (sqrt(dh) already folded in)
    k2 = k_ref[0]                        # (TK, D) bf16
    v2 = v_ref[0]                        # (TK, D) bf16

    # Padded-key mask: only traced in when padding exists (static check).
    if kv_len > t_real:
        kv_valid = jax.lax.broadcasted_iota(jnp.int32, (1, kv_len), 1) < t_real
    else:
        kv_valid = None

    nt_dims = (((1,), (1,)), ((), ()))   # contract last dims (A @ B^T), no transpose op
    outs = []
    for h in range(head_num):            # static unroll; all ops are 2D / lane-dense
        qh = q2[:, h * dh:(h + 1) * dh]
        kh = k2[:, h * dh:(h + 1) * dh]
        vh = v2[:, h * dh:(h + 1) * dh]
        s = jax.lax.dot_general(qh, kh, nt_dims,
                                preferred_element_type=jnp.float32)   # (TQ, TK) f32
        if kv_valid is not None:
            s = jnp.where(kv_valid, s, _NEG_INF)
        m = jnp.max(s, axis=-1, keepdims=True)
        p = jnp.exp(s - m)
        l = jnp.sum(p, axis=-1, keepdims=True)
        o = jnp.dot(p.astype(v2.dtype), vh,
                    preferred_element_type=jnp.float32)               # (TQ, dh)
        outs.append(o * pl.reciprocal(l, approx=True))

    # head concat (lane-dense) + one full-width output projection.
    attn = jnp.concatenate(outs, axis=-1)                             # (TQ, D) f32
    attn_out = jnp.dot(attn.astype(jnp.bfloat16), wo_ref[...],
                       preferred_element_type=jnp.float32)            # (TQ, D) f32

    xq = x_ref[0].astype(jnp.float32)                                 # residual
    x1 = _layernorm(xq + attn_out, g1_ref[...], b1_ref[...])

    h1 = jnp.dot(x1.astype(jnp.bfloat16), w1_ref[...],
                 preferred_element_type=jnp.float32) + mb1_ref[...]
    h1 = _gelu(h1)
    h2 = jnp.dot(h1.astype(jnp.bfloat16), w2_ref[...],
                 preferred_element_type=jnp.float32) + mb2_ref[...]

    o_ref[0] = _layernorm(x1 + h2, g2_ref[...], b2_ref[...]).astype(o_ref.dtype)


def _attention_mlp(tokens, q, k, v, blk, head_num, tile, t_real):
    B, T1p, D = tokens.shape
    mlp_dim = blk["w1"].shape[1]
    n_q = T1p // tile

    kernel = functools.partial(_block_kernel, head_num=head_num,
                               t_real=t_real, kv_len=T1p)

    def wspec(shape):
        n = len(shape)
        return pl.BlockSpec(shape, lambda b, qi, _n=n: (0,) * _n)

    cost = pl.CostEstimate(
        flops=int(B * (4 * T1p * T1p * D            # scores + PV (summed over heads)
                       + 2 * T1p * D * D            # output projection
                       + 4 * T1p * D * mlp_dim)),   # two MLP matmuls
        transcendentals=int(B * (head_num * T1p * T1p + T1p * mlp_dim)),
        bytes_accessed=int(2 * B * T1p * D * (3 + 2 * n_q)          # x,q,out once; K/V re-read per q tile
                           + 2 * (D * D + 2 * D * mlp_dim)          # bf16 weights (fetched once)
                           + 4 * (6 * D + mlp_dim)),                # f32 LN / bias vectors
    )

    return pl.pallas_call(
        kernel,
        out_shape=jax.ShapeDtypeStruct((B, T1p, D), jnp.bfloat16),
        grid=(B, n_q),
        in_specs=[
            pl.BlockSpec((1, tile, D), lambda b, qi: (b, qi, 0)),   # x (residual)
            pl.BlockSpec((1, tile, D), lambda b, qi: (b, qi, 0)),   # q tile
            pl.BlockSpec((1, T1p, D), lambda b, qi: (b, 0, 0)),     # K (full seq)
            pl.BlockSpec((1, T1p, D), lambda b, qi: (b, 0, 0)),     # V (full seq)
            wspec((D, D)),                                          # wo
            wspec((1, D)), wspec((1, D)),                           # ln1
            wspec((D, mlp_dim)), wspec((1, mlp_dim)),               # mlp1
            wspec((mlp_dim, D)), wspec((1, D)),                     # mlp2
            wspec((1, D)), wspec((1, D)),                           # ln2
        ],
        out_specs=pl.BlockSpec((1, tile, D), lambda b, qi: (b, qi, 0)),
        input_output_aliases={0: 0},        # new tokens reuse the old token buffer
        compiler_params=pltpu.CompilerParams(
            dimension_semantics=("parallel", "parallel"),
            vmem_limit_bytes=_VMEM_LIMIT),
        cost_estimate=cost,
    )(tokens, q, k, v, blk["wo"], blk["g1"], blk["b1"],
      blk["w1"], blk["mb1"], blk["w2"], blk["mb2"], blk["g2"], blk["b2"])


# ----------------------------------------------------------------------------
# Get_Trans forward (small glue in JAX, hot paths in Pallas)
# ----------------------------------------------------------------------------
def get_trans_forward(x, params, *, patch_dim, head_num, x_dim, y_dim,
                      token_tile=512):
    # token_tile: q-tile upper bound.  512 is a good v6e default; use ~256 on
    # v5e.  Small sequences collapse to a single tile automatically.
    B, C, H, W = x.shape
    xs, ys = H // patch_dim, W // patch_dim
    T = xs * ys
    assert T == x_dim * y_dim
    D = params["pos"].shape[-1]
    T1 = T + 1                                     # + cls token

    n_q = max(1, -(-T1 // max(1, token_tile)))     # number of q tiles
    tile = _round_up(-(-T1 // n_q), 16)            # even split, sublane aligned
    T1p = n_q * tile                               # padded sequence length

    # einops: 'b c (patch_x x) (patch_y y) -> b (x y) (patch_x patch_y c)'
    p = x.reshape(B, C, patch_dim, xs, patch_dim, ys)
    p = jnp.transpose(p, (0, 3, 5, 2, 4, 1)).reshape(B, T, patch_dim * patch_dim * C)
    # row 0 reserved for the cls token (projects to zero), trailing rows = pad.
    p_pad = jnp.pad(p, ((0, 0), (1, T1p - T1), (0, 0))).astype(jnp.bfloat16)

    # additive term per token: cls+pos[0] for row 0, bias+pos[t] for patches,
    # zeros for padding (so padded tokens start out exactly zero).
    pos = params["pos"][:T1]
    add = jnp.concatenate(
        [params["cls"].reshape(1, D) + pos[:1],
         pos[1:] + params["bp"],
         jnp.zeros((T1p - T1, D), jnp.float32)], axis=0)

    tokens = _embed(p_pad, params["wp"], add, tile)      # (B, T1p, D) bf16
    # dropout -> identity (eval)

    for blk in params["blocks"]:
        q, k, v = _qkv(tokens, blk["wqkv"], tile)
        tokens = _attention_mlp(tokens, q, k, v, blk, head_num, tile, T1)

    seq = tokens[:, 1:T1, :].astype(jnp.float32)         # drop cls + padding
    # rearrange 'b (x y) c -> b c x y'
    return jnp.transpose(seq.reshape(B, x_dim, y_dim, D), (0, 3, 1, 2))


# ----------------------------------------------------------------------------
# pure-JAX reference (same params, f32 everywhere) for a correctness check
# ----------------------------------------------------------------------------
def ref_forward(x, params, *, patch_dim, head_num, x_dim, y_dim):
    B, C, H, W = x.shape
    xs, ys = H // patch_dim, W // patch_dim
    T = xs * ys
    D = params["pos"].shape[-1]
    dh = D // head_num

    p = x.reshape(B, C, patch_dim, xs, patch_dim, ys)
    p = jnp.transpose(p, (0, 3, 5, 2, 4, 1)).reshape(B, T, patch_dim * patch_dim * C)
    proj = p @ params["wp"].astype(jnp.float32) + params["bp"]
    cls = jnp.broadcast_to(params["cls"], (B, 1, D))
    tok = jnp.concatenate([cls, proj], axis=1) + params["pos"][:T + 1]

    for blk in params["blocks"]:
        qkv = tok @ blk["wqkv"].astype(jnp.float32)      # sqrt(dh) scale folded in
        q, k, v = qkv[..., :D], qkv[..., D:2 * D], qkv[..., 2 * D:]
        split = lambda z: z.reshape(B, T + 1, head_num, dh).transpose(0, 2, 1, 3)
        qh, kh, vh = split(q), split(k), split(v)
        s = jnp.einsum("bhqd,bhkd->bhqk", qh, kh)
        a = jax.nn.softmax(s, axis=-1)
        o = jnp.einsum("bhqk,bhkd->bhqd", a, vh)
        o = o.transpose(0, 2, 1, 3).reshape(B, T + 1, D)
        attn_out = o @ blk["wo"].astype(jnp.float32)
        x1 = _layernorm(tok + attn_out, blk["g1"], blk["b1"])
        h1 = _gelu(x1 @ blk["w1"].astype(jnp.float32) + blk["mb1"])
        h2 = h1 @ blk["w2"].astype(jnp.float32) + blk["mb2"]
        tok = _layernorm(x1 + h2, blk["g2"], blk["b2"])

    seq = tok[:, 1:, :]
    return jnp.transpose(seq.reshape(B, x_dim, y_dim, D), (0, 3, 1, 2))


# ----------------------------------------------------------------------------
# deterministic synthetic parameters (shapes / layouts per module __init__)
# ----------------------------------------------------------------------------
def init_params(key, in_channels, dim, mlp_dim, block_num, head_num,
                patch_dim, num_tokens):
    token_dim = in_channels * patch_dim * patch_dim
    dh = dim // head_num
    scale = float(dh) ** 0.5
    keys = iter(jax.random.split(key, 4 + 6 * block_num))

    def lin(k, fan_in, shape):
        bound = 1.0 / math.sqrt(fan_in)
        return jax.random.uniform(k, shape, jnp.float32, -bound, bound)

    wp = lin(next(keys), token_dim, (token_dim, dim))              # projection W^T
    bp = lin(next(keys), token_dim, (1, dim))
    pos = jax.random.uniform(next(keys), (num_tokens + 1, dim), jnp.float32)  # torch.rand
    cls = jax.random.normal(next(keys), (1, 1, dim), jnp.float32)             # torch.randn

    blocks = []
    for _ in range(block_num):
        w_qkv = lin(next(keys), dim, (3 * dim, dim))               # torch (out, in)
        w_out = lin(next(keys), dim, (dim, dim))
        w1 = lin(next(keys), dim, (mlp_dim, dim))
        mb1 = lin(next(keys), dim, (1, mlp_dim))
        w2 = lin(next(keys), mlp_dim, (dim, mlp_dim))
        mb2 = lin(next(keys), mlp_dim, (1, dim))

        # Reference rearranges the fused qkv output as 'b t (d k h) -> k b h t d':
        # output feature f = d*(3*H) + k*H + h.  Build a combined (D_in, 3D)
        # weight whose columns are ordered k*D + h*dh + d (q|k|v, head-major).
        w_r = w_qkv.reshape(dh, 3, head_num, dim)                  # [d, k, h, in]
        w_c = jnp.transpose(w_r, (3, 1, 2, 0)).reshape(dim, 3 * dim)
        # Fold the reference's "* sqrt(head_dim)" score scaling (its self.dk
        # quirk: energy is MULTIPLIED by sqrt(dh)) into the q columns.
        w_c = w_c.at[:, :dim].multiply(scale)

        blocks.append(dict(
            wqkv=w_c.astype(jnp.bfloat16),
            # out_attention consumes 'b h t d -> b t (h d)': rows of W_out^T
            # are already head-major, matching the in-kernel concat order.
            wo=w_out.T.astype(jnp.bfloat16),
            g1=jnp.ones((1, dim), jnp.float32), b1=jnp.zeros((1, dim), jnp.float32),
            w1=w1.T.astype(jnp.bfloat16), mb1=mb1,
            w2=w2.T.astype(jnp.bfloat16), mb2=mb2,
            g2=jnp.ones((1, dim), jnp.float32), b2=jnp.zeros((1, dim), jnp.float32),
        ))
    return dict(wp=wp.astype(jnp.bfloat16), bp=bp, pos=pos, cls=cls, blocks=blocks)


# ----------------------------------------------------------------------------
if __name__ == "__main__":
    # Small shapes consistent with the module (patch_dim=2, head_num=8,
    # mlp_dim=dim as in the ViT inside Get_Trans).
    B, C, H, W = 2, 4, 16, 16
    dim, head_num, block_num, patch_dim = 32, 8, 2, 2
    mlp_dim = dim
    x_dim = y_dim = H // patch_dim
    num_tokens = x_dim * y_dim

    key = jax.random.PRNGKey(0)
    kx, kp = jax.random.split(key)
    x = jax.random.normal(kx, (B, C, H, W), jnp.float32)
    params = init_params(kp, C, dim, mlp_dim, block_num, head_num,
                         patch_dim, num_tokens)

    fwd = jax.jit(functools.partial(
        get_trans_forward, patch_dim=patch_dim, head_num=head_num,
        x_dim=x_dim, y_dim=y_dim,
        token_tile=32))   # small tile so the demo exercises multiple q tiles

    out = jax.block_until_ready(fwd(x, params))
    assert out.shape == (B, dim, x_dim, y_dim), out.shape
    assert bool(jnp.all(jnp.isfinite(out)))

    ref = ref_forward(x, params, patch_dim=patch_dim, head_num=head_num,
                      x_dim=x_dim, y_dim=y_dim)
    err = float(jnp.max(jnp.abs(out - ref)))
    assert err < 0.25, f"max abs err vs reference: {err}"
    print("KERNEL_OK")
</pallas_src>

<mosaic_0001>
module attributes {stable_mosaic.version = 11 : i64} {
  func.func @k(%arg0: memref<8x128xf32, #tpu.memory_space<vmem>>, %arg1: memref<8x128xf32, #tpu.memory_space<vmem>>) attributes {dimension_semantics = [], scalar_prefetch = 0 : i64, scratch_operands = 0 : i64, tpu.core_type = #tpu.core_type<tc>} {
    %c0 = arith.constant 0 : index
    %c0_0 = arith.constant 0 : index
    %0 = vector.load %arg0[%c0, %c0_0] : memref<8x128xf32, #tpu.memory_space<vmem>>, vector<8x128xf32>
    %1 = math.erf %0 : vector<8x128xf32>
    %c0_1 = arith.constant 0 : index
    %c0_2 = arith.constant 0 : index
    %2 = vector.load %arg1[%c0_1, %c0_2] : memref<8x128xf32, #tpu.memory_space<vmem>>, vector<8x128xf32>
    tpu.vector_store %arg1[%c0_1, %c0_2], %1 {strides = array<i32>} : memref<8x128xf32, #tpu.memory_space<vmem>>, vector<8x128xf32>,
    return
  }
}

module attributes {stable_mosaic.version = 11 : i64} {
  func.func @_embed_kernel(%arg0: i32, %arg1: i32, %arg2: memref<1x32x16xbf16, #tpu.memory_space<vmem>>, %arg3: memref<16x32xbf16, #tpu.memory_space<vmem>>, %arg4: memref<32x32xf32, #tpu.memory_space<vmem>>, %arg5: memref<1x32x32xbf16, #tpu.memory_space<vmem>>) attributes {dimension_semantics = [#tpu.dimension_semantics<parallel>, #tpu.dimension_semantics<parallel>], iteration_bounds = array<i64: 2, 3>, scalar_prefetch = 0 : i64, scratch_operands = 0 : i64, tpu.core_type = #tpu.core_type<tc>, window_params = [{transform_indices = @transform_0, window_bounds = array<i64: 1, 32, 16>}, {pipeline_mode = #tpu.pipeline_mode<synchronous>, transform_indices = @transform_1, window_bounds = array<i64: 16, 32>}, {transform_indices = @transform_2, window_bounds = array<i64: 32, 32>}, {transform_indices = @transform_3, window_bounds = array<i64: 1, 32, 32>}]} {
    %c0 = arith.constant 0 : index
    %c0_0 = arith.constant 0 : index
    %c0_1 = arith.constant 0 : index
    %0 = vector.load %arg2[%c0, %c0_0, %c0_1] : memref<1x32x16xbf16, #tpu.memory_space<vmem>>, vector<1x32x16xbf16>
    %1 = vector.shape_cast %0 : vector<1x32x16xbf16> to vector<32x16xbf16>
    %c0_2 = arith.constant 0 : index
    %c0_3 = arith.constant 0 : index
    %2 = vector.load %arg3[%c0_2, %c0_3] : memref<16x32xbf16, #tpu.memory_space<vmem>>, vector<16x32xbf16>
    %cst = arith.constant dense<0.000000e+00> : vector<32x32xf32>
    %3 = tpu.matmul %1, %2, %cst {dimension_numbers = #tpu.dot_dimension_numbers<[1], [0], [0], [1], [0, 0, 1, 1], [], []>} : vector<32x16xbf16>, vector<16x32xbf16>, vector<32x32xf32> -> vector<32x32xf32>
    %c0_4 = arith.constant 0 : index
    %c0_5 = arith.constant 0 : index
    %4 = vector.load %arg4[%c0_4, %c0_5] : memref<32x32xf32, #tpu.memory_space<vmem>>, vector<32x32xf32>
    %5 = arith.addf %3, %4 : vector<32x32xf32>
    %6 = arith.truncf %5 : vector<32x32xf32> to vector<32x32xbf16>
    %c0_6 = arith.constant 0 : index
    %c0_7 = arith.constant 0 : index
    %c0_8 = arith.constant 0 : index
    %7 = vector.load %arg5[%c0_6, %c0_7, %c0_8] : memref<1x32x32xbf16, #tpu.memory_space<vmem>>, vector<1x32x32xbf16>
    %8 = vector.shape_cast %7 : vector<1x32x32xbf16> to vector<32x32xbf16>
    %9 = vector.shape_cast %6 : vector<32x32xbf16> to vector<1x32x32xbf16>
    tpu.vector_store %arg5[%c0_6, %c0_7, %c0_8], %9 {strides = array<i32>} : memref<1x32x32xbf16, #tpu.memory_space<vmem>>, vector<1x32x32xbf16>,
    return
  }
  func.func @transform_0(%arg0: i32, %arg1: i32) -> (i32, i32, i32) {
    %c0_i32 = arith.constant 0 : i32
    %c0_i32_0 = arith.constant 0 : i32
    return %arg0, %arg1, %c0_i32 : i32, i32, i32
  }
  func.func @transform_1(%arg0: i32, %arg1: i32) -> (i32, i32) {
    %c0_i32 = arith.constant 0 : i32
    %c0_i32_0 = arith.constant 0 : i32
    %c0_i32_1 = arith.constant 0 : i32
    return %c0_i32, %c0_i32_0 : i32, i32
  }
  func.func @transform_2(%arg0: i32, %arg1: i32) -> (i32, i32) {
    %c0_i32 = arith.constant 0 : i32
    %c0_i32_0 = arith.constant 0 : i32
    return %arg1, %c0_i32 : i32, i32
  }
  func.func @transform_3(%arg0: i32, %arg1: i32) -> (i32, i32, i32) {
    %c0_i32 = arith.constant 0 : i32
    %c0_i32_0 = arith.constant 0 : i32
    return %arg0, %arg1, %c0_i32 : i32, i32, i32
  }
}

module attributes {stable_mosaic.version = 11 : i64} {
  func.func @_block_kernel(%arg0: i32, %arg1: i32, %arg2: memref<1x32x32xbf16, #tpu.memory_space<vmem>>, %arg3: memref<1x32x32xbf16, #tpu.memory_space<vmem>>, %arg4: memref<1x96x32xbf16, #tpu.memory_space<vmem>>, %arg5: memref<1x96x32xbf16, #tpu.memory_space<vmem>>, %arg6: memref<32x32xbf16, #tpu.memory_space<vmem>>, %arg7: memref<1x32xf32, #tpu.memory_space<vmem>>, %arg8: memref<1x32xf32, #tpu.memory_space<vmem>>, %arg9: memref<32x32xbf16, #tpu.memory_space<vmem>>, %arg10: memref<1x32xf32, #tpu.memory_space<vmem>>, %arg11: memref<32x32xbf16, #tpu.memory_space<vmem>>, %arg12: memref<1x32xf32, #tpu.memory_space<vmem>>, %arg13: memref<1x32xf32, #tpu.memory_space<vmem>>, %arg14: memref<1x32xf32, #tpu.memory_space<vmem>>, %arg15: memref<1x32x32xbf16, #tpu.memory_space<vmem>>) attributes {dimension_semantics = [#tpu.dimension_semantics<parallel>, #tpu.dimension_semantics<parallel>], iteration_bounds = array<i64: 2, 3>, scalar_prefetch = 0 : i64, scratch_operands = 0 : i64, tpu.core_type = #tpu.core_type<tc>, window_params = [{transform_indices = @transform_0, window_bounds = array<i64: 1, 32, 32>}, {transform_indices = @transform_1, window_bounds = array<i64: 1, 32, 32>}, {transform_indices = @transform_2, window_bounds = array<i64: 1, 96, 32>}, {transform_indices = @transform_3, window_bounds = array<i64: 1, 96, 32>}, {pipeline_mode = #tpu.pipeline_mode<synchronous>, transform_indices = @transform_4, window_bounds = array<i64: 32, 32>}, {pipeline_mode = #tpu.pipeline_mode<synchronous>, transform_indices = @transform_5, window_bounds = array<i64: 1, 32>}, {pipeline_mode = #tpu.pipeline_mode<synchronous>, transform_indices = @transform_6, window_bounds = array<i64: 1, 32>}, {pipeline_mode = #tpu.pipeline_mode<synchronous>, transform_indices = @transform_7, window_bounds = array<i64: 32, 32>}, {pipeline_mode = #tpu.pipeline_mode<synchronous>, transform_indices = @transform_8, window_bounds = array<i64: 1, 32>}, {pipeline_mode = #tpu.pipeline_mode<synchronous>, transform_indices = @transform_9, window_bounds = array<i64: 32, 32>}, {pipeline_mode = #tpu.pipeline_mode<synchronous>, transform_indices = @transform_10, window_bounds = array<i64: 1, 32>}, {pipeline_mode = #tpu.pipeline_mode<synchronous>, transform_indices = @transform_11, window_bounds = array<i64: 1, 32>}, {pipeline_mode = #tpu.pipeline_mode<synchronous>, transform_indices = @transform_12, window_bounds = array<i64: 1, 32>}, {transform_indices = @transform_13, window_bounds = array<i64: 1, 32, 32>}]} {
    %c0 = arith.constant 0 : index
    %c0_0 = arith.constant 0 : index
    %c0_1 = arith.constant 0 : index
    %0 = vector.load %arg3[%c0, %c0_0, %c0_1] : memref<1x32x32xbf16, #tpu.memory_space<vmem>>, vector<1x32x32xbf16>
    %1 = vector.shape_cast %0 : vector<1x32x32xbf16> to vector<32x32xbf16>
    %c0_2 = arith.constant 0 : index
    %c0_3 = arith.constant 0 : index
    %c0_4 = arith.constant 0 : index
    %2 = vector.load %arg4[%c0_2, %c0_3, %c0_4] : memref<1x96x32xbf16, #tpu.memory_space<vmem>>, vector<1x96x32xbf16>
    %3 = vector.shape_cast %2 : vector<1x96x32xbf16> to vector<96x32xbf16>
    %c0_5 = arith.constant 0 : index
    %c0_6 = arith.constant 0 : index
    %c0_7 = arith.constant 0 : index
    %4 = vector.load %arg5[%c0_5, %c0_6, %c0_7] : memref<1x96x32xbf16, #tpu.memory_space<vmem>>, vector<1x96x32xbf16>
    %5 = vector.shape_cast %4 : vector<1x96x32xbf16> to vector<96x32xbf16>
    %6 = tpu.iota {dimensions = array<i32: 1>} : vector<1x96xi32>
    %c65_i32 = arith.constant 65 : i32
    %7 = vector.broadcast %c65_i32 : i32 to vector<1x96xi32>
    %8 = arith.cmpi slt, %6, %7 : vector<1x96xi32>
    %9 = vector.extract_strided_slice %1 {offsets = [0, 0], sizes = [32, 4], strides = [1, 1]} : vector<32x32xbf16> to vector<32x4xbf16>
    %10 = vector.extract_strided_slice %3 {offsets = [0, 0], sizes = [96, 4], strides = [1, 1]} : vector<96x32xbf16> to vector<96x4xbf16>
    %11 = vector.extract_strided_slice %5 {offsets = [0, 0], sizes = [96, 4], strides = [1, 1]} : vector<96x32xbf16> to vector<96x4xbf16>
    %cst = arith.constant dense<0.000000e+00> : vector<32x96xf32>
    %12 = tpu.matmul %9, %10, %cst {dimension_numbers = #tpu.dot_dimension_numbers<[1], [1], [0], [0], [0, 0, 1, 0], [], []>} : vector<32x4xbf16>, vector<96x4xbf16>, vector<32x96xf32> -> vector<32x96xf32>
    %cst_8 = arith.constant -1.000000e+30 : f32
    %13 = vector.shape_cast %8 : vector<1x96xi1> to vector<1x96xi1>
    %14 = vector.broadcast %13 : vector<1x96xi1> to vector<32x96xi1>
    %15 = vector.broadcast %cst_8 : f32 to vector<32x96xf32>
    %16 = arith.select %14, %12, %15 : vector<32x96xi1>, vector<32x96xf32>
    %cst_9 = arith.constant dense<0xFF800000> : vector<32xf32>
    %17 = vector.multi_reduction <maximumf>, %16, %cst_9 [1] : vector<32x96xf32> to vector<32xf32>
    %18 = vector.shape_cast %17 : vector<32xf32> to vector<32x1xf32>
    %19 = vector.broadcast %18 : vector<32x1xf32> to vector<32x96xf32>
    %20 = arith.subf %16, %19 : vector<32x96xf32>
    %21 = math.exp %20 : vector<32x96xf32>
    %cst_10 = arith.constant dense<0.000000e+00> : vector<32xf32>
    %22 = vector.multi_reduction <add>, %21, %cst_10 [1] : vector<32x96xf32> to vector<32xf32>
    %23 = vector.shape_cast %22 : vector<32xf32> to vector<32x1xf32>
    %24 = arith.truncf %21 : vector<32x96xf32> to vector<32x96xbf16>
    %cst_11 = arith.constant dense<0.000000e+00> : vector<32x4xf32>
    %25 = tpu.matmul %24, %11, %cst_11 {dimension_numbers = #tpu.dot_dimension_numbers<[1], [0], [0], [1], [0, 0, 1, 1], [], []>} : vector<32x96xbf16>, vector<96x4xbf16>, vector<32x4xf32> -> vector<32x4xf32>
    %26 = tpu.reciprocal %23 {approx = true} : vector<32x1xf32> -> vector<32x1xf32>
    %27 = vector.broadcast %26 : vector<32x1xf32> to vector<32x4xf32>
    %28 = arith.mulf %25, %27 : vector<32x4xf32>
    %29 = vector.extract_strided_slice %1 {offsets = [0, 4], sizes = [32, 4], strides = [1, 1]} : vector<32x32xbf16> to vector<32x4xbf16>
    %30 = vector.extract_strided_slice %3 {offsets = [0, 4], sizes = [96, 4], strides = [1, 1]} : vector<96x32xbf16> to vector<96x4xbf16>
    %31 = vector.extract_strided_slice %5 {offsets = [0, 4], sizes = [96, 4], strides = [1, 1]} : vector<96x32xbf16> to vector<96x4xbf16>
    %cst_12 = arith.constant dense<0.000000e+00> : vector<32x96xf32>
    %32 = tpu.matmul %29, %30, %cst_12 {dimension_numbers = #tpu.dot_dimension_numbers<[1], [1], [0], [0], [0, 0, 1, 0], [], []>} : vector<32x4xbf16>, vector<96x4xbf16>, vector<32x96xf32> -> vector<32x96xf32>
    %cst_13 = arith.constant -1.000000e+30 : f32
    %33 = vector.shape_cast %8 : vector<1x96xi1> to vector<1x96xi1>
    %34 = vector.broadcast %33 : vector<1x96xi1> to vector<32x96xi1>
    %35 = vector.broadcast %cst_13 : f32 to vector<32x96xf32>
    %36 = arith.select %34, %32, %35 : vector<32x96xi1>, vector<32x96xf32>
    %cst_14 = arith.constant dense<0xFF800000> : vector<32xf32>
    %37 = vector.multi_reduction <maximumf>, %36, %cst_14 [1] : vector<32x96xf32> to vector<32xf32>
    %38 = vector.shape_cast %37 : vector<32xf32> to vector<32x1xf32>
    %39 = vector.broadcast %38 : vector<32x1xf32> to vector<32x96xf32>
    %40 = arith.subf %36, %39 : vector<32x96xf32>
    %41 = math.exp %40 : vector<32x96xf32>
    %cst_15 = arith.constant dense<0.000000e+00> : vector<32xf32>
    %42 = vector.multi_reduction <add>, %41, %cst_15 [1] : vector<32x96xf32> to vector<32xf32>
    %43 = vector.shape_cast %42 : vector<32xf32> to vector<32x1xf32>
    %44 = arith.truncf %41 : vector<32x96xf32> to vector<32x96xbf16>
    %cst_16 = arith.constant dense<0.000000e+00> : vector<32x4xf32>
    %45 = tpu.matmul %44, %31, %cst_16 {dimension_numbers = #tpu.dot_dimension_numbers<[1], [0], [0], [1], [0, 0, 1, 1], [], []>} : vector<32x96xbf16>, vector<96x4xbf16>, vector<32x4xf32> -> vector<32x4xf32>
    %46 = tpu.reciprocal %43 {approx = true} : vector<32x1xf32> -> vector<32x1xf32>
    %47 = vector.broadcast %46 : vector<32x1xf32> to vector<32x4xf32>
    %48 = arith.mulf %45, %47 : vector<32x4xf32>
    %49 = vector.extract_strided_slice %1 {offsets = [0, 8], sizes = [32, 4], strides = [1, 1]} : vector<32x32xbf16> to vector<32x4xbf16>
    %50 = vector.extract_strided_slice %3 {offsets = [0, 8], sizes = [96, 4], strides = [1, 1]} : vector<96x32xbf16> to vector<96x4xbf16>
    %51 = vector.extract_strided_slice %5 {offsets = [0, 8], sizes = [96, 4], strides = [1, 1]} : vector<96x32xbf16> to vector<96x4xbf16>
    %cst_17 = arith.constant dense<0.000000e+00> : vector<32x96xf32>
    %52 = tpu.matmul %49, %50, %cst_17 {dimension_numbers = #tpu.dot_dimension_numbers<[1], [1], [0], [0], [0, 0, 1, 0], [], []>} : vector<32x4xbf16>, vector<96x4xbf16>, vector<32x96xf32> -> vector<32x96xf32>
    %cst_18 = arith.constant -1.000000e+30 : f32
    %53 = vector.shape_cast %8 : vector<1x96xi1> to vector<1x96xi1>
    %54 = vector.broadcast %53 : vector<1x96xi1> to vector<32x96xi1>
    %55 = vector.broadcast %cst_18 : f32 to vector<32x96xf32>
    %56 = arith.select %54, %52, %55 : vector<32x96xi1>, vector<32x96xf32>
    %cst_19 = arith.constant dense<0xFF800000> : vector<32xf32>
    %57 = vector.multi_reduction <maximumf>, %56, %cst_19 [1] : vector<32x96xf32> to vector<32xf32>
    %58 = vector.shape_cast %57 : vector<32xf32> to vector<32x1xf32>
    %59 = vector.broadcast %58 : vector<32x1xf32> to vector<32x96xf32>
    %60 = arith.subf %56, %59 : vector<32x96xf32>
    %61 = math.exp %60 : vector<32x96xf32>
    %cst_20 = arith.constant dense<0.000000e+00> : vector<32xf32>
    %62 = vector.multi_reduction <add>, %61, %cst_20 [1] : vector<32x96xf32> to vector<32xf32>
    %63 = vector.shape_cast %62 : vector<32xf32> to vector<32x1xf32>
    %64 = arith.truncf %61 : vector<32x96xf32> to vector<32x96xbf16>
    %cst_21 = arith.constant dense<0.000000e+00> : vector<32x4xf32>
    %65 = tpu.matmul %64, %51, %cst_21 {dimension_numbers = #tpu.dot_dimension_numbers<[1], [0], [0], [1], [0, 0, 1, 1], [], []>} : vector<32x96xbf16>, vector<96x4xbf16>, vector<32x4xf32> -> vector<32x4xf32>
    %66 = tpu.reciprocal %63 {approx = true} : vector<32x1xf32> -> vector<32x1xf32>
    %67 = vector.broadcast %66 : vector<32x1xf32> to vector<32x4xf32>
    %68 = arith.mulf %65, %67 : vector<32x4xf32>
    %69 = vector.extract_strided_slice %1 {offsets = [0, 12], sizes = [32, 4], strides = [1, 1]} : vector<32x32xbf16> to vector<32x4xbf16>
    %70 = vector.extract_strided_slice %3 {offsets = [0, 12], sizes = [96, 4], strides = [1, 1]} : vector<96x32xbf16> to vector<96x4xbf16>
    %71 = vector.extract_strided_slice %5 {offsets = [0, 12], sizes = [96, 4], strides = [1, 1]} : vector<96x32xbf16> to vector<96x4xbf16>
    %cst_22 = arith.constant dense<0.000000e+00> : vector<32x96xf32>
    %72 = tpu.matmul %69, %70, %cst_22 {dimension_numbers = #tpu.dot_dimension_numbers<[1], [1], [0], [0], [0, 0, 1, 0], [], []>} : vector<32x4xbf16>, vector<96x4xbf16>, vector<32x96xf32> -> vector<32x96xf32>
    %cst_23 = arith.constant -1.000000e+30 : f32
    %73 = vector.shape_cast %8 : vector<1x96xi1> to vector<1x96xi1>
    %74 = vector.broadcast %73 : vector<1x96xi1> to vector<32x96xi1>
    %75 = vector.broadcast %cst_23 : f32 to vector<32x96xf32>
    %76 = arith.select %74, %72, %75 : vector<32x96xi1>, vector<32x96xf32>
    %cst_24 = arith.constant dense<0xFF800000> : vector<32xf32>
    %77 = vector.multi_reduction <maximumf>, %76, %cst_24 [1] : vector<32x96xf32> to vector<32xf32>
    %78 = vector.shape_cast %77 : vector<32xf32> to vector<32x1xf32>
    %79 = vector.broadcast %78 : vector<32x1xf32> to vector<32x96xf32>
    %80 = arith.subf %76, %79 : vector<32x96xf32>
    %81 = math.exp %80 : vector<32x96xf32>
    %cst_25 = arith.constant dense<0.000000e+00> : vector<32xf32>
    %82 = vector.multi_reduction <add>, %81, %cst_25 [1] : vector<32x96xf32> to vector<32xf32>
    %83 = vector.shape_cast %82 : vector<32xf32> to vector<32x1xf32>
    %84 = arith.truncf %81 : vector<32x96xf32> to vector<32x96xbf16>
    %cst_26 = arith.constant dense<0.000000e+00> : vector<32x4xf32>
    %85 = tpu.matmul %84, %71, %cst_26 {dimension_numbers = #tpu.dot_dimension_numbers<[1], [0], [0], [1], [0, 0, 1, 1], [], []>} : vector<32x96xbf16>, vector<96x4xbf16>, vector<32x4xf32> -> vector<32x4xf32>
    %86 = tpu.reciprocal %83 {approx = true} : vector<32x1xf32> -> vector<32x1xf32>
    %87 = vector.broadcast %86 : vector<32x1xf32> to vector<32x4xf32>
    %88 = arith.mulf %85, %87 : vector<32x4xf32>
    %89 = vector.extract_strided_slice %1 {offsets = [0, 16], sizes = [32, 4], strides = [1, 1]} : vector<32x32xbf16> to vector<32x4xbf16>
    %90 = vector.extract_strided_slice %3 {offsets = [0, 16], sizes = [96, 4], strides = [1, 1]} : vector<96x32xbf16> to vector<96x4xbf16>
    %91 = vector.extract_strided_slice %5 {offsets = [0, 16], sizes = [96, 4], strides = [1, 1]} : vector<96x32xbf16> to vector<96x4xbf16>
    %cst_27 = arith.constant dense<0.000000e+00> : vector<32x96xf32>
    %92 = tpu.matmul %89, %90, %cst_27 {dimension_numbers = #tpu.dot_dimension_numbers<[1], [1], [0], [0], [0, 0, 1, 0], [], []>} : vector<32x4xbf16>, vector<96x4xbf16>, vector<32x96xf32> -> vector<32x96xf32>
    %cst_28 = arith.constant -1.000000e+30 : f32
    %93 = vector.shape_cast %8 : vector<1x96xi1> to vector<1x96xi1>
    %94 = vector.broadcast %93 : vector<1x96xi1> to vector<32x96xi1>
    %95 = vector.broadcast %cst_28 : f32 to vector<32x96xf32>
    %96 = arith.select %94, %92, %95 : vector<32x96xi1>, vector<32x96xf32>
    %cst_29 = arith.constant dense<0xFF800000> : vector<32xf32>
    %97 = vector.multi_reduction <maximumf>, %96, %cst_29 [1] : vector<32x96xf32> to vector<32xf32>
    %98 = vector.shape_cast %97 : vector<32xf32> to vector<32x1xf32>
    %99 = vector.broadcast %98 : vector<32x1xf32> to vector<32x96xf32>
    %100 = arith.subf %96, %99 : vector<32x96xf32>
    %101 = math.exp %100 : vector<32x96xf32>
    %cst_30 = arith.constant dense<0.000000e+00> : vector<32xf32>
    %102 = vector.multi_reduction <add>, %101, %cst_30 [1] : vector<32x96xf32> to vector<32xf32>
    %103 = vector.shape_cast %102 : vector<32xf32> to vector<32x1xf32>
    %104 = arith.truncf %101 : vector<32x96xf32> to vector<32x96xbf16>
    %cst_31 = arith.constant dense<0.000000e+00> : vector<32x4xf32>
    %105 = tpu.matmul %104, %91, %cst_31 {dimension_numbers = #tpu.dot_dimension_numbers<[1], [0], [0], [1], [0, 0, 1, 1], [], []>} : vector<32x96xbf16>, vector<96x4xbf16>, vector<32x4xf32> -> vector<32x4xf32>
    %106 = tpu.reciprocal %103 {approx = true} : vector<32x1xf32> -> vector<32x1xf32>
    %107 = vector.broadcast %106 : vector<32x1xf32> to vector<32x4xf32>
    %108 = arith.mulf %105, %107 : vector<32x4xf32>
    %109 = vector.extract_strided_slice %1 {offsets = [0, 20], sizes = [32, 4], strides = [1, 1]} : vector<32x32xbf16> to vector<32x4xbf16>
    %110 = vector.extract_strided_slice %3 {offsets = [0, 20], sizes = [96, 4], strides = [1, 1]} : vector<96x32xbf16> to vector<96x4xbf16>
    %111 = vector.extract_strided_slice %5 {offsets = [0, 20], sizes = [96, 4], strides = [1, 1]} : vector<96x32xbf16> to vector<96x4xbf16>
    %cst_32 = arith.constant dense<0.000000e+00> : vector<32x96xf32>
    %112 = tpu.matmul %109, %110, %cst_32 {dimension_numbers = #tpu.dot_dimension_numbers<[1], [1], [0], [0], [0, 0, 1, 0], [], []>} : vector<32x4xbf16>, vector<96x4xbf16>, vector<32x96xf32> -> vector<32x96xf32>
    %cst_33 = arith.constant -1.000000e+30 : f32
    %113 = vector.shape_cast %8 : vector<1x96xi1> to vector<1x96xi1>
    %114 = vector.broadcast %113 : vector<1x96xi1> to vector<32x96xi1>
    %115 = vector.broadcast %cst_33 : f32 to vector<32x96xf32>
    %116 = arith.select %114, %112, %115 : vector<32x96xi1>, vector<32x96xf32>
    %cst_34 = arith.constant dense<0xFF800000> : vector<32xf32>
    %117 = vector.multi_reduction <maximumf>, %116, %cst_34 [1] : vector<32x96xf32> to vector<32xf32>
    %118 = vector.shape_cast %117 : vector<32xf32> to vector<32x1xf32>
    %119 = vector.broadcast %118 : vector<32x1xf32> to vector<32x96xf32>
    %120 = arith.subf %116, %119 : vector<32x96xf32>
    %121 = math.exp %120 : vector<32x96xf32>
    %cst_35 = arith.constant dense<0.000000e+00> : vector<32xf32>
    %122 = vector.multi_reduction <add>, %121, %cst_35 [1] : vector<32x96xf32> to vector<32xf32>
    %123 = vector.shape_cast %122 : vector<32xf32> to vector<32x1xf32>
    %124 = arith.truncf %121 : vector<32x96xf32> to vector<32x96xbf16>
    %cst_36 = arith.constant dense<0.000000e+00> : vector<32x4xf32>
    %125 = tpu.matmul %124, %111, %cst_36 {dimension_numbers = #tpu.dot_dimension_numbers<[1], [0], [0], [1], [0, 0, 1, 1], [], []>} : vector<32x96xbf16>, vector<96x4xbf16>, vector<32x4xf32> -> vector<32x4xf32>
    %126 = tpu.reciprocal %123 {approx = true} : vector<32x1xf32> -> vector<32x1xf32>
    %127 = vector.broadcast %126 : vector<32x1xf32> to vector<32x4xf32>
    %128 = arith.mulf %125, %127 : vector<32x4xf32>
    %129 = vector.extract_strided_slice %1 {offsets = [0, 24], sizes = [32, 4], strides = [1, 1]} : vector<32x32xbf16> to vector<32x4xbf16>
    %130 = vector.extract_strided_slice %3 {offsets = [0, 24], sizes = [96, 4], strides = [1, 1]} : vector<96x32xbf16> to vector<96x4xbf16>
    %131 = vector.extract_strided_slice %5 {offsets = [0, 24], sizes = [96, 4], strides = [1, 1]} : vector<96x32xbf16> to vector<96x4xbf16>
    %cst_37 = arith.constant dense<0.000000e+00> : vector<32x96xf32>
    %132 = tpu.matmul %129, %130, %cst_37 {dimension_numbers = #tpu.dot_dimension_numbers<[1], [1], [0], [0], [0, 0, 1, 0], [], []>} : vector<32x4xbf16>, vector<96x4xbf16>, vector<32x96xf32> -> vector<32x96xf32>
    %cst_38 = arith.constant -1.000000e+30 : f32
    %133 = vector.shape_cast %8 : vector<1x96xi1> to vector<1x96xi1>
    %134 = vector.broadcast %133 : vector<1x96xi1> to vector<32x96xi1>
    %135 = vector.broadcast %cst_38 : f32 to vector<32x96xf32>
    %136 = arith.select %134, %132, %135 : vector<32x96xi1>, vector<32x96xf32>
    %cst_39 = arith.constant dense<0xFF800000> : vector<32xf32>
    %137 = vector.multi_reduction <maximumf>, %136, %cst_39 [1] : vector<32x96xf32> to vector<32xf32>
    %138 = vector.shape_cast %137 : vector<32xf32> to vector<32x1xf32>
    %139 = vector.broadcast %138 : vector<32x1xf32> to vector<32x96xf32>
    %140 = arith.subf %136, %139 : vector<32x96xf32>
    %141 = math.exp %140 : vector<32x96xf32>
    %cst_40 = arith.constant dense<0.000000e+00> : vector<32xf32>
    %142 = vector.multi_reduction <add>, %141, %cst_40 [1] : vector<32x96xf32> to vector<32xf32>
    %143 = vector.shape_cast %142 : vector<32xf32> to vector<32x1xf32>
    %144 = arith.truncf %141 : vector<32x96xf32> to vector<32x96xbf16>
    %cst_41 = arith.constant dense<0.000000e+00> : vector<32x4xf32>
    %145 = tpu.matmul %144, %131, %cst_41 {dimension_numbers = #tpu.dot_dimension_numbers<[1], [0], [0], [1], [0, 0, 1, 1], [], []>} : vector<32x96xbf16>, vector<96x4xbf16>, vector<32x4xf32> -> vector<32x4xf32>
    %146 = tpu.reciprocal %143 {approx = true} : vector<32x1xf32> -> vector<32x1xf32>
    %147 = vector.broadcast %146 : vector<32x1xf32> to vector<32x4xf32>
    %148 = arith.mulf %145, %147 : vector<32x4xf32>
    %149 = vector.extract_strided_slice %1 {offsets = [0, 28], sizes = [32, 4], strides = [1, 1]} : vector<32x32xbf16> to vector<32x4xbf16>
    %150 = vector.extract_strided_slice %3 {offsets = [0, 28], sizes = [96, 4], strides = [1, 1]} : vector<96x32xbf16> to vector<96x4xbf16>
    %151 = vector.extract_strided_slice %5 {offsets = [0, 28], sizes = [96, 4], strides = [1, 1]} : vector<96x32xbf16> to vector<96x4xbf16>
    %cst_42 = arith.constant dense<0.000000e+00> : vector<32x96xf32>
    %152 = tpu.matmul %149, %150, %cst_42 {dimension_numbers = #tpu.dot_dimension_numbers<[1], [1], [0], [0], [0, 0, 1, 0], [], []>} : vector<32x4xbf16>, vector<96x4xbf16>, vector<32x96xf32> -> vector<32x96xf32>
    %cst_43 = arith.constant -1.000000e+30 : f32
    %153 = vector.shape_cast %8 : vector<1x96xi1> to vector<1x96xi1>
    %154 = vector.broadcast %153 : vector<1x96xi1> to vector<32x96xi1>
    %155 = vector.broadcast %cst_43 : f32 to vector<32x96xf32>
    %156 = arith.select %154, %152, %155 : vector<32x96xi1>, vector<32x96xf32>
    %cst_44 = arith.constant dense<0xFF800000> : vector<32xf32>
    %157 = vector.multi_reduction <maximumf>, %156, %cst_44 [1] : vector<32x96xf32> to vector<32xf32>
    %158 = vector.shape_cast %157 : vector<32xf32> to vector<32x1xf32>
    %159 = vector.broadcast %158 : vector<32x1xf32> to vector<32x96xf32>
    %160 = arith.subf %156, %159 : vector<32x96xf32>
    %161 = math.exp %160 : vector<32x96xf32>
    %cst_45 = arith.constant dense<0.000000e+00> : vector<32xf32>
    %162 = vector.multi_reduction <add>, %161, %cst_45 [1] : vector<32x96xf32> to vector<32xf32>
    %163 = vector.shape_cast %162 : vector<32xf32> to vector<32x1xf32>
    %164 = arith.truncf %161 : vector<32x96xf32> to vector<32x96xbf16>
    %cst_46 = arith.constant dense<0.000000e+00> : vector<32x4xf32>
    %165 = tpu.matmul %164, %151, %cst_46 {dimension_numbers = #tpu.dot_dimension_numbers<[1], [0], [0], [1], [0, 0, 1, 1], [], []>} : vector<32x96xbf16>, vector<96x4xbf16>, vector<32x4xf32> -> vector<32x4xf32>
    %166 = tpu.reciprocal %163 {approx = true} : vector<32x1xf32> -> vector<32x1xf32>
    %167 = vector.broadcast %166 : vector<32x1xf32> to vector<32x4xf32>
    %168 = arith.mulf %165, %167 : vector<32x4xf32>
    %169 = tpu.concatenate %28, %48, %68, %88, %108, %128, %148, %168 in 1 : vector<32x4xf32>, vector<32x4xf32>, vector<32x4xf32>, vector<32x4xf32>, vector<32x4xf32>, vector<32x4xf32>, vector<32x4xf32>, vector<32x4xf32> -> vector<32x32xf32>
    %170 = arith.truncf %169 : vector<32x32xf32> to vector<32x32xbf16>
    %c0_47 = arith.constant 0 : index
    %c0_48 = arith.constant 0 : index
    %171 = vector.load %arg6[%c0_47, %c0_48] : memref<32x32xbf16, #tpu.memory_space<vmem>>, vector<32x32xbf16>
    %cst_49 = arith.constant dense<0.000000e+00> : vector<32x32xf32>
    %172 = tpu.matmul %170, %171, %cst_49 {dimension_numbers = #tpu.dot_dimension_numbers<[1], [0], [0], [1], [0, 0, 1, 1], [], []>} : vector<32x32xbf16>, vector<32x32xbf16>, vector<32x32xf32> -> vector<32x32xf32>
    %c0_50 = arith.constant 0 : index
    %c0_51 = arith.constant 0 : index
    %c0_52 = arith.constant 0 : index
    %173 = vector.load %arg2[%c0_50, %c0_51, %c0_52] : memref<1x32x32xbf16, #tpu.memory_space<vmem>>, vector<1x32x32xbf16>
    %174 = vector.shape_cast %173 : vector<1x32x32xbf16> to vector<32x32xbf16>
    %175 = arith.extf %174 : vector<32x32xbf16> to vector<32x32xf32>
    %176 = arith.addf %175, %172 : vector<32x32xf32>
    %c0_53 = arith.constant 0 : index
    %c0_54 = arith.constant 0 : index
    %177 = vector.load %arg7[%c0_53, %c0_54] : memref<1x32xf32, #tpu.memory_space<vmem>>, vector<1x32xf32>
    %c0_55 = arith.constant 0 : index
    %c0_56 = arith.constant 0 : index
    %178 = vector.load %arg8[%c0_55, %c0_56] : memref<1x32xf32, #tpu.memory_space<vmem>>, vector<1x32xf32>
    %cst_57 = arith.constant dense<0.000000e+00> : vector<32xf32>
    %179 = vector.multi_reduction <add>, %176, %cst_57 [1] : vector<32x32xf32> to vector<32xf32>
    %180 = vector.shape_cast %179 : vector<32xf32> to vector<32x1xf32>
    %cst_58 = arith.constant 3.200000e+01 : f32
    %181 = vector.broadcast %cst_58 : f32 to vector<32x1xf32>
    %182 = arith.divf %180, %181 : vector<32x1xf32>
    %183 = vector.broadcast %182 : vector<32x1xf32> to vector<32x32xf32>
    %184 = arith.subf %176, %183 : vector<32x32xf32>
    %185 = arith.mulf %184, %184 : vector<32x32xf32>
    %cst_59 = arith.constant dense<0.000000e+00> : vector<32xf32>
    %186 = vector.multi_reduction <add>, %185, %cst_59 [1] : vector<32x32xf32> to vector<32xf32>
    %187 = vector.shape_cast %186 : vector<32xf32> to vector<32x1xf32>
    %cst_60 = arith.constant 3.200000e+01 : f32
    %188 = vector.broadcast %cst_60 : f32 to vector<32x1xf32>
    %189 = arith.divf %187, %188 : vector<32x1xf32>
    %190 = vector.broadcast %182 : vector<32x1xf32> to vector<32x32xf32>
    %191 = arith.subf %176, %190 : vector<32x32xf32>
    %cst_61 = arith.constant 9.99999974E-6 : f32
    %192 = vector.broadcast %cst_61 : f32 to vector<32x1xf32>
    %193 = arith.addf %189, %192 : vector<32x1xf32>
    %194 = math.rsqrt %193 : vector<32x1xf32>
    %195 = vector.broadcast %194 : vector<32x1xf32> to vector<32x32xf32>
    %196 = arith.mulf %191, %195 : vector<32x32xf32>
    %197 = vector.broadcast %177 : vector<1x32xf32> to vector<32x32xf32>
    %198 = arith.mulf %196, %197 : vector<32x32xf32>
    %199 = vector.broadcast %178 : vector<1x32xf32> to vector<32x32xf32>
    %200 = arith.addf %198, %199 : vector<32x32xf32>
    %201 = arith.truncf %200 : vector<32x32xf32> to vector<32x32xbf16>
    %c0_62 = arith.constant 0 : index
    %c0_63 = arith.constant 0 : index
    %202 = vector.load %arg9[%c0_62, %c0_63] : memref<32x32xbf16, #tpu.memory_space<vmem>>, vector<32x32xbf16>
    %cst_64 = arith.constant dense<0.000000e+00> : vector<32x32xf32>
    %203 = tpu.matmul %201, %202, %cst_64 {dimension_numbers = #tpu.dot_dimension_numbers<[1], [0], [0], [1], [0, 0, 1, 1], [], []>} : vector<32x32xbf16>, vector<32x32xbf16>, vector<32x32xf32> -> vector<32x32xf32>
    %c0_65 = arith.constant 0 : index
    %c0_66 = arith.constant 0 : index
    %204 = vector.load %arg10[%c0_65, %c0_66] : memref<1x32xf32, #tpu.memory_space<vmem>>, vector<1x32xf32>
    %205 = vector.broadcast %204 : vector<1x32xf32> to vector<32x32xf32>
    %206 = arith.addf %203, %205 : vector<32x32xf32>
    %cst_67 = arith.constant 0.707106769 : f32
    %207 = vector.broadcast %cst_67 : f32 to vector<32x32xf32>
    %208 = arith.mulf %206, %207 : vector<32x32xf32>
    %cst_68 = arith.constant 0.000000e+00 : f32
    %209 = vector.broadcast %cst_68 : f32 to vector<32x32xf32>
    %210 = arith.cmpf oge, %208, %209 : vector<32x32xf32>
    %cst_69 = arith.constant 1.000000e+00 : f32
    %cst_70 = arith.constant -1.000000e+00 : f32
    %211 = vector.broadcast %cst_69 : f32 to vector<32x32xf32>
    %212 = vector.broadcast %cst_70 : f32 to vector<32x32xf32>
    %213 = arith.select %210, %211, %212 : vector<32x32xi1>, vector<32x32xf32>
    %214 = math.absf %208 : vector<32x32xf32>
    %cst_71 = arith.constant 0.327591091 : f32
    %215 = vector.broadcast %cst_71 : f32 to vector<32x32xf32>
    %216 = arith.mulf %215, %214 : vector<32x32xf32>
    %cst_72 = arith.constant 1.000000e+00 : f32
    %217 = vector.broadcast %cst_72 : f32 to vector<32x32xf32>
    %218 = arith.addf %217, %216 : vector<32x32xf32>
    %cst_73 = arith.constant 1.000000e+00 : f32
    %219 = vector.broadcast %cst_73 : f32 to vector<32x32xf32>
    %220 = arith.divf %219, %218 : vector<32x32xf32>
    %cst_74 = arith.constant 1.06140542 : f32
    %221 = vector.broadcast %cst_74 : f32 to vector<32x32xf32>
    %222 = arith.mulf %221, %220 : vector<32x32xf32>
    %cst_75 = arith.constant -1.45315206 : f32
    %223 = vector.broadcast %cst_75 : f32 to vector<32x32xf32>
    %224 = arith.addf %222, %223 : vector<32x32xf32>
    %225 = arith.mulf %224, %220 : vector<32x32xf32>
    %cst_76 = arith.constant 1.42141378 : f32
    %226 = vector.broadcast %cst_76 : f32 to vector<32x32xf32>
    %227 = arith.addf %225, %226 : vector<32x32xf32>
    %228 = arith.mulf %227, %220 : vector<32x32xf32>
    %cst_77 = arith.constant -0.284496725 : f32
    %229 = vector.broadcast %cst_77 : f32 to vector<32x32xf32>
    %230 = arith.addf %228, %229 : vector<32x32xf32>
    %231 = arith.mulf %230, %220 : vector<32x32xf32>
    %cst_78 = arith.constant 0.254829586 : f32
    %232 = vector.broadcast %cst_78 : f32 to vector<32x32xf32>
    %233 = arith.addf %231, %232 : vector<32x32xf32>
    %234 = arith.mulf %233, %220 : vector<32x32xf32>
    %cst_79 = arith.constant 0.000000e+00 : f32
    %235 = vector.broadcast %cst_79 : f32 to vector<32x32xf32>
    %236 = arith.subf %235, %214 : vector<32x32xf32>
    %237 = arith.mulf %236, %214 : vector<32x32xf32>
    %238 = math.exp %237 : vector<32x32xf32>
    %239 = arith.mulf %234, %238 : vector<32x32xf32>
    %cst_80 = arith.constant 1.000000e+00 : f32
    %240 = vector.broadcast %cst_80 : f32 to vector<32x32xf32>
    %241 = arith.subf %240, %239 : vector<32x32xf32>
    %242 = arith.mulf %213, %241 : vector<32x32xf32>
    %cst_81 = arith.constant 5.000000e-01 : f32
    %243 = vector.broadcast %cst_81 : f32 to vector<32x32xf32>
    %244 = arith.mulf %243, %206 : vector<32x32xf32>
    %cst_82 = arith.constant 1.000000e+00 : f32
    %245 = vector.broadcast %cst_82 : f32 to vector<32x32xf32>
    %246 = arith.addf %245, %242 : vector<32x32xf32>
    %247 = arith.mulf %244, %246 : vector<32x32xf32>
    %248 = arith.truncf %247 : vector<32x32xf32> to vector<32x32xbf16>
    %c0_83 = arith.constant 0 : index
    %c0_84 = arith.constant 0 : index
    %249 = vector.load %arg11[%c0_83, %c0_84] : memref<32x32xbf16, #tpu.memory_space<vmem>>, vector<32x32xbf16>
    %cst_85 = arith.constant dense<0.000000e+00> : vector<32x32xf32>
    %250 = tpu.matmul %248, %249, %cst_85 {dimension_numbers = #tpu.dot_dimension_numbers<[1], [0], [0], [1], [0, 0, 1, 1], [], []>} : vector<32x32xbf16>, vector<32x32xbf16>, vector<32x32xf32> -> vector<32x32xf32>
    %c0_86 = arith.constant 0 : index
    %c0_87 = arith.constant 0 : index
    %251 = vector.load %arg12[%c0_86, %c0_87] : memref<1x32xf32, #tpu.memory_space<vmem>>, vector<1x32xf32>
    %252 = vector.broadcast %251 : vector<1x32xf32> to vector<32x32xf32>
    %253 = arith.addf %250, %252 : vector<32x32xf32>
    %254 = arith.addf %200, %253 : vector<32x32xf32>
    %c0_88 = arith.constant 0 : index
    %c0_89 = arith.constant 0 : index
    %255 = vector.load %arg13[%c0_88, %c0_89] : memref<1x32xf32, #tpu.memory_space<vmem>>, vector<1x32xf32>
    %c0_90 = arith.constant 0 : index
    %c0_91 = arith.constant 0 : index
    %256 = vector.load %arg14[%c0_90, %c0_91] : memref<1x32xf32, #tpu.memory_space<vmem>>, vector<1x32xf32>
    %cst_92 = arith.constant dense<0.000000e+00> : vector<32xf32>
    %257 = vector.multi_reduction <add>, %254, %cst_92 [1] : vector<32x32xf32> to vector<32xf32>
    %258 = vector.shape_cast %257 : vector<32xf32> to vector<32x1xf32>
    %cst_93 = arith.constant 3.200000e+01 : f32
    %259 = vector.broadcast %cst_93 : f32 to vector<32x1xf32>
    %260 = arith.divf %258, %259 : vector<32x1xf32>
    %261 = vector.broadcast %260 : vector<32x1xf32> to vector<32x32xf32>
    %262 = arith.subf %254, %261 : vector<32x32xf32>
    %263 = arith.mulf %262, %262 : vector<32x32xf32>
    %cst_94 = arith.constant dense<0.000000e+00> : vector<32xf32>
    %264 = vector.multi_reduction <add>, %263, %cst_94 [1] : vector<32x32xf32> to vector<32xf32>
    %265 = vector.shape_cast %264 : vector<32xf32> to vector<32x1xf32>
    %cst_95 = arith.constant 3.200000e+01 : f32
    %266 = vector.broadcast %cst_95 : f32 to vector<32x1xf32>
    %267 = arith.divf %265, %266 : vector<32x1xf32>
    %268 = vector.broadcast %260 : vector<32x1xf32> to vector<32x32xf32>
    %269 = arith.subf %254, %268 : vector<32x32xf32>
    %cst_96 = arith.constant 9.99999974E-6 : f32
    %270 = vector.broadcast %cst_96 : f32 to vector<32x1xf32>
    %271 = arith.addf %267, %270 : vector<32x1xf32>
    %272 = math.rsqrt %271 : vector<32x1xf32>
    %273 = vector.broadcast %272 : vector<32x1xf32> to vector<32x32xf32>
    %274 = arith.mulf %269, %273 : vector<32x32xf32>
    %275 = vector.broadcast %255 : vector<1x32xf32> to vector<32x32xf32>
    %276 = arith.mulf %274, %275 : vector<32x32xf32>
    %277 = vector.broadcast %256 : vector<1x32xf32> to vector<32x32xf32>
    %278 = arith.addf %276, %277 : vector<32x32xf32>
    %279 = arith.truncf %278 : vector<32x32xf32> to vector<32x32xbf16>
    %c0_97 = arith.constant 0 : index
    %c0_98 = arith.constant 0 : index
    %c0_99 = arith.constant 0 : index
    %280 = vector.load %arg15[%c0_97, %c0_98, %c0_99] : memref<1x32x32xbf16, #tpu.memory_space<vmem>>, vector<1x32x32xbf16>
    %281 = vector.shape_cast %280 : vector<1x32x32xbf16> to vector<32x32xbf16>
    %282 = vector.shape_cast %279 : vector<32x32xbf16> to vector<1x32x32xbf16>
    tpu.vector_store %arg15[%c0_97, %c0_98, %c0_99], %282 {strides = array<i32>} : memref<1x32x32xbf16, #tpu.memory_space<vmem>>, vector<1x32x32xbf16>,
    return
  }
  func.func @transform_0(%arg0: i32, %arg1: i32) -> (i32, i32, i32) {
    %c0_i32 = arith.constant 0 : i32
    %c0_i32_0 = arith.constant 0 : i32
    return %arg0, %arg1, %c0_i32 : i32, i32, i32
  }
  func.func @transform_1(%arg0: i32, %arg1: i32) -> (i32, i32, i32) {
    %c0_i32 = arith.constant 0 : i32
    %c0_i32_0 = arith.constant 0 : i32
    return %arg0, %arg1, %c0_i32 : i32, i32, i32
  }
  func.func @transform_2(%arg0: i32, %arg1: i32) -> (i32, i32, i32) {
    %c0_i32 = arith.constant 0 : i32
    %c0_i32_0 = arith.constant 0 : i32
    %c0_i32_1 = arith.constant 0 : i32
    return %arg0, %c0_i32, %c0_i32_0 : i32, i32, i32
  }
  func.func @transform_3(%arg0: i32, %arg1: i32) -> (i32, i32, i32) {
    %c0_i32 = arith.constant 0 : i32
    %c0_i32_0 = arith.constant 0 : i32
    %c0_i32_1 = arith.constant 0 : i32
    return %arg0, %c0_i32, %c0_i32_0 : i32, i32, i32
  }
  func.func @transform_4(%arg0: i32, %arg1: i32) -> (i32, i32) {
    %c0_i32 = arith.constant 0 : i32
    %c0_i32_0 = arith.constant 0 : i32
    %c0_i32_1 = arith.constant 0 : i32
    return %c0_i32, %c0_i32_0 : i32, i32
  }
  func.func @transform_5(%arg0: i32, %arg1: i32) -> (i32, i32) {
    %c0_i32 = arith.constant 0 : i32
    %c0_i32_0 = arith.constant 0 : i32
    %c0_i32_1 = arith.constant 0 : i32
    return %c0_i32, %c0_i32_0 : i32, i32
  }
  func.func @transform_6(%arg0: i32, %arg1: i32) -> (i32, i32) {
    %c0_i32 = arith.constant 0 : i32
    %c0_i32_0 = arith.constant 0 : i32
    %c0_i32_1 = arith.constant 0 : i32
    return %c0_i32, %c0_i32_0 : i32, i32
  }
  func.func @transform_7(%arg0: i32, %arg1: i32) -> (i32, i32) {
    %c0_i32 = arith.constant 0 : i32
    %c0_i32_0 = arith.constant 0 : i32
    %c0_i32_1 = arith.constant 0 : i32
    return %c0_i32, %c0_i32_0 : i32, i32
  }
  func.func @transform_8(%arg0: i32, %arg1: i32) -> (i32, i32) {
    %c0_i32 = arith.constant 0 : i32
    %c0_i32_0 = arith.constant 0 : i32
    %c0_i32_1 = arith.constant 0 : i32
    return %c0_i32, %c0_i32_0 : i32, i32
  }
  func.func @transform_9(%arg0: i32, %arg1: i32) -> (i32, i32) {
    %c0_i32 = arith.constant 0 : i32
    %c0_i32_0 = arith.constant 0 : i32
    %c0_i32_1 = arith.constant 0 : i32
    return %c0_i32, %c0_i32_0 : i32, i32
  }
  func.func @transform_10(%arg0: i32, %arg1: i32) -> (i32, i32) {
    %c0_i32 = arith.constant 0 : i32
    %c0_i32_0 = arith.constant 0 : i32
    %c0_i32_1 = arith.constant 0 : i32
    return %c0_i32, %c0_i32_0 : i32, i32
  }
  func.func @transform_11(%arg0: i32, %arg1: i32) -> (i32, i32) {
    %c0_i32 = arith.constant 0 : i32
    %c0_i32_0 = arith.constant 0 : i32
    %c0_i32_1 = arith.constant 0 : i32
    return %c0_i32, %c0_i32_0 : i32, i32
  }
  func.func @transform_12(%arg0: i32, %arg1: i32) -> (i32, i32) {
    %c0_i32 = arith.constant 0 : i32
    %c0_i32_0 = arith.constant 0 : i32
    %c0_i32_1 = arith.constant 0 : i32
    return %c0_i32, %c0_i32_0 : i32, i32
  }
  func.func @transform_13(%arg0: i32, %arg1: i32) -> (i32, i32, i32) {
    %c0_i32 = arith.constant 0 : i32
    %c0_i32_0 = arith.constant 0 : i32
    return %arg0, %arg1, %c0_i32 : i32, i32, i32
  }
}

module attributes {stable_mosaic.version = 11 : i64} {
  func.func @_qkv_kernel(%arg0: i32, %arg1: i32, %arg2: memref<1x32x32xbf16, #tpu.memory_space<vmem>>, %arg3: memref<32x96xbf16, #tpu.memory_space<vmem>>, %arg4: memref<1x32x32xbf16, #tpu.memory_space<vmem>>, %arg5: memref<1x32x32xbf16, #tpu.memory_space<vmem>>, %arg6: memref<1x32x32xbf16, #tpu.memory_space<vmem>>) attributes {dimension_semantics = [#tpu.dimension_semantics<parallel>, #tpu.dimension_semantics<parallel>], iteration_bounds = array<i64: 2, 3>, scalar_prefetch = 0 : i64, scratch_operands = 0 : i64, tpu.core_type = #tpu.core_type<tc>, window_params = [{transform_indices = @transform_0, window_bounds = array<i64: 1, 32, 32>}, {pipeline_mode = #tpu.pipeline_mode<synchronous>, transform_indices = @transform_1, window_bounds = array<i64: 32, 96>}, {transform_indices = @transform_2, window_bounds = array<i64: 1, 32, 32>}, {transform_indices = @transform_3, window_bounds = array<i64: 1, 32, 32>}, {transform_indices = @transform_4, window_bounds = array<i64: 1, 32, 32>}]} {
    %c0 = arith.constant 0 : index
    %c0_0 = arith.constant 0 : index
    %c0_1 = arith.constant 0 : index
    %0 = vector.load %arg2[%c0, %c0_0, %c0_1] : memref<1x32x32xbf16, #tpu.memory_space<vmem>>, vector<1x32x32xbf16>
    %1 = vector.shape_cast %0 : vector<1x32x32xbf16> to vector<32x32xbf16>
    %c0_2 = arith.constant 0 : index
    %c0_3 = arith.constant 0 : index
    %2 = vector.load %arg3[%c0_2, %c0_3] : memref<32x96xbf16, #tpu.memory_space<vmem>>, vector<32x96xbf16>
    %cst = arith.constant dense<0.000000e+00> : vector<32x96xf32>
    %3 = tpu.matmul %1, %2, %cst {dimension_numbers = #tpu.dot_dimension_numbers<[1], [0], [0], [1], [0, 0, 1, 1], [], []>} : vector<32x32xbf16>, vector<32x96xbf16>, vector<32x96xf32> -> vector<32x96xf32>
    %4 = vector.extract_strided_slice %3 {offsets = [0, 0], sizes = [32, 32], strides = [1, 1]} : vector<32x96xf32> to vector<32x32xf32>
    %5 = arith.truncf %4 : vector<32x32xf32> to vector<32x32xbf16>
    %c0_4 = arith.constant 0 : index
    %c0_5 = arith.constant 0 : index
    %c0_6 = arith.constant 0 : index
    %6 = vector.load %arg4[%c0_4, %c0_5, %c0_6] : memref<1x32x32xbf16, #tpu.memory_space<vmem>>, vector<1x32x32xbf16>
    %7 = vector.shape_cast %6 : vector<1x32x32xbf16> to vector<32x32xbf16>
    %8 = vector.shape_cast %5 : vector<32x32xbf16> to vector<1x32x32xbf16>
    tpu.vector_store %arg4[%c0_4, %c0_5, %c0_6], %8 {strides = array<i32>} : memref<1x32x32xbf16, #tpu.memory_space<vmem>>, vector<1x32x32xbf16>,
    %9 = vector.extract_strided_slice %3 {offsets = [0, 32], sizes = [32, 32], strides = [1, 1]} : vector<32x96xf32> to vector<32x32xf32>
    %10 = arith.truncf %9 : vector<32x32xf32> to vector<32x32xbf16>
    %c0_7 = arith.constant 0 : index
    %c0_8 = arith.constant 0 : index
    %c0_9 = arith.constant 0 : index
    %11 = vector.load %arg5[%c0_7, %c0_8, %c0_9] : memref<1x32x32xbf16, #tpu.memory_space<vmem>>, vector<1x32x32xbf16>
    %12 = vector.shape_cast %11 : vector<1x32x32xbf16> to vector<32x32xbf16>
    %13 = vector.shape_cast %10 : vector<32x32xbf16> to vector<1x32x32xbf16>
    tpu.vector_store %arg5[%c0_7, %c0_8, %c0_9], %13 {strides = array<i32>} : memref<1x32x32xbf16, #tpu.memory_space<vmem>>, vector<1x32x32xbf16>,
    %14 = vector.extract_strided_slice %3 {offsets = [0, 64], sizes = [32, 32], strides = [1, 1]} : vector<32x96xf32> to vector<32x32xf32>
    %15 = arith.truncf %14 : vector<32x32xf32> to vector<32x32xbf16>
    %c0_10 = arith.constant 0 : index
    %c0_11 = arith.constant 0 : index
    %c0_12 = arith.constant 0 : index
    %16 = vector.load %arg6[%c0_10, %c0_11, %c0_12] : memref<1x32x32xbf16, #tpu.memory_space<vmem>>, vector<1x32x32xbf16>
    %17 = vector.shape_cast %16 : vector<1x32x32xbf16> to vector<32x32xbf16>
    %18 = vector.shape_cast %15 : vector<32x32xbf16> to vector<1x32x32xbf16>
    tpu.vector_store %arg6[%c0_10, %c0_11, %c0_12], %18 {strides = array<i32>} : memref<1x32x32xbf16, #tpu.memory_space<vmem>>, vector<1x32x32xbf16>,
    return
  }
  func.func @transform_0(%arg0: i32, %arg1: i32) -> (i32, i32, i32) {
    %c0_i32 = arith.constant 0 : i32
    %c0_i32_0 = arith.constant 0 : i32
    return %arg0, %arg1, %c0_i32 : i32, i32, i32
  }
  func.func @transform_1(%arg0: i32, %arg1: i32) -> (i32, i32) {
    %c0_i32 = arith.constant 0 : i32
    %c0_i32_0 = arith.constant 0 : i32
    %c0_i32_1 = arith.constant 0 : i32
    return %c0_i32, %c0_i32_0 : i32, i32
  }
  func.func @transform_2(%arg0: i32, %arg1: i32) -> (i32, i32, i32) {
    %c0_i32 = arith.constant 0 : i32
    %c0_i32_0 = arith.constant 0 : i32
    return %arg0, %arg1, %c0_i32 : i32, i32, i32
  }
  func.func @transform_3(%arg0: i32, %arg1: i32) -> (i32, i32, i32) {
    %c0_i32 = arith.constant 0 : i32
    %c0_i32_0 = arith.constant 0 : i32
    return %arg0, %arg1, %c0_i32 : i32, i32, i32
  }
  func.func @transform_4(%arg0: i32, %arg1: i32) -> (i32, i32, i32) {
    %c0_i32 = arith.constant 0 : i32
    %c0_i32_0 = arith.constant 0 : i32
    return %arg0, %arg1, %c0_i32 : i32, i32, i32
  }
}

</mosaic_0001>

<llo_original>
// kernel: tpu_custom_call.1
$region0: #{tpu_custom_call.1}
  #allocation0 [shape = 'u32[]', space=smem, size = 0x4, offset = 0x4, fixed_abs, tag = 'smem constant byte address 0x4 - core index']
  #allocation1 [shape = 'u32[144,128]{1,0:T(1,128)}', space=vmem, size = 0x12000, scoped, tag = 'internal scratch']
  %s0 = inlined_call_operand.hbm [shape: f32[8,128], index: 0, kind: input, shape index: {}]
  %s1 = inlined_call_operand.hbm [shape: f32[8,128], index: 1, kind: output, shape index: {}]
  %s2 = sld [smem:[#allocation0]]
  $region18: #{tpu_custom_call.1} parent=0
    _
  %s4 = ssub.s32 1, %s2
  %s5 = scalar_select 0, %s4, %s2
  $region1: #{tpu_custom_call.1} parent=0
    #allocation2 [shape = 'u8[4096]{0}', space=vmem, size = 0x1000, scoped, tag = 'input window, operand 0, single buffered']
    #allocation3 [shape = 's32[1]{0}', space=sflag, size = 0x4, scoped, tag = 'scoped memory for tpu_custom_call.1']
    #allocation4 [shape = 's32[1]{0}', space=sflag, size = 0x4, scoped, tag = 'scoped memory for tpu_custom_call.1']
    #allocation5 [shape = 'u8[4096]{0}', space=vmem, size = 0x1000, scoped, tag = 'output window, operand 0, single buffered']
    %6 = vsyncpa [#allocation3], 0
    %7 = vsyncpa [#allocation4], 0
    // Predicated region
    $region2: #{tpu_custom_call.1} parent=1 // pred_check
      _
    $region3: #{tpu_custom_call.1} parent=1 // pred_check_branch
      %9 = sbr.rel (0) target = $region5
    $region4: #{tpu_custom_call.1} parent=1 // pred_region
      %s11 = ssub.s32 128, 128
      %12 = vsyncadd [#allocation3], %s11
      %s14 = sshll.u32 [#allocation2], 4
      %s15 = int_to_ptr.vmem [resolvable:$true] %s14
      %17 = dma.hbm_to_vmem [thread:$0]  %s0, 128, %s15, [#allocation3]
    $region5: #{tpu_custom_call.1} parent=1 // pred_fallthru
      _
    // Predicated region
    $region6: #{tpu_custom_call.1} parent=1 // pred_check
      _
    $region7: #{tpu_custom_call.1} parent=1 // pred_check_branch
      %19 = sbr.rel (0) target = $region9
    $region8: #{tpu_custom_call.1} parent=1 // pred_region
      %20 = dma.done [#allocation3], 128
    $region9: #{tpu_custom_call.1} parent=1 // pred_fallthru
      _
    %v21 = vld [vmem:[#allocation2] sm:$0xff]
    %v22 = verf.f32.pop %v21
    %23 = vst [vmem:[#allocation5] sm:$0xff] %v22
    // Predicated region
    $region10: #{tpu_custom_call.1} parent=1 // pred_check
      _
    $region11: #{tpu_custom_call.1} parent=1 // pred_check_branch
      %25 = sbr.rel (0) target = $region13
    $region12: #{tpu_custom_call.1} parent=1 // pred_region
      %s27 = ssub.s32 128, 128
      %28 = vsyncadd [#allocation4], %s27
      %s30 = sshll.u32 [#allocation5], 4
      %s31 = int_to_ptr.vmem [resolvable:$true] %s30
      %33 = dma.vmem_to_hbm [thread:$0]  %s31, 128, %s1, [#allocation4]
    $region13: #{tpu_custom_call.1} parent=1 // pred_fallthru
      _
    // Predicated region
    $region14: #{tpu_custom_call.1} parent=1 // pred_check
      _
    $region15: #{tpu_custom_call.1} parent=1 // pred_check_branch
      %35 = sbr.rel (0) target = $region17
    $region16: #{tpu_custom_call.1} parent=1 // pred_region
      %36 = dma.done [#allocation4], 128
    $region17: #{tpu_custom_call.1} parent=1 // pred_fallthru
      _
    %37 = vsyncpa [#allocation3], 1
    %38 = vsyncpa [#allocation4], 1

// kernel: get_trans_forward.5
$region0: #{get_trans_forward.5}
  #allocation0 [shape = 'u32[]', space=smem, size = 0x4, offset = 0x4, fixed_abs, tag = 'smem constant byte address 0x4 - core index']
  #allocation1 [shape = 'u32[144,128]{1,0:T(1,128)}', space=vmem, size = 0x12000, scoped, tag = 'internal scratch']
  %s0 = inlined_call_operand.vmem [shape: bf16[2,96,16], index: 0, kind: input, shape index: {}]
  %s1 = inlined_call_operand.vmem [shape: bf16[16,32], index: 1, kind: input, shape index: {}]
  %s2 = inlined_call_operand.vmem [shape: f32[96,32], index: 2, kind: input, shape index: {}]
  %s3 = inlined_call_operand.vmem [shape: bf16[2,96,32], index: 3, kind: output, shape index: {}]
  %s4 = sld [smem:[#allocation0]]
  $region45: #{get_trans_forward.5} parent=0
    _
  %s6 = ssub.s32 1, %s4
  %s7 = scalar_select 0, %s6, %s4
  loop: start=0, step=1, limit=8
  $region2: #{get_trans_forward.5} parent=0 // loop_pre_header
    _
  $region3: #{get_trans_forward.5} parent=0 // loop_header
    %s9 = sphi 0, %s13
    %p10 = scmp.ge.s32.totalorder %s9, 8
    %s16 = sphi 0, %s28
    %s17 = sphi 0, %s24
    %s18 = sphi 0, %s16
    %s19 = sphi 0, %s17
    %s20 = sphi 0, %s18
    %s21 = sphi 0, %s19
    %s33 = sphi 0, %s35
    %s36 = sphi 0, %s33
    %s37 = sphi 0, %s36
    %s53 = sphi 0, %s37
    %s57 = sphi 0, %s57
    %s59 = sphi 0, %s57
    %s60 = sphi 0, %s59
    %s74 = sphi 0, %s60
    %s80 = sphi 0, %s82
    %s83 = sphi 0, %s80
    %s84 = sphi 0, %s83
    %s100 = sphi 0, %s84
    %s108 = sphi 0, %s110
    %s111 = sphi 0, %s108
    %s112 = sphi 0, %s111
    %s128 = sphi 0, %s112
  $region4: #{get_trans_forward.5} parent=0 // loop_header_branch
    %12 = sbr.rel (%p10) target = $region8
  $region5: #{get_trans_forward.5} parent=0 // loop_body
    %s14 = ssub.s32 %s9, 1
    %s15 = ssub.s32 %s9, 2
    %s22 = sadd.s32 1, %s17
    %p23 = scmp.ge.s32.totalorder %s22, 3
    %s24 = scalar_select %p23, 0, %s22
    %s25 = sadd.s32 1, %s16
    %s26 = scalar_select %p23, %s25, %s16
    %p27 = scmp.ge.s32.totalorder %s26, 2
    %s28 = scalar_select %p27, 0, %s26
    %s29 = ssub.s32 %s16, %s28
    %s30 = ssub.s32 %s17, %s24
    %s31 = sor.u32 %s29, %s30
    %p32 = scmp.eq.s32.totalorder %s31, 0
    %s34 = sadd.s32 %s33, 1
    %s35 = scalar_select %p32, %s33, %s34
    %p38 = pneg %p32
    %p39 = scmp.eq.s32.totalorder %s9, 5
    %p40 = por %p38, %p39
    %p41 = scmp.ne.s32.totalorder %s33, %s36
    %p42 = scmp.eq.s32.totalorder %s9, 0
    %p43 = por %p41, %p42
    %p44 = scmp.ne.s32.totalorder %s33, %s36
    %p45 = scmp.eq.s32.totalorder %s14, 5
    %p46 = por %p44, %p45
    %p47 = scmp.ne.s32.totalorder %s36, %s37
    %p48 = scmp.eq.s32.totalorder %s14, 0
    %p49 = por %p47, %p48
    %p50 = scmp.ne.s32.totalorder %s36, %s37
    %p51 = scmp.eq.s32.totalorder %s15, 5
    %p52 = por %p50, %p51
    %p54 = scmp.ne.s32.totalorder %s37, %s53
    %p55 = scmp.eq.s32.totalorder %s15, 0
    %p56 = por %p54, %p55
    %s58 = sadd.s32 %s57, 1
    %p61 = scmp.eq.s32.totalorder %s9, 5
    %p62 = scmp.ne.s32.totalorder %s57, %s59
    %p63 = scmp.eq.s32.totalorder %s9, 0
    %p64 = por %p62, %p63
    %p65 = scmp.ne.s32.totalorder %s57, %s59
    %p66 = scmp.eq.s32.totalorder %s14, 5
    %p67 = por %p65, %p66
    %p68 = scmp.ne.s32.totalorder %s59, %s60
    %p69 = scmp.eq.s32.totalorder %s14, 0
    %p70 = por %p68, %p69
    %p71 = scmp.ne.s32.totalorder %s59, %s60
    %p72 = scmp.eq.s32.totalorder %s15, 5
    %p73 = por %p71, %p72
    %p75 = scmp.ne.s32.totalorder %s60, %s74
    %p76 = scmp.eq.s32.totalorder %s15, 0
    %p77 = por %p75, %p76
    %s78 = ssub.s32 %s17, %s24
    %p79 = scmp.eq.s32.totalorder %s78, 0
    %s81 = sadd.s32 %s80, 1
    %s82 = scalar_select %p79, %s80, %s81
    %p85 = pneg %p79
    %p86 = scmp.eq.s32.totalorder %s9, 5
    %p87 = por %p85, %p86
    %p88 = scmp.ne.s32.totalorder %s80, %s83
    %p89 = scmp.eq.s32.totalorder %s9, 0
    %p90 = por %p88, %p89
    %p91 = scmp.ne.s32.totalorder %s80, %s83
    %p92 = scmp.eq.s32.totalorder %s14, 5
    %p93 = por %p91, %p92
    %p94 = scmp.ne.s32.totalorder %s83, %s84
    %p95 = scmp.eq.s32.totalorder %s14, 0
    %p96 = por %p94, %p95
    %p97 = scmp.ne.s32.totalorder %s83, %s84
    %p98 = scmp.eq.s32.totalorder %s15, 5
    %p99 = por %p97, %p98
    %p101 = scmp.ne.s32.totalorder %s84, %s100
    %p102 = scmp.eq.s32.totalorder %s15, 0
    %p103 = por %p101, %p102
    %s104 = ssub.s32 %s16, %s28
    %s105 = ssub.s32 %s17, %s24
    %s106 = sor.u32 %s104, %s105
    %p107 = scmp.eq.s32.totalorder %s106, 0
    %s109 = sadd.s32 %s108, 1
    %s110 = scalar_select %p107, %s108, %s109
    %p113 = pneg %p107
    %p114 = scmp.eq.s32.totalorder %s9, 5
    %p115 = por %p113, %p114
    %p116 = scmp.ne.s32.totalorder %s108, %s111
    %p117 = scmp.eq.s32.totalorder %s9, 0
    %p118 = por %p116, %p117
    %p119 = scmp.ne.s32.totalorder %s108, %s111
    %p120 = scmp.eq.s32.totalorder %s14, 5
    %p121 = por %p119, %p120
    %p122 = scmp.ne.s32.totalorder %s111, %s112
    %p123 = scmp.eq.s32.totalorder %s14, 0
    %p124 = por %p122, %p123
    %p125 = scmp.ne.s32.totalorder %s111, %s112
    %p126 = scmp.eq.s32.totalorder %s15, 5
    %p127 = por %p125, %p126
    %p129 = scmp.ne.s32.totalorder %s112, %s128
    %p130 = scmp.eq.s32.totalorder %s15, 0
    %p131 = por %p129, %p130
    %p132 = scmp.le.s32.totalorder 1, %s9
    %p133 = scmp.lt.s32.totalorder %s9, 7
    %p134 = pnand %p132, %p133
    %p135 = pneg %p134
    // Predicated region
    $region9: #{get_trans_forward.5} parent=5 // pred_check
      _
    $region10: #{get_trans_forward.5} parent=5 // pred_check_branch
      %137 = sbr.rel (%p134) target = $region12
    $region11: #{get_trans_forward.5} parent=5 // pred_region
      %s138 = ssub.s32 %s9, 1
      // Predicated region
      $region13: #{get_trans_forward.5} parent=11 // pred_check
        %p139 = pneg %p70
      $region14: #{get_trans_forward.5} parent=11 // pred_check_branch
        %141 = sbr.rel (%p139) target = $region16
      $region15: #{get_trans_forward.5} parent=11 // pred_region
        _
      $region16: #{get_trans_forward.5} parent=11 // pred_fallthru
        _
    $region12: #{get_trans_forward.5} parent=5 // pred_fallthru
      _
    %p142 = scmp.lt.s32.totalorder %s9, 6
    // Predicated region
    $region17: #{get_trans_forward.5} parent=5 // pred_check
      %p143 = pneg %p142
    $region18: #{get_trans_forward.5} parent=5 // pred_check_branch
      %145 = sbr.rel (%p143) target = $region20
    $region19: #{get_trans_forward.5} parent=5 // pred_region
      // Predicated region
      $region21: #{get_trans_forward.5} parent=19 // pred_check
        %p146 = pneg %p43
      $region22: #{get_trans_forward.5} parent=19 // pred_check_branch
        %148 = sbr.rel (%p146) target = $region24
      $region23: #{get_trans_forward.5} parent=19 // pred_region
        %s149 = smul.u32 4, %s17
        %p150 = scmp.lt.s32.totalorder %s16, 1
        %s151 = scalar_select %p150, %s16, 1
        %p152 = scmp.lt.s32.totalorder %s149, 11
        %s153 = scalar_select %p152, %s149, 11
        %s154 = smul.addr %s151, 12
        %s155 = sadd.s32 %s153, %s154
        %s156 = smul.addr %s155, 4
        %s157 = scalar_lea.vmem %s0, %s156
        %s158 = smul.u32 4, %s17
      $region24: #{get_trans_forward.5} parent=19 // pred_fallthru
        _
      // Predicated region
      $region25: #{get_trans_forward.5} parent=19 // pred_check
        %p159 = pneg %p90
      $region26: #{get_trans_forward.5} parent=19 // pred_check_branch
        %161 = sbr.rel (%p159) target = $region28
      $region27: #{get_trans_forward.5} parent=19 // pred_region
        %s162 = smul.u32 4, %s17
        %p163 = scmp.lt.s32.totalorder %s162, 11
        %s164 = scalar_select %p163, %s162, 11
        %s165 = smul.addr %s164, 8
        %s166 = scalar_lea.vmem %s2, %s165
        %s167 = smul.u32 4, %s17
      $region28: #{get_trans_forward.5} parent=19 // pred_fallthru
        _
    $region20: #{get_trans_forward.5} parent=5 // pred_fallthru
      _
    %p168 = scmp.le.s32.totalorder 1, %s9
    %p169 = scmp.lt.s32.totalorder %s9, 7
    %p170 = pnand %p168, %p169
    %p171 = pneg %p170
    // Predicated region
    $region29: #{get_trans_forward.5} parent=5 // pred_check
      _
    $region30: #{get_trans_forward.5} parent=5 // pred_check_branch
      %173 = sbr.rel (%p170) target = $region32
    $region31: #{get_trans_forward.5} parent=5 // pred_region
      %s174 = ssub.s32 %s9, 1
      %s175 = smul.u32 4, %s19
      %p176 = scmp.lt.s32.totalorder %s18, 1
      %s177 = scalar_select %p176, %s18, 1
      %p178 = scmp.lt.s32.totalorder %s175, 11
      %s179 = scalar_select %p178, %s175, 11
      %s180 = smul.addr %s177, 12
      %s181 = sadd.s32 %s179, %s180
      %s182 = smul.addr %s181, 4
      %s183 = scalar_lea.vmem %s0, %s182
      %p184 = pneg %p49
      %p185 = pneg %p46
      %p186 = pneg %p70
      %p187 = pneg %p67
      %s188 = smul.u32 4, %s19
      %p189 = scmp.lt.s32.totalorder %s188, 11
      %s190 = scalar_select %p189, %s188, 11
      %s191 = smul.addr %s190, 8
      %s192 = scalar_lea.vmem %s2, %s191
      %p193 = pneg %p96
      %p194 = pneg %p93
      %p195 = pneg %p124
      %p196 = pneg %p121
      %s197 = smul.u32 4, %s19
      %p198 = scmp.lt.s32.totalorder %s18, 1
      %s199 = scalar_select %p198, %s18, 1
      %p200 = scmp.lt.s32.totalorder %s197, 11
      %s201 = scalar_select %p200, %s197, 11
      %s202 = smul.addr %s199, 12
      %s203 = sadd.s32 %s201, %s202
      %s204 = smul.addr %s203, 4
      %s205 = scalar_lea.vmem %s3, %s204
      %s206 = smul.u32 4, %s19
      %p207 = scmp.lt.s32.totalorder %s18, 1
      %s208 = scalar_select %p207, %s18, 1
      %p209 = scmp.lt.s32.totalorder %s206, 11
      %s210 = scalar_select %p209, %s206, 11
      %s211 = smul.addr %s208, 12
      %s212 = sadd.s32 %s210, %s211
      %s213 = smul.addr %s212, 4
      %s214 = scalar_lea.vmem %s0, %s213
      %s215 = smul.u32 4, %s19
      %s216 = smul.u32 4, %s19
      %p217 = scmp.lt.s32.totalorder %s216, 11
      %s218 = scalar_select %p217, %s216, 11
      %s219 = smul.addr %s218, 8
      %s220 = scalar_lea.vmem %s2, %s219
      %s221 = smul.u32 4, %s19
      %s222 = smul.u32 4, %s19
      %p223 = scmp.lt.s32.totalorder %s18, 1
      %s224 = scalar_select %p223, %s18, 1
      %p225 = scmp.lt.s32.totalorder %s222, 11
      %s226 = scalar_select %p225, %s222, 11
      %s227 = smul.addr %s224, 12
      %s228 = sadd.s32 %s226, %s227
      %s229 = smul.addr %s228, 4
      %s230 = scalar_lea.vmem %s3, %s229
      %s231 = smul.u32 4, %s19
      %v233 = vld [vmem:[%s214] sm:$0xf]
      %v234 = vld [vmem:[%s214 + $0x4] sm:$0xf]
      %v235 = vld [vmem:[%s214 + $0x8] sm:$0xf]
      %v236 = vld [vmem:[%s214 + $0xc] sm:$0xf]
      %v237 = vld [vmem:[%s1] sm:$0xf]
      %v238 = vld [vmem:[%s1 + $0x4] sm:$0xf]
      %v239 = vld [vmem:[%s220] sm:$0xff]
      %v240 = vld [vmem:[%s220 + $0x8] sm:$0xff]
      %v241 = vld [vmem:[%s220 + $0x10] sm:$0xff]
      %v242 = vld [vmem:[%s220 + $0x18] sm:$0xff]
      %v247 = vunpack.c.l.b16 %v233
      %v248 = vunpack.c.l.b16 %v234
      %v249 = vunpack.c.l.b16 %v235
      %v250 = vunpack.c.l.b16 %v236
      %v251 = vpack.c.b16 %v248, %v247
      %v252 = vpack.c.b16 %v250, %v249
      %v255 = vunpack.c.l.b16 %v237
      %v256 = vunpack.c.l.b16 %v238
      %v257 = vpack.c.b16 %v256, %v255
      %vm259 = vcmask 130048
      %v261 = vsel %vm259, %v251, 0
      %v264 = vsel %vm259, %v252, 0
      %266 = vmatprep.subr.bf16.mxu0 0
      %267 = vmatpush1.bf16.msra.mxu0 0
      %268 = vmatprep.subr.bf16.mxu0 0
      %269 = vmatpush1.bf16.msra.mxu0 0
      %270 = vmatprep.subr.bf16.mxu0 0
      %271 = vmatpush1.bf16.msra.mxu0 0
      %272 = vmatprep.subr.bf16.mxu0 0
      %273 = vmatpush1.bf16.msra.mxu0 0
      %274 = vmatprep.subr.bf16.mxu0 0
      %275 = vmatpush1.bf16.msra.mxu0 0
      %276 = vmatprep.subr.bf16.mxu0 0
      %277 = vmatpush1.bf16.msra.mxu0 0
      %278 = vmatprep.subr.bf16.mxu0 0
      %279 = vmatpush1.bf16.msra.mxu0 0
      %280 = vmatprep.subr.bf16.mxu0 0
      %281 = vmatpush1.bf16.msra.mxu0 %v257
      %282 = vmatprep.subr.bf16.mxu0 0
      %283 = vmatpush2.bf16.msra.mxu0 0
      %284 = vmatprep.subr.bf16.mxu0 0
      %285 = vmatpush2.bf16.msra.mxu0 0
      %286 = vmatprep.subr.bf16.mxu0 0
      %287 = vmatpush2.bf16.msra.mxu0 0
      %288 = vmatprep.subr.bf16.mxu0 0
      %289 = vmatpush2.bf16.msra.mxu0 0
      %290 = vmatprep.subr.bf16.mxu0 0
      %291 = vmatpush2.bf16.msra.mxu0 0
      %292 = vmatprep.subr.bf16.mxu0 0
      %293 = vmatpush2.bf16.msra.mxu0 0
      %294 = vmatprep.subr.bf16.mxu0 0
      %295 = vmatpush2.bf16.msra.mxu0 0
      %296 = vmatprep.subr.bf16.mxu0 0
      %297 = vmatpush2.bf16.msra.mxu0 0
      %298 = vmatprep.mubr.bf16.mxu0 0
      %299 = vmatmul.mubr.bf16.gmra.mxu0 %v261
      %v300 = vpop.f32.mrf.mxu0
      %v301 = vadd.f32 %v239, %v300
      %v302 = vpop.f32.mrf.mxu0
      %v303 = vpop.f32.mrf.mxu0
      %v304 = vadd.f32 %v240, %v303
      %v305 = vpop.f32.mrf.mxu0
      %306 = vmatprep.mubr.bf16.mxu0 0
      %307 = vmatmul.mubr.bf16.gmra.mxu0 %v264
      %v308 = vpop.f32.mrf.mxu0
      %v309 = vadd.f32 %v241, %v308
      %v310 = vpop.f32.mrf.mxu0
      %v311 = vpop.f32.mrf.mxu0
      %v312 = vadd.f32 %v242, %v311
      %v313 = vpop.f32.mrf.mxu0
      %314 = vdwg.mxu0
      %v315 = vpack.c.bf16 %v304, %v301
      %v316 = vpack.c.bf16 %v312, %v309
      %v319 = vunpack.c.l.b16 %v315
      %v320 = vunpack.c.h.b16 %v315
      %v321 = vunpack.c.l.b16 %v316
      %v322 = vunpack.c.h.b16 %v316
      %v323 = vpack.c.b16 %v319, %v319
      %v324 = vpack.c.b16 %v320, %v320
      %v325 = vpack.c.b16 %v321, %v321
      %v326 = vpack.c.b16 %v322, %v322
      %vm331 = vcmask 257024
      %332 = vst.msk [vmem:[%s230] sm:$0xf] %vm331, %v323
      %333 = vst.msk [vmem:[%s230 + $0x4] sm:$0xf] %vm331, %v324
      %334 = vst.msk [vmem:[%s230 + $0x8] sm:$0xf] %vm331, %v325
      %335 = vst.msk [vmem:[%s230 + $0xc] sm:$0xf] %vm331, %v326
      %s336 = smul.u32 4, %s19
      %p337 = scmp.lt.s32.totalorder %s18, 1
      %s338 = scalar_select %p337, %s18, 1
      %p339 = scmp.lt.s32.totalorder %s336, 11
      %s340 = scalar_select %p339, %s336, 11
      %s341 = smul.addr %s338, 12
      %s342 = sadd.s32 %s340, %s341
      %s343 = smul.addr %s342, 4
      %s344 = scalar_lea.vmem %s3, %s343
      // Predicated region
      $region33: #{get_trans_forward.5} parent=31 // pred_check
        %p345 = pneg %p121
      $region34: #{get_trans_forward.5} parent=31 // pred_check_branch
        %347 = sbr.rel (%p345) target = $region36
      $region35: #{get_trans_forward.5} parent=31 // pred_region
        %s348 = smul.u32 4, %s19
      $region36: #{get_trans_forward.5} parent=31 // pred_fallthru
        _
    $region32: #{get_trans_forward.5} parent=5 // pred_fallthru
      _
    %p349 = scmp.le.s32.totalorder 2, %s9
    // Predicated region
    $region37: #{get_trans_forward.5} parent=5 // pred_check
      %p350 = pneg %p349
    $region38: #{get_trans_forward.5} parent=5 // pred_check_branch
      %352 = sbr.rel (%p350) target = $region40
    $region39: #{get_trans_forward.5} parent=5 // pred_region
      %s353 = ssub.s32 %s9, 2
      // Predicated region
      $region41: #{get_trans_forward.5} parent=39 // pred_check
        %p354 = pneg %p127
      $region42: #{get_trans_forward.5} parent=39 // pred_check_branch
        %356 = sbr.rel (%p354) target = $region44
      $region43: #{get_trans_forward.5} parent=39 // pred_region
        %s357 = smul.u32 4, %s21
        %p358 = scmp.lt.s32.totalorder %s20, 1
        %s359 = scalar_select %p358, %s20, 1
        %p360 = scmp.lt.s32.totalorder %s357, 11
        %s361 = scalar_select %p360, %s357, 11
        %s362 = smul.addr %s359, 12
        %s363 = sadd.s32 %s361, %s362
        %s364 = smul.addr %s363, 4
        %s365 = scalar_lea.vmem %s3, %s364
      $region44: #{get_trans_forward.5} parent=39 // pred_fallthru
        _
    $region40: #{get_trans_forward.5} parent=5 // pred_fallthru
      _
  $region6: #{get_trans_forward.5} parent=0 // loop_footer
    %s13 = sadd.s32 1, %s9
  $region7: #{get_trans_forward.5} parent=0 // loop_footer_branch
    %8 = sbr.rel target = $region3
  $region8: #{get_trans_forward.5} parent=0 // loop_exit
    _

// kernel: get_trans_forward.6
$region0: #{get_trans_forward.6}
  #allocation0 [shape = 'u32[]', space=smem, size = 0x4, offset = 0x4, fixed_abs, tag = 'smem constant byte address 0x4 - core index']
  #allocation1 [shape = 'u32[144,128]{1,0:T(1,128)}', space=vmem, size = 0x12000, scoped, tag = 'internal scratch']
  %s0 = inlined_call_operand.vmem [shape: bf16[2,96,32], index: 0, kind: input, shape index: {}]
  %s1 = inlined_call_operand.vmem [shape: bf16[32,96], index: 1, kind: input, shape index: {}]
  %s2 = inlined_call_operand.vmem [shape: bf16[2,96,32], index: 2, kind: output, shape index: {0}]
  %s3 = inlined_call_operand.vmem [shape: bf16[2,96,32], index: 3, kind: output, shape index: {1}]
  %s4 = inlined_call_operand.vmem [shape: bf16[2,96,32], index: 4, kind: output, shape index: {2}]
  %5 = xla_tuple %s2, %s3, %s4
  %s6 = sld [smem:[#allocation0]]
  $region57: #{get_trans_forward.6} parent=0
    _
  %s8 = ssub.s32 1, %s6
  %s9 = scalar_select 0, %s8, %s6
  loop: start=0, step=1, limit=8
  $region2: #{get_trans_forward.6} parent=0 // loop_pre_header
    _
  $region3: #{get_trans_forward.6} parent=0 // loop_header
    %s11 = sphi 0, %s15
    %p12 = scmp.ge.s32.totalorder %s11, 8
    %s18 = sphi 0, %s30
    %s19 = sphi 0, %s26
    %s20 = sphi 0, %s18
    %s21 = sphi 0, %s19
    %s22 = sphi 0, %s20
    %s23 = sphi 0, %s21
    %s35 = sphi 0, %s37
    %s38 = sphi 0, %s35
    %s39 = sphi 0, %s38
    %s55 = sphi 0, %s39
    %s59 = sphi 0, %s59
    %s61 = sphi 0, %s59
    %s62 = sphi 0, %s61
    %s76 = sphi 0, %s62
    %s84 = sphi 0, %s86
    %s87 = sphi 0, %s84
    %s88 = sphi 0, %s87
    %s104 = sphi 0, %s88
    %s112 = sphi 0, %s114
    %s115 = sphi 0, %s112
    %s116 = sphi 0, %s115
    %s132 = sphi 0, %s116
    %s140 = sphi 0, %s142
    %s143 = sphi 0, %s140
    %s144 = sphi 0, %s143
    %s160 = sphi 0, %s144
  $region4: #{get_trans_forward.6} parent=0 // loop_header_branch
    %14 = sbr.rel (%p12) target = $region8
  $region5: #{get_trans_forward.6} parent=0 // loop_body
    %s16 = ssub.s32 %s11, 1
    %s17 = ssub.s32 %s11, 2
    %s24 = sadd.s32 1, %s19
    %p25 = scmp.ge.s32.totalorder %s24, 3
    %s26 = scalar_select %p25, 0, %s24
    %s27 = sadd.s32 1, %s18
    %s28 = scalar_select %p25, %s27, %s18
    %p29 = scmp.ge.s32.totalorder %s28, 2
    %s30 = scalar_select %p29, 0, %s28
    %s31 = ssub.s32 %s18, %s30
    %s32 = ssub.s32 %s19, %s26
    %s33 = sor.u32 %s31, %s32
    %p34 = scmp.eq.s32.totalorder %s33, 0
    %s36 = sadd.s32 %s35, 1
    %s37 = scalar_select %p34, %s35, %s36
    %p40 = pneg %p34
    %p41 = scmp.eq.s32.totalorder %s11, 5
    %p42 = por %p40, %p41
    %p43 = scmp.ne.s32.totalorder %s35, %s38
    %p44 = scmp.eq.s32.totalorder %s11, 0
    %p45 = por %p43, %p44
    %p46 = scmp.ne.s32.totalorder %s35, %s38
    %p47 = scmp.eq.s32.totalorder %s16, 5
    %p48 = por %p46, %p47
    %p49 = scmp.ne.s32.totalorder %s38, %s39
    %p50 = scmp.eq.s32.totalorder %s16, 0
    %p51 = por %p49, %p50
    %p52 = scmp.ne.s32.totalorder %s38, %s39
    %p53 = scmp.eq.s32.totalorder %s17, 5
    %p54 = por %p52, %p53
    %p56 = scmp.ne.s32.totalorder %s39, %s55
    %p57 = scmp.eq.s32.totalorder %s17, 0
    %p58 = por %p56, %p57
    %s60 = sadd.s32 %s59, 1
    %p63 = scmp.eq.s32.totalorder %s11, 5
    %p64 = scmp.ne.s32.totalorder %s59, %s61
    %p65 = scmp.eq.s32.totalorder %s11, 0
    %p66 = por %p64, %p65
    %p67 = scmp.ne.s32.totalorder %s59, %s61
    %p68 = scmp.eq.s32.totalorder %s16, 5
    %p69 = por %p67, %p68
    %p70 = scmp.ne.s32.totalorder %s61, %s62
    %p71 = scmp.eq.s32.totalorder %s16, 0
    %p72 = por %p70, %p71
    %p73 = scmp.ne.s32.totalorder %s61, %s62
    %p74 = scmp.eq.s32.totalorder %s17, 5
    %p75 = por %p73, %p74
    %p77 = scmp.ne.s32.totalorder %s62, %s76
    %p78 = scmp.eq.s32.totalorder %s17, 0
    %p79 = por %p77, %p78
    %s80 = ssub.s32 %s18, %s30
    %s81 = ssub.s32 %s19, %s26
    %s82 = sor.u32 %s80, %s81
    %p83 = scmp.eq.s32.totalorder %s82, 0
    %s85 = sadd.s32 %s84, 1
    %s86 = scalar_select %p83, %s84, %s85
    %p89 = pneg %p83
    %p90 = scmp.eq.s32.totalorder %s11, 5
    %p91 = por %p89, %p90
    %p92 = scmp.ne.s32.totalorder %s84, %s87
    %p93 = scmp.eq.s32.totalorder %s11, 0
    %p94 = por %p92, %p93
    %p95 = scmp.ne.s32.totalorder %s84, %s87
    %p96 = scmp.eq.s32.totalorder %s16, 5
    %p97 = por %p95, %p96
    %p98 = scmp.ne.s32.totalorder %s87, %s88
    %p99 = scmp.eq.s32.totalorder %s16, 0
    %p100 = por %p98, %p99
    %p101 = scmp.ne.s32.totalorder %s87, %s88
    %p102 = scmp.eq.s32.totalorder %s17, 5
    %p103 = por %p101, %p102
    %p105 = scmp.ne.s32.totalorder %s88, %s104
    %p106 = scmp.eq.s32.totalorder %s17, 0
    %p107 = por %p105, %p106
    %s108 = ssub.s32 %s18, %s30
    %s109 = ssub.s32 %s19, %s26
    %s110 = sor.u32 %s108, %s109
    %p111 = scmp.eq.s32.totalorder %s110, 0
    %s113 = sadd.s32 %s112, 1
    %s114 = scalar_select %p111, %s112, %s113
    %p117 = pneg %p111
    %p118 = scmp.eq.s32.totalorder %s11, 5
    %p119 = por %p117, %p118
    %p120 = scmp.ne.s32.totalorder %s112, %s115
    %p121 = scmp.eq.s32.totalorder %s11, 0
    %p122 = por %p120, %p121
    %p123 = scmp.ne.s32.totalorder %s112, %s115
    %p124 = scmp.eq.s32.totalorder %s16, 5
    %p125 = por %p123, %p124
    %p126 = scmp.ne.s32.totalorder %s115, %s116
    %p127 = scmp.eq.s32.totalorder %s16, 0
    %p128 = por %p126, %p127
    %p129 = scmp.ne.s32.totalorder %s115, %s116
    %p130 = scmp.eq.s32.totalorder %s17, 5
    %p131 = por %p129, %p130
    %p133 = scmp.ne.s32.totalorder %s116, %s132
    %p134 = scmp.eq.s32.totalorder %s17, 0
    %p135 = por %p133, %p134
    %s136 = ssub.s32 %s18, %s30
    %s137 = ssub.s32 %s19, %s26
    %s138 = sor.u32 %s136, %s137
    %p139 = scmp.eq.s32.totalorder %s138, 0
    %s141 = sadd.s32 %s140, 1
    %s142 = scalar_select %p139, %s140, %s141
    %p145 = pneg %p139
    %p146 = scmp.eq.s32.totalorder %s11, 5
    %p147 = por %p145, %p146
    %p148 = scmp.ne.s32.totalorder %s140, %s143
    %p149 = scmp.eq.s32.totalorder %s11, 0
    %p150 = por %p148, %p149
    %p151 = scmp.ne.s32.totalorder %s140, %s143
    %p152 = scmp.eq.s32.totalorder %s16, 5
    %p153 = por %p151, %p152
    %p154 = scmp.ne.s32.totalorder %s143, %s144
    %p155 = scmp.eq.s32.totalorder %s16, 0
    %p156 = por %p154, %p155
    %p157 = scmp.ne.s32.totalorder %s143, %s144
    %p158 = scmp.eq.s32.totalorder %s17, 5
    %p159 = por %p157, %p158
    %p161 = scmp.ne.s32.totalorder %s144, %s160
    %p162 = scmp.eq.s32.totalorder %s17, 0
    %p163 = por %p161, %p162
    %p164 = scmp.le.s32.totalorder 1, %s11
    %p165 = scmp.lt.s32.totalorder %s11, 7
    %p166 = pnand %p164, %p165
    %p167 = pneg %p166
    // Predicated region
    $region9: #{get_trans_forward.6} parent=5 // pred_check
      _
    $region10: #{get_trans_forward.6} parent=5 // pred_check_branch
      %169 = sbr.rel (%p166) target = $region12
    $region11: #{get_trans_forward.6} parent=5 // pred_region
      %s170 = ssub.s32 %s11, 1
      // Predicated region
      $region13: #{get_trans_forward.6} parent=11 // pred_check
        %p171 = pneg %p72
      $region14: #{get_trans_forward.6} parent=11 // pred_check_branch
        %173 = sbr.rel (%p171) target = $region16
      $region15: #{get_trans_forward.6} parent=11 // pred_region
        _
      $region16: #{get_trans_forward.6} parent=11 // pred_fallthru
        _
    $region12: #{get_trans_forward.6} parent=5 // pred_fallthru
      _
    %p174 = scmp.lt.s32.totalorder %s11, 6
    // Predicated region
    $region17: #{get_trans_forward.6} parent=5 // pred_check
      %p175 = pneg %p174
    $region18: #{get_trans_forward.6} parent=5 // pred_check_branch
      %177 = sbr.rel (%p175) target = $region20
    $region19: #{get_trans_forward.6} parent=5 // pred_region
      // Predicated region
      $region21: #{get_trans_forward.6} parent=19 // pred_check
        %p178 = pneg %p45
      $region22: #{get_trans_forward.6} parent=19 // pred_check_branch
        %180 = sbr.rel (%p178) target = $region24
      $region23: #{get_trans_forward.6} parent=19 // pred_region
        %s181 = smul.u32 4, %s19
        %p182 = scmp.lt.s32.totalorder %s18, 1
        %s183 = scalar_select %p182, %s18, 1
        %p184 = scmp.lt.s32.totalorder %s181, 11
        %s185 = scalar_select %p184, %s181, 11
        %s186 = smul.addr %s183, 12
        %s187 = sadd.s32 %s185, %s186
        %s188 = smul.addr %s187, 4
        %s189 = scalar_lea.vmem %s0, %s188
        %s190 = smul.u32 4, %s19
      $region24: #{get_trans_forward.6} parent=19 // pred_fallthru
        _
    $region20: #{get_trans_forward.6} parent=5 // pred_fallthru
      _
    %p191 = scmp.le.s32.totalorder 1, %s11
    %p192 = scmp.lt.s32.totalorder %s11, 7
    %p193 = pnand %p191, %p192
    %p194 = pneg %p193
    // Predicated region
    $region25: #{get_trans_forward.6} parent=5 // pred_check
      _
    $region26: #{get_trans_forward.6} parent=5 // pred_check_branch
      %196 = sbr.rel (%p193) target = $region28
    $region27: #{get_trans_forward.6} parent=5 // pred_region
      %s197 = ssub.s32 %s11, 1
      %s198 = smul.u32 4, %s21
      %p199 = scmp.lt.s32.totalorder %s20, 1
      %s200 = scalar_select %p199, %s20, 1
      %p201 = scmp.lt.s32.totalorder %s198, 11
      %s202 = scalar_select %p201, %s198, 11
      %s203 = smul.addr %s200, 12
      %s204 = sadd.s32 %s202, %s203
      %s205 = smul.addr %s204, 4
      %s206 = scalar_lea.vmem %s0, %s205
      %p207 = pneg %p51
      %p208 = pneg %p48
      %p209 = pneg %p72
      %p210 = pneg %p69
      %p211 = pneg %p100
      %p212 = pneg %p97
      %s213 = smul.u32 4, %s21
      %p214 = scmp.lt.s32.totalorder %s20, 1
      %s215 = scalar_select %p214, %s20, 1
      %p216 = scmp.lt.s32.totalorder %s213, 11
      %s217 = scalar_select %p216, %s213, 11
      %s218 = smul.addr %s215, 12
      %s219 = sadd.s32 %s217, %s218
      %s220 = smul.addr %s219, 4
      %s221 = scalar_lea.vmem %s2, %s220
      %p222 = pneg %p128
      %p223 = pneg %p125
      %s224 = smul.u32 4, %s21
      %p225 = scmp.lt.s32.totalorder %s20, 1
      %s226 = scalar_select %p225, %s20, 1
      %p227 = scmp.lt.s32.totalorder %s224, 11
      %s228 = scalar_select %p227, %s224, 11
      %s229 = smul.addr %s226, 12
      %s230 = sadd.s32 %s228, %s229
      %s231 = smul.addr %s230, 4
      %s232 = scalar_lea.vmem %s3, %s231
      %p233 = pneg %p156
      %p234 = pneg %p153
      %s235 = smul.u32 4, %s21
      %p236 = scmp.lt.s32.totalorder %s20, 1
      %s237 = scalar_select %p236, %s20, 1
      %p238 = scmp.lt.s32.totalorder %s235, 11
      %s239 = scalar_select %p238, %s235, 11
      %s240 = smul.addr %s237, 12
      %s241 = sadd.s32 %s239, %s240
      %s242 = smul.addr %s241, 4
      %s243 = scalar_lea.vmem %s4, %s242
      %s244 = smul.u32 4, %s21
      %p245 = scmp.lt.s32.totalorder %s20, 1
      %s246 = scalar_select %p245, %s20, 1
      %p247 = scmp.lt.s32.totalorder %s244, 11
      %s248 = scalar_select %p247, %s244, 11
      %s249 = smul.addr %s246, 12
      %s250 = sadd.s32 %s248, %s249
      %s251 = smul.addr %s250, 4
      %s252 = scalar_lea.vmem %s0, %s251
      %s253 = smul.u32 4, %s21
      %s254 = smul.u32 4, %s21
      %p255 = scmp.lt.s32.totalorder %s20, 1
      %s256 = scalar_select %p255, %s20, 1
      %p257 = scmp.lt.s32.totalorder %s254, 11
      %s258 = scalar_select %p257, %s254, 11
      %s259 = smul.addr %s256, 12
      %s260 = sadd.s32 %s258, %s259
      %s261 = smul.addr %s260, 4
      %s262 = scalar_lea.vmem %s2, %s261
      %s263 = smul.u32 4, %s21
      %s264 = smul.u32 4, %s21
      %p265 = scmp.lt.s32.totalorder %s20, 1
      %s266 = scalar_select %p265, %s20, 1
      %p267 = scmp.lt.s32.totalorder %s264, 11
      %s268 = scalar_select %p267, %s264, 11
      %s269 = smul.addr %s266, 12
      %s270 = sadd.s32 %s268, %s269
      %s271 = smul.addr %s270, 4
      %s272 = scalar_lea.vmem %s3, %s271
      %s273 = smul.u32 4, %s21
      %s274 = smul.u32 4, %s21
      %p275 = scmp.lt.s32.totalorder %s20, 1
      %s276 = scalar_select %p275, %s20, 1
      %p277 = scmp.lt.s32.totalorder %s274, 11
      %s278 = scalar_select %p277, %s274, 11
      %s279 = smul.addr %s276, 12
      %s280 = sadd.s32 %s278, %s279
      %s281 = smul.addr %s280, 4
      %s282 = scalar_lea.vmem %s4, %s281
      %s283 = smul.u32 4, %s21
      %v285 = vld [vmem:[%s252] sm:$0xf]
      %v286 = vld [vmem:[%s252 + $0x4] sm:$0xf]
      %v287 = vld [vmem:[%s252 + $0x8] sm:$0xf]
      %v288 = vld [vmem:[%s252 + $0xc] sm:$0xf]
      %v289 = vld [vmem:[%s1] sm:$0xf]
      %v290 = vld [vmem:[%s1 + $0x4] sm:$0xf]
      %v291 = vld [vmem:[%s1 + $0x8] sm:$0xf]
      %v292 = vld [vmem:[%s1 + $0xc] sm:$0xf]
      %v297 = vunpack.c.l.b16 %v285
      %v298 = vunpack.c.l.b16 %v286
      %v299 = vunpack.c.l.b16 %v287
      %v300 = vunpack.c.l.b16 %v288
      %v301 = vpack.c.b16 %v298, %v297
      %v302 = vpack.c.b16 %v300, %v299
      %v307 = vunpack.c.l.b16 %v289
      %v308 = vunpack.c.l.b16 %v290
      %v309 = vunpack.c.l.b16 %v291
      %v310 = vunpack.c.l.b16 %v292
      %v311 = vpack.c.b16 %v308, %v307
      %v312 = vpack.c.b16 %v310, %v309
      %vm315 = vcmask 261120
      %v317 = vsel %vm315, %v301, 0
      %v320 = vsel %vm315, %v302, 0
      %322 = vmatprep.subr.bf16.mxu0 0
      %323 = vmatpush1.bf16.msra.mxu0 0
      %324 = vmatprep.subr.bf16.mxu0 0
      %325 = vmatpush1.bf16.msra.mxu0 0
      %326 = vmatprep.subr.bf16.mxu0 0
      %327 = vmatpush1.bf16.msra.mxu0 0
      %328 = vmatprep.subr.bf16.mxu0 0
      %329 = vmatpush1.bf16.msra.mxu0 0
      %330 = vmatprep.subr.bf16.mxu0 0
      %331 = vmatpush1.bf16.msra.mxu0 0
      %332 = vmatprep.subr.bf16.mxu0 0
      %333 = vmatpush1.bf16.msra.mxu0 0
      %334 = vmatprep.subr.bf16.mxu0 0
      %335 = vmatpush1.bf16.msra.mxu0 %v312
      %336 = vmatprep.subr.bf16.mxu0 0
      %337 = vmatpush1.bf16.msra.mxu0 %v311
      %338 = vmatprep.subr.bf16.mxu0 0
      %339 = vmatpush2.bf16.msra.mxu0 0
      %340 = vmatprep.subr.bf16.mxu0 0
      %341 = vmatpush2.bf16.msra.mxu0 0
      %342 = vmatprep.subr.bf16.mxu0 0
      %343 = vmatpush2.bf16.msra.mxu0 0
      %344 = vmatprep.subr.bf16.mxu0 0
      %345 = vmatpush2.bf16.msra.mxu0 0
      %346 = vmatprep.subr.bf16.mxu0 0
      %347 = vmatpush2.bf16.msra.mxu0 0
      %348 = vmatprep.subr.bf16.mxu0 0
      %349 = vmatpush2.bf16.msra.mxu0 0
      %350 = vmatprep.subr.bf16.mxu0 0
      %351 = vmatpush2.bf16.msra.mxu0 0
      %352 = vmatprep.subr.bf16.mxu0 0
      %353 = vmatpush2.bf16.msra.mxu0 0
      %354 = vmatprep.mubr.bf16.mxu0 0
      %355 = vmatmul.mubr.bf16.gmra.mxu0 %v317
      %v356 = vpop.f32.mrf.mxu0
      %v357 = vadd.f32 0.0, %v356
      %v358 = vpop.f32.mrf.mxu0
      %v359 = vpop.f32.mrf.mxu0
      %v360 = vadd.f32 0.0, %v359
      %v361 = vpop.f32.mrf.mxu0
      %362 = vmatprep.mubr.bf16.mxu0 0
      %363 = vmatmul.mubr.bf16.gmra.mxu0 %v320
      %v364 = vpop.f32.mrf.mxu0
      %v365 = vadd.f32 0.0, %v364
      %v366 = vpop.f32.mrf.mxu0
      %v367 = vpop.f32.mrf.mxu0
      %v368 = vadd.f32 0.0, %v367
      %v369 = vpop.f32.mrf.mxu0
      %370 = vdwg.mxu0
      %v371 = vpack.c.bf16 %v360, %v357
      %v372 = vpack.c.bf16 %v368, %v365
      %v375 = vunpack.c.l.b16 %v371
      %v376 = vunpack.c.h.b16 %v371
      %v377 = vunpack.c.l.b16 %v372
      %v378 = vunpack.c.h.b16 %v372
      %v379 = vpack.c.b16 %v375, %v375
      %v380 = vpack.c.b16 %v376, %v376
      %v381 = vpack.c.b16 %v377, %v377
      %v382 = vpack.c.b16 %v378, %v378
      %vm387 = vcmask 257024
      %388 = vst.msk [vmem:[%s262] sm:$0xf] %vm387, %v379
      %389 = vst.msk [vmem:[%s262 + $0x4] sm:$0xf] %vm387, %v380
      %390 = vst.msk [vmem:[%s262 + $0x8] sm:$0xf] %vm387, %v381
      %391 = vst.msk [vmem:[%s262 + $0xc] sm:$0xf] %vm387, %v382
      %392 = vrot.lane.b32.xlu0 %v379, 96
      %v393 = vpop.permute.xlu0 %392
      %394 = vrot.lane.b32.xlu0 %v380, 96
      %v395 = vpop.permute.xlu0 %394
      %396 = vrot.lane.b32.xlu0 %v381, 96
      %v397 = vpop.permute.xlu0 %396
      %398 = vrot.lane.b32.xlu0 %v382, 96
      %v399 = vpop.permute.xlu0 %398
      %404 = vst.msk [vmem:[%s272] sm:$0xf] %vm387, %v393
      %405 = vst.msk [vmem:[%s272 + $0x4] sm:$0xf] %vm387, %v395
      %406 = vst.msk [vmem:[%s272 + $0x8] sm:$0xf] %vm387, %v397
      %407 = vst.msk [vmem:[%s272 + $0xc] sm:$0xf] %vm387, %v399
      %408 = vrot.lane.b32.xlu0 %v379, 64
      %v409 = vpop.permute.xlu0 %408
      %410 = vrot.lane.b32.xlu0 %v380, 64
      %v411 = vpop.permute.xlu0 %410
      %412 = vrot.lane.b32.xlu0 %v381, 64
      %v413 = vpop.permute.xlu0 %412
      %414 = vrot.lane.b32.xlu0 %v382, 64
      %v415 = vpop.permute.xlu0 %414
      %420 = vst.msk [vmem:[%s282] sm:$0xf] %vm387, %v409
      %421 = vst.msk [vmem:[%s282 + $0x4] sm:$0xf] %vm387, %v411
      %422 = vst.msk [vmem:[%s282 + $0x8] sm:$0xf] %vm387, %v413
      %423 = vst.msk [vmem:[%s282 + $0xc] sm:$0xf] %vm387, %v415
      %s424 = smul.u32 4, %s21
      %p425 = scmp.lt.s32.totalorder %s20, 1
      %s426 = scalar_select %p425, %s20, 1
      %p427 = scmp.lt.s32.totalorder %s424, 11
      %s428 = scalar_select %p427, %s424, 11
      %s429 = smul.addr %s426, 12
      %s430 = sadd.s32 %s428, %s429
      %s431 = smul.addr %s430, 4
      %s432 = scalar_lea.vmem %s2, %s431
      %s433 = smul.u32 4, %s21
      %p434 = scmp.lt.s32.totalorder %s20, 1
      %s435 = scalar_select %p434, %s20, 1
      %p436 = scmp.lt.s32.totalorder %s433, 11
      %s437 = scalar_select %p436, %s433, 11
      %s438 = smul.addr %s435, 12
      %s439 = sadd.s32 %s437, %s438
      %s440 = smul.addr %s439, 4
      %s441 = scalar_lea.vmem %s3, %s440
      %s442 = smul.u32 4, %s21
      %p443 = scmp.lt.s32.totalorder %s20, 1
      %s444 = scalar_select %p443, %s20, 1
      %p445 = scmp.lt.s32.totalorder %s442, 11
      %s446 = scalar_select %p445, %s442, 11
      %s447 = smul.addr %s444, 12
      %s448 = sadd.s32 %s446, %s447
      %s449 = smul.addr %s448, 4
      %s450 = scalar_lea.vmem %s4, %s449
      // Predicated region
      $region29: #{get_trans_forward.6} parent=27 // pred_check
        %p451 = pneg %p97
      $region30: #{get_trans_forward.6} parent=27 // pred_check_branch
        %453 = sbr.rel (%p451) target = $region32
      $region31: #{get_trans_forward.6} parent=27 // pred_region
        %s454 = smul.u32 4, %s21
      $region32: #{get_trans_forward.6} parent=27 // pred_fallthru
        _
      // Predicated region
      $region33: #{get_trans_forward.6} parent=27 // pred_check
        %p455 = pneg %p125
      $region34: #{get_trans_forward.6} parent=27 // pred_check_branch
        %457 = sbr.rel (%p455) target = $region36
      $region35: #{get_trans_forward.6} parent=27 // pred_region
        %s458 = smul.u32 4, %s21
      $region36: #{get_trans_forward.6} parent=27 // pred_fallthru
        _
      // Predicated region
      $region37: #{get_trans_forward.6} parent=27 // pred_check
        %p459 = pneg %p153
      $region38: #{get_trans_forward.6} parent=27 // pred_check_branch
        %461 = sbr.rel (%p459) target = $region40
      $region39: #{get_trans_forward.6} parent=27 // pred_region
        %s462 = smul.u32 4, %s21
      $region40: #{get_trans_forward.6} parent=27 // pred_fallthru
        _
    $region28: #{get_trans_forward.6} parent=5 // pred_fallthru
      _
    %p463 = scmp.le.s32.totalorder 2, %s11
    // Predicated region
    $region41: #{get_trans_forward.6} parent=5 // pred_check
      %p464 = pneg %p463
    $region42: #{get_trans_forward.6} parent=5 // pred_check_branch
      %466 = sbr.rel (%p464) target = $region44
    $region43: #{get_trans_forward.6} parent=5 // pred_region
      %s467 = ssub.s32 %s11, 2
      // Predicated region
      $region45: #{get_trans_forward.6} parent=43 // pred_check
        %p468 = pneg %p103
      $region46: #{get_trans_forward.6} parent=43 // pred_check_branch
        %470 = sbr.rel (%p468) target = $region48
      $region47: #{get_trans_forward.6} parent=43 // pred_region
        %s471 = smul.u32 4, %s23
        %p472 = scmp.lt.s32.totalorder %s22, 1
        %s473 = scalar_select %p472, %s22, 1
        %p474 = scmp.lt.s32.totalorder %s471, 11
        %s475 = scalar_select %p474, %s471, 11
        %s476 = smul.addr %s473, 12
        %s477 = sadd.s32 %s475, %s476
        %s478 = smul.addr %s477, 4
        %s479 = scalar_lea.vmem %s2, %s478
      $region48: #{get_trans_forward.6} parent=43 // pred_fallthru
        _
      // Predicated region
      $region49: #{get_trans_forward.6} parent=43 // pred_check
        %p480 = pneg %p131
      $region50: #{get_trans_forward.6} parent=43 // pred_check_branch
        %482 = sbr.rel (%p480) target = $region52
      $region51: #{get_trans_forward.6} parent=43 // pred_region
        %s483 = smul.u32 4, %s23
        %p484 = scmp.lt.s32.totalorder %s22, 1
        %s485 = scalar_select %p484, %s22, 1
        %p486 = scmp.lt.s32.totalorder %s483, 11
        %s487 = scalar_select %p486, %s483, 11
        %s488 = smul.addr %s485, 12
        %s489 = sadd.s32 %s487, %s488
        %s490 = smul.addr %s489, 4
        %s491 = scalar_lea.vmem %s3, %s490
      $region52: #{get_trans_forward.6} parent=43 // pred_fallthru
        _
      // Predicated region
      $region53: #{get_trans_forward.6} parent=43 // pred_check
        %p492 = pneg %p159
      $region54: #{get_trans_forward.6} parent=43 // pred_check_branch
        %494 = sbr.rel (%p492) target = $region56
      $region55: #{get_trans_forward.6} parent=43 // pred_region
        %s495 = smul.u32 4, %s23
        %p496 = scmp.lt.s32.totalorder %s22, 1
        %s497 = scalar_select %p496, %s22, 1
        %p498 = scmp.lt.s32.totalorder %s495, 11
        %s499 = scalar_select %p498, %s495, 11
        %s500 = smul.addr %s497, 12
        %s501 = sadd.s32 %s499, %s500
        %s502 = smul.addr %s501, 4
        %s503 = scalar_lea.vmem %s4, %s502
      $region56: #{get_trans_forward.6} parent=43 // pred_fallthru
        _
    $region44: #{get_trans_forward.6} parent=5 // pred_fallthru
      _
  $region6: #{get_trans_forward.6} parent=0 // loop_footer
    %s15 = sadd.s32 1, %s11
  $region7: #{get_trans_forward.6} parent=0 // loop_footer_branch
    %10 = sbr.rel target = $region3
  $region8: #{get_trans_forward.6} parent=0 // loop_exit
    _

// kernel: get_trans_forward.7
$region0: #{get_trans_forward.7}
  #allocation0 [shape = 'u32[]', space=smem, size = 0x4, offset = 0x4, fixed_abs, tag = 'smem constant byte address 0x4 - core index']
  #allocation1 [shape = 'u32[144,128]{1,0:T(1,128)}', space=vmem, size = 0x12000, scoped, tag = 'internal scratch']
  %s0 = inlined_call_operand.vmem [shape: bf16[2,96,32], index: 0, kind: input, shape index: {}, may-alias: {0,13}]
  %s1 = inlined_call_operand.vmem [shape: bf16[2,96,32], index: 1, kind: input, shape index: {}]
  %s2 = inlined_call_operand.vmem [shape: bf16[2,96,32], index: 2, kind: input, shape index: {}]
  %s3 = inlined_call_operand.vmem [shape: bf16[2,96,32], index: 3, kind: input, shape index: {}]
  %s4 = inlined_call_operand.vmem [shape: bf16[32,32], index: 4, kind: input, shape index: {}]
  %s5 = inlined_call_operand.vmem [shape: f32[1,32], index: 5, kind: input, shape index: {}]
  %s6 = inlined_call_operand.vmem [shape: f32[1,32], index: 6, kind: input, shape index: {}]
  %s7 = inlined_call_operand.vmem [shape: bf16[32,32], index: 7, kind: input, shape index: {}]
  %s8 = inlined_call_operand.vmem [shape: f32[1,32], index: 8, kind: input, shape index: {}]
  %s9 = inlined_call_operand.vmem [shape: bf16[32,32], index: 9, kind: input, shape index: {}]
  %s10 = inlined_call_operand.vmem [shape: f32[1,32], index: 10, kind: input, shape index: {}]
  %s11 = inlined_call_operand.vmem [shape: f32[1,32], index: 11, kind: input, shape index: {}]
  %s12 = inlined_call_operand.vmem [shape: f32[1,32], index: 12, kind: input, shape index: {}]
  %s13 = inlined_call_operand.vmem [shape: bf16[2,96,32], index: 13, kind: output, shape index: {}, may-alias: {0,13}]
  %s14 = sld [smem:[#allocation0]]
  $region85: #{get_trans_forward.7} parent=0
    _
  %s16 = ssub.s32 1, %s14
  %s17 = scalar_select 0, %s16, %s14
  loop: start=0, step=1, limit=8
  $region2: #{get_trans_forward.7} parent=0 // loop_pre_header
    _
  $region3: #{get_trans_forward.7} parent=0 // loop_header
    %s19 = sphi 0, %s23
    %p20 = scmp.ge.s32.totalorder %s19, 8
    %s26 = sphi 0, %s38
    %s27 = sphi 0, %s34
    %s28 = sphi 0, %s26
    %s29 = sphi 0, %s27
    %s30 = sphi 0, %s28
    %s31 = sphi 0, %s29
    %s43 = sphi 0, %s45
    %s46 = sphi 0, %s43
    %s47 = sphi 0, %s46
    %s63 = sphi 0, %s47
    %s71 = sphi 0, %s73
    %s74 = sphi 0, %s71
    %s75 = sphi 0, %s74
    %s91 = sphi 0, %s75
    %s97 = sphi 0, %s99
    %s100 = sphi 0, %s97
    %s101 = sphi 0, %s100
    %s117 = sphi 0, %s101
    %s123 = sphi 0, %s125
    %s126 = sphi 0, %s123
    %s127 = sphi 0, %s126
    %s143 = sphi 0, %s127
    %s147 = sphi 0, %s147
    %s149 = sphi 0, %s147
    %s150 = sphi 0, %s149
    %s164 = sphi 0, %s150
    %s168 = sphi 0, %s168
    %s170 = sphi 0, %s168
    %s171 = sphi 0, %s170
    %s185 = sphi 0, %s171
    %s189 = sphi 0, %s189
    %s191 = sphi 0, %s189
    %s192 = sphi 0, %s191
    %s206 = sphi 0, %s192
    %s210 = sphi 0, %s210
    %s212 = sphi 0, %s210
    %s213 = sphi 0, %s212
    %s227 = sphi 0, %s213
    %s231 = sphi 0, %s231
    %s233 = sphi 0, %s231
    %s234 = sphi 0, %s233
    %s248 = sphi 0, %s234
    %s252 = sphi 0, %s252
    %s254 = sphi 0, %s252
    %s255 = sphi 0, %s254
    %s269 = sphi 0, %s255
    %s273 = sphi 0, %s273
    %s275 = sphi 0, %s273
    %s276 = sphi 0, %s275
    %s290 = sphi 0, %s276
    %s294 = sphi 0, %s294
    %s296 = sphi 0, %s294
    %s297 = sphi 0, %s296
    %s311 = sphi 0, %s297
    %s315 = sphi 0, %s315
    %s317 = sphi 0, %s315
    %s318 = sphi 0, %s317
    %s332 = sphi 0, %s318
    %s340 = sphi 0, %s342
    %s343 = sphi 0, %s340
    %s344 = sphi 0, %s343
    %s360 = sphi 0, %s344
  $region4: #{get_trans_forward.7} parent=0 // loop_header_branch
    %22 = sbr.rel (%p20) target = $region8
  $region5: #{get_trans_forward.7} parent=0 // loop_body
    %s24 = ssub.s32 %s19, 1
    %s25 = ssub.s32 %s19, 2
    %s32 = sadd.s32 1, %s27
    %p33 = scmp.ge.s32.totalorder %s32, 3
    %s34 = scalar_select %p33, 0, %s32
    %s35 = sadd.s32 1, %s26
    %s36 = scalar_select %p33, %s35, %s26
    %p37 = scmp.ge.s32.totalorder %s36, 2
    %s38 = scalar_select %p37, 0, %s36
    %s39 = ssub.s32 %s26, %s38
    %s40 = ssub.s32 %s27, %s34
    %s41 = sor.u32 %s39, %s40
    %p42 = scmp.eq.s32.totalorder %s41, 0
    %s44 = sadd.s32 %s43, 1
    %s45 = scalar_select %p42, %s43, %s44
    %p48 = pneg %p42
    %p49 = scmp.eq.s32.totalorder %s19, 5
    %p50 = por %p48, %p49
    %p51 = scmp.ne.s32.totalorder %s43, %s46
    %p52 = scmp.eq.s32.totalorder %s19, 0
    %p53 = por %p51, %p52
    %p54 = scmp.ne.s32.totalorder %s43, %s46
    %p55 = scmp.eq.s32.totalorder %s24, 5
    %p56 = por %p54, %p55
    %p57 = scmp.ne.s32.totalorder %s46, %s47
    %p58 = scmp.eq.s32.totalorder %s24, 0
    %p59 = por %p57, %p58
    %p60 = scmp.ne.s32.totalorder %s46, %s47
    %p61 = scmp.eq.s32.totalorder %s25, 5
    %p62 = por %p60, %p61
    %p64 = scmp.ne.s32.totalorder %s47, %s63
    %p65 = scmp.eq.s32.totalorder %s25, 0
    %p66 = por %p64, %p65
    %s67 = ssub.s32 %s26, %s38
    %s68 = ssub.s32 %s27, %s34
    %s69 = sor.u32 %s67, %s68
    %p70 = scmp.eq.s32.totalorder %s69, 0
    %s72 = sadd.s32 %s71, 1
    %s73 = scalar_select %p70, %s71, %s72
    %p76 = pneg %p70
    %p77 = scmp.eq.s32.totalorder %s19, 5
    %p78 = por %p76, %p77
    %p79 = scmp.ne.s32.totalorder %s71, %s74
    %p80 = scmp.eq.s32.totalorder %s19, 0
    %p81 = por %p79, %p80
    %p82 = scmp.ne.s32.totalorder %s71, %s74
    %p83 = scmp.eq.s32.totalorder %s24, 5
    %p84 = por %p82, %p83
    %p85 = scmp.ne.s32.totalorder %s74, %s75
    %p86 = scmp.eq.s32.totalorder %s24, 0
    %p87 = por %p85, %p86
    %p88 = scmp.ne.s32.totalorder %s74, %s75
    %p89 = scmp.eq.s32.totalorder %s25, 5
    %p90 = por %p88, %p89
    %p92 = scmp.ne.s32.totalorder %s75, %s91
    %p93 = scmp.eq.s32.totalorder %s25, 0
    %p94 = por %p92, %p93
    %s95 = ssub.s32 %s26, %s38
    %p96 = scmp.eq.s32.totalorder %s95, 0
    %s98 = sadd.s32 %s97, 1
    %s99 = scalar_select %p96, %s97, %s98
    %p102 = pneg %p96
    %p103 = scmp.eq.s32.totalorder %s19, 5
    %p104 = por %p102, %p103
    %p105 = scmp.ne.s32.totalorder %s97, %s100
    %p106 = scmp.eq.s32.totalorder %s19, 0
    %p107 = por %p105, %p106
    %p108 = scmp.ne.s32.totalorder %s97, %s100
    %p109 = scmp.eq.s32.totalorder %s24, 5
    %p110 = por %p108, %p109
    %p111 = scmp.ne.s32.totalorder %s100, %s101
    %p112 = scmp.eq.s32.totalorder %s24, 0
    %p113 = por %p111, %p112
    %p114 = scmp.ne.s32.totalorder %s100, %s101
    %p115 = scmp.eq.s32.totalorder %s25, 5
    %p116 = por %p114, %p115
    %p118 = scmp.ne.s32.totalorder %s101, %s117
    %p119 = scmp.eq.s32.totalorder %s25, 0
    %p120 = por %p118, %p119
    %s121 = ssub.s32 %s26, %s38
    %p122 = scmp.eq.s32.totalorder %s121, 0
    %s124 = sadd.s32 %s123, 1
    %s125 = scalar_select %p122, %s123, %s124
    %p128 = pneg %p122
    %p129 = scmp.eq.s32.totalorder %s19, 5
    %p130 = por %p128, %p129
    %p131 = scmp.ne.s32.totalorder %s123, %s126
    %p132 = scmp.eq.s32.totalorder %s19, 0
    %p133 = por %p131, %p132
    %p134 = scmp.ne.s32.totalorder %s123, %s126
    %p135 = scmp.eq.s32.totalorder %s24, 5
    %p136 = por %p134, %p135
    %p137 = scmp.ne.s32.totalorder %s126, %s127
    %p138 = scmp.eq.s32.totalorder %s24, 0
    %p139 = por %p137, %p138
    %p140 = scmp.ne.s32.totalorder %s126, %s127
    %p141 = scmp.eq.s32.totalorder %s25, 5
    %p142 = por %p140, %p141
    %p144 = scmp.ne.s32.totalorder %s127, %s143
    %p145 = scmp.eq.s32.totalorder %s25, 0
    %p146 = por %p144, %p145
    %s148 = sadd.s32 %s147, 1
    %p151 = scmp.eq.s32.totalorder %s19, 5
    %p152 = scmp.ne.s32.totalorder %s147, %s149
    %p153 = scmp.eq.s32.totalorder %s19, 0
    %p154 = por %p152, %p153
    %p155 = scmp.ne.s32.totalorder %s147, %s149
    %p156 = scmp.eq.s32.totalorder %s24, 5
    %p157 = por %p155, %p156
    %p158 = scmp.ne.s32.totalorder %s149, %s150
    %p159 = scmp.eq.s32.totalorder %s24, 0
    %p160 = por %p158, %p159
    %p161 = scmp.ne.s32.totalorder %s149, %s150
    %p162 = scmp.eq.s32.totalorder %s25, 5
    %p163 = por %p161, %p162
    %p165 = scmp.ne.s32.totalorder %s150, %s164
    %p166 = scmp.eq.s32.totalorder %s25, 0
    %p167 = por %p165, %p166
    %s169 = sadd.s32 %s168, 1
    %p172 = scmp.eq.s32.totalorder %s19, 5
    %p173 = scmp.ne.s32.totalorder %s168, %s170
    %p174 = scmp.eq.s32.totalorder %s19, 0
    %p175 = por %p173, %p174
    %p176 = scmp.ne.s32.totalorder %s168, %s170
    %p177 = scmp.eq.s32.totalorder %s24, 5
    %p178 = por %p176, %p177
    %p179 = scmp.ne.s32.totalorder %s170, %s171
    %p180 = scmp.eq.s32.totalorder %s24, 0
    %p181 = por %p179, %p180
    %p182 = scmp.ne.s32.totalorder %s170, %s171
    %p183 = scmp.eq.s32.totalorder %s25, 5
    %p184 = por %p182, %p183
    %p186 = scmp.ne.s32.totalorder %s171, %s185
    %p187 = scmp.eq.s32.totalorder %s25, 0
    %p188 = por %p186, %p187
    %s190 = sadd.s32 %s189, 1
    %p193 = scmp.eq.s32.totalorder %s19, 5
    %p194 = scmp.ne.s32.totalorder %s189, %s191
    %p195 = scmp.eq.s32.totalorder %s19, 0
    %p196 = por %p194, %p195
    %p197 = scmp.ne.s32.totalorder %s189, %s191
    %p198 = scmp.eq.s32.totalorder %s24, 5
    %p199 = por %p197, %p198
    %p200 = scmp.ne.s32.totalorder %s191, %s192
    %p201 = scmp.eq.s32.totalorder %s24, 0
    %p202 = por %p200, %p201
    %p203 = scmp.ne.s32.totalorder %s191, %s192
    %p204 = scmp.eq.s32.totalorder %s25, 5
    %p205 = por %p203, %p204
    %p207 = scmp.ne.s32.totalorder %s192, %s206
    %p208 = scmp.eq.s32.totalorder %s25, 0
    %p209 = por %p207, %p208
    %s211 = sadd.s32 %s210, 1
    %p214 = scmp.eq.s32.totalorder %s19, 5
    %p215 = scmp.ne.s32.totalorder %s210, %s212
    %p216 = scmp.eq.s32.totalorder %s19, 0
    %p217 = por %p215, %p216
    %p218 = scmp.ne.s32.totalorder %s210, %s212
    %p219 = scmp.eq.s32.totalorder %s24, 5
    %p220 = por %p218, %p219
    %p221 = scmp.ne.s32.totalorder %s212, %s213
    %p222 = scmp.eq.s32.totalorder %s24, 0
    %p223 = por %p221, %p222
    %p224 = scmp.ne.s32.totalorder %s212, %s213
    %p225 = scmp.eq.s32.totalorder %s25, 5
    %p226 = por %p224, %p225
    %p228 = scmp.ne.s32.totalorder %s213, %s227
    %p229 = scmp.eq.s32.totalorder %s25, 0
    %p230 = por %p228, %p229
    %s232 = sadd.s32 %s231, 1
    %p235 = scmp.eq.s32.totalorder %s19, 5
    %p236 = scmp.ne.s32.totalorder %s231, %s233
    %p237 = scmp.eq.s32.totalorder %s19, 0
    %p238 = por %p236, %p237
    %p239 = scmp.ne.s32.totalorder %s231, %s233
    %p240 = scmp.eq.s32.totalorder %s24, 5
    %p241 = por %p239, %p240
    %p242 = scmp.ne.s32.totalorder %s233, %s234
    %p243 = scmp.eq.s32.totalorder %s24, 0
    %p244 = por %p242, %p243
    %p245 = scmp.ne.s32.totalorder %s233, %s234
    %p246 = scmp.eq.s32.totalorder %s25, 5
    %p247 = por %p245, %p246
    %p249 = scmp.ne.s32.totalorder %s234, %s248
    %p250 = scmp.eq.s32.totalorder %s25, 0
    %p251 = por %p249, %p250
    %s253 = sadd.s32 %s252, 1
    %p256 = scmp.eq.s32.totalorder %s19, 5
    %p257 = scmp.ne.s32.totalorder %s252, %s254
    %p258 = scmp.eq.s32.totalorder %s19, 0
    %p259 = por %p257, %p258
    %p260 = scmp.ne.s32.totalorder %s252, %s254
    %p261 = scmp.eq.s32.totalorder %s24, 5
    %p262 = por %p260, %p261
    %p263 = scmp.ne.s32.totalorder %s254, %s255
    %p264 = scmp.eq.s32.totalorder %s24, 0
    %p265 = por %p263, %p264
    %p266 = scmp.ne.s32.totalorder %s254, %s255
    %p267 = scmp.eq.s32.totalorder %s25, 5
    %p268 = por %p266, %p267
    %p270 = scmp.ne.s32.totalorder %s255, %s269
    %p271 = scmp.eq.s32.totalorder %s25, 0
    %p272 = por %p270, %p271
    %s274 = sadd.s32 %s273, 1
    %p277 = scmp.eq.s32.totalorder %s19, 5
    %p278 = scmp.ne.s32.totalorder %s273, %s275
    %p279 = scmp.eq.s32.totalorder %s19, 0
    %p280 = por %p278, %p279
    %p281 = scmp.ne.s32.totalorder %s273, %s275
    %p282 = scmp.eq.s32.totalorder %s24, 5
    %p283 = por %p281, %p282
    %p284 = scmp.ne.s32.totalorder %s275, %s276
    %p285 = scmp.eq.s32.totalorder %s24, 0
    %p286 = por %p284, %p285
    %p287 = scmp.ne.s32.totalorder %s275, %s276
    %p288 = scmp.eq.s32.totalorder %s25, 5
    %p289 = por %p287, %p288
    %p291 = scmp.ne.s32.totalorder %s276, %s290
    %p292 = scmp.eq.s32.totalorder %s25, 0
    %p293 = por %p291, %p292
    %s295 = sadd.s32 %s294, 1
    %p298 = scmp.eq.s32.totalorder %s19, 5
    %p299 = scmp.ne.s32.totalorder %s294, %s296
    %p300 = scmp.eq.s32.totalorder %s19, 0
    %p301 = por %p299, %p300
    %p302 = scmp.ne.s32.totalorder %s294, %s296
    %p303 = scmp.eq.s32.totalorder %s24, 5
    %p304 = por %p302, %p303
    %p305 = scmp.ne.s32.totalorder %s296, %s297
    %p306 = scmp.eq.s32.totalorder %s24, 0
    %p307 = por %p305, %p306
    %p308 = scmp.ne.s32.totalorder %s296, %s297
    %p309 = scmp.eq.s32.totalorder %s25, 5
    %p310 = por %p308, %p309
    %p312 = scmp.ne.s32.totalorder %s297, %s311
    %p313 = scmp.eq.s32.totalorder %s25, 0
    %p314 = por %p312, %p313
    %s316 = sadd.s32 %s315, 1
    %p319 = scmp.eq.s32.totalorder %s19, 5
    %p320 = scmp.ne.s32.totalorder %s315, %s317
    %p321 = scmp.eq.s32.totalorder %s19, 0
    %p322 = por %p320, %p321
    %p323 = scmp.ne.s32.totalorder %s315, %s317
    %p324 = scmp.eq.s32.totalorder %s24, 5
    %p325 = por %p323, %p324
    %p326 = scmp.ne.s32.totalorder %s317, %s318
    %p327 = scmp.eq.s32.totalorder %s24, 0
    %p328 = por %p326, %p327
    %p329 = scmp.ne.s32.totalorder %s317, %s318
    %p330 = scmp.eq.s32.totalorder %s25, 5
    %p331 = por %p329, %p330
    %p333 = scmp.ne.s32.totalorder %s318, %s332
    %p334 = scmp.eq.s32.totalorder %s25, 0
    %p335 = por %p333, %p334
    %s336 = ssub.s32 %s26, %s38
    %s337 = ssub.s32 %s27, %s34
    %s338 = sor.u32 %s336, %s337
    %p339 = scmp.eq.s32.totalorder %s338, 0
    %s341 = sadd.s32 %s340, 1
    %s342 = scalar_select %p339, %s340, %s341
    %p345 = pneg %p339
    %p346 = scmp.eq.s32.totalorder %s19, 5
    %p347 = por %p345, %p346
    %p348 = scmp.ne.s32.totalorder %s340, %s343
    %p349 = scmp.eq.s32.totalorder %s19, 0
    %p350 = por %p348, %p349
    %p351 = scmp.ne.s32.totalorder %s340, %s343
    %p352 = scmp.eq.s32.totalorder %s24, 5
    %p353 = por %p351, %p352
    %p354 = scmp.ne.s32.totalorder %s343, %s344
    %p355 = scmp.eq.s32.totalorder %s24, 0
    %p356 = por %p354, %p355
    %p357 = scmp.ne.s32.totalorder %s343, %s344
    %p358 = scmp.eq.s32.totalorder %s25, 5
    %p359 = por %p357, %p358
    %p361 = scmp.ne.s32.totalorder %s344, %s360
    %p362 = scmp.eq.s32.totalorder %s25, 0
    %p363 = por %p361, %p362
    %p364 = scmp.le.s32.totalorder 1, %s19
    %p365 = scmp.lt.s32.totalorder %s19, 7
    %p366 = pnand %p364, %p365
    %p367 = pneg %p366
    // Predicated region
    $region9: #{get_trans_forward.7} parent=5 // pred_check
      _
    $region10: #{get_trans_forward.7} parent=5 // pred_check_branch
      %369 = sbr.rel (%p366) target = $region12
    $region11: #{get_trans_forward.7} parent=5 // pred_region
      %s370 = ssub.s32 %s19, 1
      // Predicated region
      $region13: #{get_trans_forward.7} parent=11 // pred_check
        %p371 = pneg %p160
      $region14: #{get_trans_forward.7} parent=11 // pred_check_branch
        %373 = sbr.rel (%p371) target = $region16
      $region15: #{get_trans_forward.7} parent=11 // pred_region
        _
      $region16: #{get_trans_forward.7} parent=11 // pred_fallthru
        _
      // Predicated region
      $region17: #{get_trans_forward.7} parent=11 // pred_check
        %p374 = pneg %p181
      $region18: #{get_trans_forward.7} parent=11 // pred_check_branch
        %376 = sbr.rel (%p374) target = $region20
      $region19: #{get_trans_forward.7} parent=11 // pred_region
        _
      $region20: #{get_trans_forward.7} parent=11 // pred_fallthru
        _
      // Predicated region
      $region21: #{get_trans_forward.7} parent=11 // pred_check
        %p377 = pneg %p202
      $region22: #{get_trans_forward.7} parent=11 // pred_check_branch
        %379 = sbr.rel (%p377) target = $region24
      $region23: #{get_trans_forward.7} parent=11 // pred_region
        _
      $region24: #{get_trans_forward.7} parent=11 // pred_fallthru
        _
      // Predicated region
      $region25: #{get_trans_forward.7} parent=11 // pred_check
        %p380 = pneg %p223
      $region26: #{get_trans_forward.7} parent=11 // pred_check_branch
        %382 = sbr.rel (%p380) target = $region28
      $region27: #{get_trans_forward.7} parent=11 // pred_region
        _
      $region28: #{get_trans_forward.7} parent=11 // pred_fallthru
        _
      // Predicated region
      $region29: #{get_trans_forward.7} parent=11 // pred_check
        %p383 = pneg %p244
      $region30: #{get_trans_forward.7} parent=11 // pred_check_branch
        %385 = sbr.rel (%p383) target = $region32
      $region31: #{get_trans_forward.7} parent=11 // pred_region
        _
      $region32: #{get_trans_forward.7} parent=11 // pred_fallthru
        _
      // Predicated region
      $region33: #{get_trans_forward.7} parent=11 // pred_check
        %p386 = pneg %p265
      $region34: #{get_trans_forward.7} parent=11 // pred_check_branch
        %388 = sbr.rel (%p386) target = $region36
      $region35: #{get_trans_forward.7} parent=11 // pred_region
        _
      $region36: #{get_trans_forward.7} parent=11 // pred_fallthru
        _
      // Predicated region
      $region37: #{get_trans_forward.7} parent=11 // pred_check
        %p389 = pneg %p286
      $region38: #{get_trans_forward.7} parent=11 // pred_check_branch
        %391 = sbr.rel (%p389) target = $region40
      $region39: #{get_trans_forward.7} parent=11 // pred_region
        _
      $region40: #{get_trans_forward.7} parent=11 // pred_fallthru
        _
      // Predicated region
      $region41: #{get_trans_forward.7} parent=11 // pred_check
        %p392 = pneg %p307
      $region42: #{get_trans_forward.7} parent=11 // pred_check_branch
        %394 = sbr.rel (%p392) target = $region44
      $region43: #{get_trans_forward.7} parent=11 // pred_region
        _
      $region44: #{get_trans_forward.7} parent=11 // pred_fallthru
        _
      // Predicated region
      $region45: #{get_trans_forward.7} parent=11 // pred_check
        %p395 = pneg %p328
      $region46: #{get_trans_forward.7} parent=11 // pred_check_branch
        %397 = sbr.rel (%p395) target = $region48
      $region47: #{get_trans_forward.7} parent=11 // pred_region
        _
      $region48: #{get_trans_forward.7} parent=11 // pred_fallthru
        _
    $region12: #{get_trans_forward.7} parent=5 // pred_fallthru
      _
    %p398 = scmp.lt.s32.totalorder %s19, 6
    // Predicated region
    $region49: #{get_trans_forward.7} parent=5 // pred_check
      %p399 = pneg %p398
    $region50: #{get_trans_forward.7} parent=5 // pred_check_branch
      %401 = sbr.rel (%p399) target = $region52
    $region51: #{get_trans_forward.7} parent=5 // pred_region
      // Predicated region
      $region53: #{get_trans_forward.7} parent=51 // pred_check
        %p402 = pneg %p53
      $region54: #{get_trans_forward.7} parent=51 // pred_check_branch
        %404 = sbr.rel (%p402) target = $region56
      $region55: #{get_trans_forward.7} parent=51 // pred_region
        %s405 = smul.u32 4, %s27
        %p406 = scmp.lt.s32.totalorder %s26, 1
        %s407 = scalar_select %p406, %s26, 1
        %p408 = scmp.lt.s32.totalorder %s405, 11
        %s409 = scalar_select %p408, %s405, 11
        %s410 = smul.addr %s407, 12
        %s411 = sadd.s32 %s409, %s410
        %s412 = smul.addr %s411, 4
        %s413 = scalar_lea.vmem %s0, %s412
        %s414 = smul.u32 4, %s27
      $region56: #{get_trans_forward.7} parent=51 // pred_fallthru
        _
      // Predicated region
      $region57: #{get_trans_forward.7} parent=51 // pred_check
        %p415 = pneg %p81
      $region58: #{get_trans_forward.7} parent=51 // pred_check_branch
        %417 = sbr.rel (%p415) target = $region60
      $region59: #{get_trans_forward.7} parent=51 // pred_region
        %s418 = smul.u32 4, %s27
        %p419 = scmp.lt.s32.totalorder %s26, 1
        %s420 = scalar_select %p419, %s26, 1
        %p421 = scmp.lt.s32.totalorder %s418, 11
        %s422 = scalar_select %p421, %s418, 11
        %s423 = smul.addr %s420, 12
        %s424 = sadd.s32 %s422, %s423
        %s425 = smul.addr %s424, 4
        %s426 = scalar_lea.vmem %s1, %s425
        %s427 = smul.u32 4, %s27
      $region60: #{get_trans_forward.7} parent=51 // pred_fallthru
        _
      // Predicated region
      $region61: #{get_trans_forward.7} parent=51 // pred_check
        %p428 = pneg %p107
      $region62: #{get_trans_forward.7} parent=51 // pred_check_branch
        %430 = sbr.rel (%p428) target = $region64
      $region63: #{get_trans_forward.7} parent=51 // pred_region
        %p431 = scmp.lt.s32.totalorder %s26, 1
        %s432 = scalar_select %p431, %s26, 1
        %s433 = smul.addr %s432, 12
        %s434 = smul.addr %s433, 4
        %s435 = scalar_lea.vmem %s2, %s434
      $region64: #{get_trans_forward.7} parent=51 // pred_fallthru
        _
      // Predicated region
      $region65: #{get_trans_forward.7} parent=51 // pred_check
        %p436 = pneg %p133
      $region66: #{get_trans_forward.7} parent=51 // pred_check_branch
        %438 = sbr.rel (%p436) target = $region68
      $region67: #{get_trans_forward.7} parent=51 // pred_region
        %p439 = scmp.lt.s32.totalorder %s26, 1
        %s440 = scalar_select %p439, %s26, 1
        %s441 = smul.addr %s440, 12
        %s442 = smul.addr %s441, 4
        %s443 = scalar_lea.vmem %s3, %s442
      $region68: #{get_trans_forward.7} parent=51 // pred_fallthru
        _
    $region52: #{get_trans_forward.7} parent=5 // pred_fallthru
      _
    %p444 = scmp.le.s32.totalorder 1, %s19
    %p445 = scmp.lt.s32.totalorder %s19, 7
    %p446 = pnand %p444, %p445
    %p447 = pneg %p446
    // Predicated region
    $region69: #{get_trans_forward.7} parent=5 // pred_check
      _
    $region70: #{get_trans_forward.7} parent=5 // pred_check_branch
      %449 = sbr.rel (%p446) target = $region72
    $region71: #{get_trans_forward.7} parent=5 // pred_region
      %s450 = ssub.s32 %s19, 1
      %s451 = smul.u32 4, %s29
      %p452 = scmp.lt.s32.totalorder %s28, 1
      %s453 = scalar_select %p452, %s28, 1
      %p454 = scmp.lt.s32.totalorder %s451, 11
      %s455 = scalar_select %p454, %s451, 11
      %s456 = smul.addr %s453, 12
      %s457 = sadd.s32 %s455, %s456
      %s458 = smul.addr %s457, 4
      %s459 = scalar_lea.vmem %s0, %s458
      %p460 = pneg %p59
      %p461 = pneg %p56
      %s462 = smul.u32 4, %s29
      %p463 = scmp.lt.s32.totalorder %s28, 1
      %s464 = scalar_select %p463, %s28, 1
      %p465 = scmp.lt.s32.totalorder %s462, 11
      %s466 = scalar_select %p465, %s462, 11
      %s467 = smul.addr %s464, 12
      %s468 = sadd.s32 %s466, %s467
      %s469 = smul.addr %s468, 4
      %s470 = scalar_lea.vmem %s1, %s469
      %p471 = pneg %p87
      %p472 = pneg %p84
      %p473 = scmp.lt.s32.totalorder %s28, 1
      %s474 = scalar_select %p473, %s28, 1
      %s475 = smul.addr %s474, 12
      %s476 = smul.addr %s475, 4
      %s477 = scalar_lea.vmem %s2, %s476
      %p478 = pneg %p113
      %p479 = pneg %p110
      %p480 = scmp.lt.s32.totalorder %s28, 1
      %s481 = scalar_select %p480, %s28, 1
      %s482 = smul.addr %s481, 12
      %s483 = smul.addr %s482, 4
      %s484 = scalar_lea.vmem %s3, %s483
      %p485 = pneg %p139
      %p486 = pneg %p136
      %p487 = pneg %p160
      %p488 = pneg %p157
      %p489 = pneg %p181
      %p490 = pneg %p178
      %p491 = pneg %p202
      %p492 = pneg %p199
      %p493 = pneg %p223
      %p494 = pneg %p220
      %p495 = pneg %p244
      %p496 = pneg %p241
      %p497 = pneg %p265
      %p498 = pneg %p262
      %p499 = pneg %p286
      %p500 = pneg %p283
      %p501 = pneg %p307
      %p502 = pneg %p304
      %p503 = pneg %p328
      %p504 = pneg %p325
      %p505 = pneg %p356
      %p506 = pneg %p353
      %s507 = smul.u32 4, %s29
      %p508 = scmp.lt.s32.totalorder %s28, 1
      %s509 = scalar_select %p508, %s28, 1
      %p510 = scmp.lt.s32.totalorder %s507, 11
      %s511 = scalar_select %p510, %s507, 11
      %s512 = smul.addr %s509, 12
      %s513 = sadd.s32 %s511, %s512
      %s514 = smul.addr %s513, 4
      %s515 = scalar_lea.vmem %s13, %s514
      %s516 = smul.u32 4, %s29
      %p517 = scmp.lt.s32.totalorder %s28, 1
      %s518 = scalar_select %p517, %s28, 1
      %p519 = scmp.lt.s32.totalorder %s516, 11
      %s520 = scalar_select %p519, %s516, 11
      %s521 = smul.addr %s518, 12
      %s522 = sadd.s32 %s520, %s521
      %s523 = smul.addr %s522, 4
      %s524 = scalar_lea.vmem %s0, %s523
      %s525 = smul.u32 4, %s29
      %s526 = smul.u32 4, %s29
      %p527 = scmp.lt.s32.totalorder %s28, 1
      %s528 = scalar_select %p527, %s28, 1
      %p529 = scmp.lt.s32.totalorder %s526, 11
      %s530 = scalar_select %p529, %s526, 11
      %s531 = smul.addr %s528, 12
      %s532 = sadd.s32 %s530, %s531
      %s533 = smul.addr %s532, 4
      %s534 = scalar_lea.vmem %s1, %s533
      %s535 = smul.u32 4, %s29
      %p536 = scmp.lt.s32.totalorder %s28, 1
      %s537 = scalar_select %p536, %s28, 1
      %s538 = smul.addr %s537, 12
      %s539 = smul.addr %s538, 4
      %s540 = scalar_lea.vmem %s2, %s539
      %p541 = scmp.lt.s32.totalorder %s28, 1
      %s542 = scalar_select %p541, %s28, 1
      %s543 = smul.addr %s542, 12
      %s544 = smul.addr %s543, 4
      %s545 = scalar_lea.vmem %s3, %s544
      %s546 = smul.u32 4, %s29
      %p547 = scmp.lt.s32.totalorder %s28, 1
      %s548 = scalar_select %p547, %s28, 1
      %p549 = scmp.lt.s32.totalorder %s546, 11
      %s550 = scalar_select %p549, %s546, 11
      %s551 = smul.addr %s548, 12
      %s552 = sadd.s32 %s550, %s551
      %s553 = smul.addr %s552, 4
      %s554 = scalar_lea.vmem %s13, %s553
      %s555 = smul.u32 4, %s29
      %v557 = vld [vmem:[%s534] sm:$0xf]
      %v558 = vld [vmem:[%s534 + $0x4] sm:$0xf]
      %v559 = vld [vmem:[%s534 + $0x8] sm:$0xf]
      %v560 = vld [vmem:[%s534 + $0xc] sm:$0xf]
      %v561 = vld [vmem:[%s540] sm:$0xf]
      %v562 = vld [vmem:[%s540 + $0x4] sm:$0xf]
      %v563 = vld [vmem:[%s540 + $0x8] sm:$0xf]
      %v564 = vld [vmem:[%s540 + $0xc] sm:$0xf]
      %v565 = vld [vmem:[%s540 + $0x10] sm:$0xf]
      %v566 = vld [vmem:[%s540 + $0x14] sm:$0xf]
      %v567 = vld [vmem:[%s540 + $0x18] sm:$0xf]
      %v568 = vld [vmem:[%s540 + $0x1c] sm:$0xf]
      %v569 = vld [vmem:[%s540 + $0x20] sm:$0xf]
      %v570 = vld [vmem:[%s540 + $0x24] sm:$0xf]
      %v571 = vld [vmem:[%s540 + $0x28] sm:$0xf]
      %v572 = vld [vmem:[%s540 + $0x2c] sm:$0xf]
      %v573 = vld [vmem:[%s545] sm:$0xf]
      %v574 = vld [vmem:[%s545 + $0x4] sm:$0xf]
      %v575 = vld [vmem:[%s545 + $0x8] sm:$0xf]
      %v576 = vld [vmem:[%s545 + $0xc] sm:$0xf]
      %v577 = vld [vmem:[%s545 + $0x10] sm:$0xf]
      %v578 = vld [vmem:[%s545 + $0x14] sm:$0xf]
      %v579 = vld [vmem:[%s545 + $0x18] sm:$0xf]
      %v580 = vld [vmem:[%s545 + $0x1c] sm:$0xf]
      %v581 = vld [vmem:[%s545 + $0x20] sm:$0xf]
      %v582 = vld [vmem:[%s545 + $0x24] sm:$0xf]
      %v583 = vld [vmem:[%s545 + $0x28] sm:$0xf]
      %v584 = vld [vmem:[%s545 + $0x2c] sm:$0xf]
      %v585 = vlaneseq
      %v586 = vand.u32 %v585, 127
      %vm587 = vcmp.lt.s32.totalorder %v586, 65
      %v592 = vunpack.c.l.b16 %v557
      %v593 = vunpack.c.l.b16 %v558
      %v594 = vunpack.c.l.b16 %v559
      %v595 = vunpack.c.l.b16 %v560
      %v596 = vpack.c.b16 %v593, %v592
      %v597 = vpack.c.b16 %v595, %v594
      %v610 = vunpack.c.l.b16 %v561
      %v611 = vunpack.c.l.b16 %v562
      %v612 = vunpack.c.l.b16 %v563
      %v613 = vunpack.c.l.b16 %v564
      %v614 = vunpack.c.l.b16 %v565
      %v615 = vunpack.c.l.b16 %v566
      %v616 = vunpack.c.l.b16 %v567
      %v617 = vunpack.c.l.b16 %v568
      %v618 = vunpack.c.l.b16 %v569
      %v619 = vunpack.c.l.b16 %v570
      %v620 = vunpack.c.l.b16 %v571
      %v621 = vunpack.c.l.b16 %v572
      %v622 = vpack.c.b16 %v611, %v610
      %v623 = vpack.c.b16 %v613, %v612
      %v624 = vpack.c.b16 %v615, %v614
      %v625 = vpack.c.b16 %v617, %v616
      %v626 = vpack.c.b16 %v619, %v618
      %v627 = vpack.c.b16 %v621, %v620
      %vm628 = vcmask 31744
      %v630 = vsel %vm628, %v596, 0
      %v633 = vsel %vm628, %v597, 0
      %v636 = vsel %vm628, %v622, 0
      %v639 = vsel %vm628, %v623, 0
      %v642 = vsel %vm628, %v624, 0
      %v645 = vsel %vm628, %v625, 0
      %v648 = vsel %vm628, %v626, 0
      %v651 = vsel %vm628, %v627, 0
      %653 = vmatprep.subr.bf16.mxu0 0
      %654 = vmatpush1.bf16.xpose.msra.mxu0 0
      %655 = vmatprep.subr.bf16.mxu0 0
      %656 = vmatpush1.bf16.xpose.msra.mxu0 0
      %657 = vmatprep.subr.bf16.mxu0 0
      %658 = vmatpush1.bf16.xpose.msra.mxu0 %v651
      %659 = vmatprep.subr.bf16.mxu0 0
      %660 = vmatpush1.bf16.xpose.msra.mxu0 %v648
      %661 = vmatprep.subr.bf16.mxu0 0
      %662 = vmatpush1.bf16.xpose.msra.mxu0 %v645
      %663 = vmatprep.subr.bf16.mxu0 0
      %664 = vmatpush1.bf16.xpose.msra.mxu0 %v642
      %665 = vmatprep.subr.bf16.mxu0 0
      %666 = vmatpush1.bf16.xpose.msra.mxu0 %v639
      %667 = vmatprep.subr.bf16.mxu0 0
      %668 = vmatpush1.bf16.xpose.msra.mxu0 %v636
      %669 = vmatprep.subr.bf16.mxu0 0
      %670 = vmatpush2.bf16.xpose.msra.mxu0 0
      %671 = vmatprep.subr.bf16.mxu0 0
      %672 = vmatpush2.bf16.xpose.msra.mxu0 0
      %673 = vmatprep.subr.bf16.mxu0 0
      %674 = vmatpush2.bf16.xpose.msra.mxu0 0
      %675 = vmatprep.subr.bf16.mxu0 0
      %676 = vmatpush2.bf16.xpose.msra.mxu0 0
      %677 = vmatprep.subr.bf16.mxu0 0
      %678 = vmatpush2.bf16.xpose.msra.mxu0 0
      %679 = vmatprep.subr.bf16.mxu0 0
      %680 = vmatpush2.bf16.xpose.msra.mxu0 0
      %681 = vmatprep.subr.bf16.mxu0 0
      %682 = vmatpush2.bf16.xpose.msra.mxu0 0
      %683 = vmatprep.subr.bf16.mxu0 0
      %684 = vmatpush2.bf16.xpose.msra.mxu0 0
      %685 = vmatprep.mubr.bf16.mxu0 0
      %686 = vmatmul.mubr.bf16.gmra.mxu0 %v630
      %v687 = vpop.f32.mrf.mxu0
      %v688 = vadd.f32 0.0, %v687
      %v689 = vpop.f32.mrf.mxu0
      %v690 = vpop.f32.mrf.mxu0
      %v691 = vadd.f32 0.0, %v690
      %v692 = vpop.f32.mrf.mxu0
      %693 = vmatprep.mubr.bf16.mxu0 0
      %694 = vmatmul.mubr.bf16.gmra.mxu0 %v633
      %v695 = vpop.f32.mrf.mxu0
      %v696 = vadd.f32 0.0, %v695
      %v697 = vpop.f32.mrf.mxu0
      %v698 = vpop.f32.mrf.mxu0
      %v699 = vadd.f32 0.0, %v698
      %v700 = vpop.f32.mrf.mxu0
      %701 = vdwg.mxu0
      %v702 = vsel %vm587, 1, 0
      %vm703 = vcmp.eq.s32.totalorder %v702, 1
      %v704 = vsel %vm703, %v688, -1e+30
      %v705 = vsel %vm703, %v691, -1e+30
      %v706 = vsel %vm703, %v696, -1e+30
      %v707 = vsel %vm703, %v699, -1e+30
      %vm708 = vcmask 785408
      %v709 = vsel %vm708, %v704, -inf
      %710 = vmax.xlane.f32.xlu0 %v709
      %v711 = vpop.xlane.xlu0 %710
      %v712 = vsel %vm708, %v705, -inf
      %713 = vmax.xlane.f32.xlu0 %v712
      %v714 = vpop.xlane.xlu0 %713
      %v715 = vsel %vm708, %v706, -inf
      %716 = vmax.xlane.f32.xlu0 %v715
      %v717 = vpop.xlane.xlu0 %716
      %v718 = vsel %vm708, %v707, -inf
      %719 = vmax.xlane.f32.xlu0 %v718
      %v720 = vpop.xlane.xlu0 %719
      %v721 = vsub.f32 %v704, %v711
      %v722 = vsub.f32 %v705, %v714
      %v723 = vsub.f32 %v706, %v717
      %v724 = vsub.f32 %v707, %v720
      %v725 = vmul.f32 %v721, 1.442695
      %v726 = vpow.pop %v725
      %v727 = vmul.f32 %v722, 1.442695
      %v728 = vpow.pop %v727
      %v729 = vmul.f32 %v723, 1.442695
      %v730 = vpow.pop %v729
      %v731 = vmul.f32 %v724, 1.442695
      %v732 = vpow.pop %v731
      %v733 = vsel %vm708, %v726, 0.0
      %734 = vadd.xlane.f32.xlu0 %v733
      %v735 = vpop.xlane.xlu0 %734
      %v736 = vsel %vm708, %v728, 0.0
      %737 = vadd.xlane.f32.xlu0 %v736
      %v738 = vpop.xlane.xlu0 %737
      %v739 = vsel %vm708, %v730, 0.0
      %740 = vadd.xlane.f32.xlu0 %v739
      %v741 = vpop.xlane.xlu0 %740
      %v742 = vsel %vm708, %v732, 0.0
      %743 = vadd.xlane.f32.xlu0 %v742
      %v744 = vpop.xlane.xlu0 %743
      %v745 = vpack.c.bf16 %v728, %v726
      %v746 = vpack.c.bf16 %v732, %v730
      %v759 = vunpack.c.l.b16 %v573
      %v760 = vunpack.c.l.b16 %v574
      %v761 = vunpack.c.l.b16 %v575
      %v762 = vunpack.c.l.b16 %v576
      %v763 = vunpack.c.l.b16 %v577
      %v764 = vunpack.c.l.b16 %v578
      %v765 = vunpack.c.l.b16 %v579
      %v766 = vunpack.c.l.b16 %v580
      %v767 = vunpack.c.l.b16 %v581
      %v768 = vunpack.c.l.b16 %v582
      %v769 = vunpack.c.l.b16 %v583
      %v770 = vunpack.c.l.b16 %v584
      %v771 = vpack.c.b16 %v760, %v759
      %v772 = vpack.c.b16 %v762, %v761
      %v773 = vpack.c.b16 %v764, %v763
      %v774 = vpack.c.b16 %v766, %v765
      %v775 = vpack.c.b16 %v768, %v767
      %v776 = vpack.c.b16 %v770, %v769
      %v784 = vsel %vm708, %v745, 0
      %v787 = vsel %vm708, %v746, 0
      %789 = vmatprep.subr.bf16.mxu0 0
      %790 = vmatpush1.bf16.msra.mxu0 0
      %791 = vmatprep.subr.bf16.mxu0 0
      %792 = vmatpush1.bf16.msra.mxu0 0
      %793 = vmatprep.subr.bf16.mxu0 0
      %794 = vmatpush1.bf16.msra.mxu0 %v776
      %795 = vmatprep.subr.bf16.mxu0 0
      %796 = vmatpush1.bf16.msra.mxu0 %v775
      %797 = vmatprep.subr.bf16.mxu0 0
      %798 = vmatpush1.bf16.msra.mxu0 %v774
      %799 = vmatprep.subr.bf16.mxu0 0
      %800 = vmatpush1.bf16.msra.mxu0 %v773
      %801 = vmatprep.subr.bf16.mxu0 0
      %802 = vmatpush1.bf16.msra.mxu0 %v772
      %803 = vmatprep.subr.bf16.mxu0 0
      %804 = vmatpush1.bf16.msra.mxu0 %v771
      %805 = vmatprep.subr.bf16.mxu0 0
      %806 = vmatpush2.bf16.msra.mxu0 0
      %807 = vmatprep.subr.bf16.mxu0 0
      %808 = vmatpush2.bf16.msra.mxu0 0
      %809 = vmatprep.subr.bf16.mxu0 0
      %810 = vmatpush2.bf16.msra.mxu0 0
      %811 = vmatprep.subr.bf16.mxu0 0
      %812 = vmatpush2.bf16.msra.mxu0 0
      %813 = vmatprep.subr.bf16.mxu0 0
      %814 = vmatpush2.bf16.msra.mxu0 0
      %815 = vmatprep.subr.bf16.mxu0 0
      %816 = vmatpush2.bf16.msra.mxu0 0
      %817 = vmatprep.subr.bf16.mxu0 0
      %818 = vmatpush2.bf16.msra.mxu0 0
      %819 = vmatprep.subr.bf16.mxu0 0
      %820 = vmatpush2.bf16.msra.mxu0 0
      %821 = vmatprep.mubr.bf16.mxu0 0
      %822 = vmatmul.mubr.bf16.gmra.mxu0 %v784
      %v823 = vpop.f32.mrf.mxu0
      %v824 = vadd.f32 0.0, %v823
      %v825 = vpop.f32.mrf.mxu0
      %v826 = vpop.f32.mrf.mxu0
      %v827 = vadd.f32 0.0, %v826
      %v828 = vpop.f32.mrf.mxu0
      %829 = vmatprep.mubr.bf16.mxu0 0
      %830 = vmatmul.mubr.bf16.gmra.mxu0 %v787
      %v831 = vpop.f32.mrf.mxu0
      %v832 = vadd.f32 0.0, %v831
      %v833 = vpop.f32.mrf.mxu0
      %v834 = vpop.f32.mrf.mxu0
      %v835 = vadd.f32 0.0, %v834
      %v836 = vpop.f32.mrf.mxu0
      %837 = vdwg.mxu0
      %v838 = vrcp.pop %v735
      %v839 = vrcp.pop %v738
      %v840 = vrcp.pop %v741
      %v841 = vrcp.pop %v744
      %v842 = vmul.f32 %v824, %v838
      %v843 = vmul.f32 %v827, %v839
      %v844 = vmul.f32 %v832, %v840
      %v845 = vmul.f32 %v835, %v841
      %846 = vrot.lane.b32.xlu0 %v596, 124
      %v847 = vpop.permute.xlu0 %846
      %848 = vrot.lane.b32.xlu0 %v597, 124
      %v849 = vpop.permute.xlu0 %848
      %850 = vrot.lane.b32.xlu0 %v622, 124
      %v851 = vpop.permute.xlu0 %850
      %852 = vrot.lane.b32.xlu0 %v623, 124
      %v853 = vpop.permute.xlu0 %852
      %854 = vrot.lane.b32.xlu0 %v624, 124
      %v855 = vpop.permute.xlu0 %854
      %856 = vrot.lane.b32.xlu0 %v625, 124
      %v857 = vpop.permute.xlu0 %856
      %858 = vrot.lane.b32.xlu0 %v626, 124
      %v859 = vpop.permute.xlu0 %858
      %860 = vrot.lane.b32.xlu0 %v627, 124
      %v861 = vpop.permute.xlu0 %860
      %v863 = vsel %vm628, %v847, 0
      %v866 = vsel %vm628, %v849, 0
      %v869 = vsel %vm628, %v851, 0
      %v872 = vsel %vm628, %v853, 0
      %v875 = vsel %vm628, %v855, 0
      %v878 = vsel %vm628, %v857, 0
      %v881 = vsel %vm628, %v859, 0
      %v884 = vsel %vm628, %v861, 0
      %886 = vmatprep.subr.bf16.mxu0 0
      %887 = vmatpush1.bf16.xpose.msra.mxu0 0
      %888 = vmatprep.subr.bf16.mxu0 0
      %889 = vmatpush1.bf16.xpose.msra.mxu0 0
      %890 = vmatprep.subr.bf16.mxu0 0
      %891 = vmatpush1.bf16.xpose.msra.mxu0 %v884
      %892 = vmatprep.subr.bf16.mxu0 0
      %893 = vmatpush1.bf16.xpose.msra.mxu0 %v881
      %894 = vmatprep.subr.bf16.mxu0 0
      %895 = vmatpush1.bf16.xpose.msra.mxu0 %v878
      %896 = vmatprep.subr.bf16.mxu0 0
      %897 = vmatpush1.bf16.xpose.msra.mxu0 %v875
      %898 = vmatprep.subr.bf16.mxu0 0
      %899 = vmatpush1.bf16.xpose.msra.mxu0 %v872
      %900 = vmatprep.subr.bf16.mxu0 0
      %901 = vmatpush1.bf16.xpose.msra.mxu0 %v869
      %902 = vmatprep.subr.bf16.mxu0 0
      %903 = vmatpush2.bf16.xpose.msra.mxu0 0
      %904 = vmatprep.subr.bf16.mxu0 0
      %905 = vmatpush2.bf16.xpose.msra.mxu0 0
      %906 = vmatprep.subr.bf16.mxu0 0
      %907 = vmatpush2.bf16.xpose.msra.mxu0 0
      %908 = vmatprep.subr.bf16.mxu0 0
      %909 = vmatpush2.bf16.xpose.msra.mxu0 0
      %910 = vmatprep.subr.bf16.mxu0 0
      %911 = vmatpush2.bf16.xpose.msra.mxu0 0
      %912 = vmatprep.subr.bf16.mxu0 0
      %913 = vmatpush2.bf16.xpose.msra.mxu0 0
      %914 = vmatprep.subr.bf16.mxu0 0
      %915 = vmatpush2.bf16.xpose.msra.mxu0 0
      %916 = vmatprep.subr.bf16.mxu0 0
      %917 = vmatpush2.bf16.xpose.msra.mxu0 0
      %918 = vmatprep.mubr.bf16.mxu0 0
      %919 = vmatmul.mubr.bf16.gmra.mxu0 %v863
      %v920 = vpop.f32.mrf.mxu0
      %v921 = vadd.f32 0.0, %v920
      %v922 = vpop.f32.mrf.mxu0
      %v923 = vpop.f32.mrf.mxu0
      %v924 = vadd.f32 0.0, %v923
      %v925 = vpop.f32.mrf.mxu0
      %926 = vmatprep.mubr.bf16.mxu0 0
      %927 = vmatmul.mubr.bf16.gmra.mxu0 %v866
      %v928 = vpop.f32.mrf.mxu0
      %v929 = vadd.f32 0.0, %v928
      %v930 = vpop.f32.mrf.mxu0
      %v931 = vpop.f32.mrf.mxu0
      %v932 = vadd.f32 0.0, %v931
      %v933 = vpop.f32.mrf.mxu0
      %934 = vdwg.mxu0
      %v935 = vsel %vm703, %v921, -1e+30
      %v936 = vsel %vm703, %v924, -1e+30
      %v937 = vsel %vm703, %v929, -1e+30
      %v938 = vsel %vm703, %v932, -1e+30
      %v939 = vsel %vm708, %v935, -inf
      %940 = vmax.xlane.f32.xlu0 %v939
      %v941 = vpop.xlane.xlu0 %940
      %v942 = vsel %vm708, %v936, -inf
      %943 = vmax.xlane.f32.xlu0 %v942
      %v944 = vpop.xlane.xlu0 %943
      %v945 = vsel %vm708, %v937, -inf
      %946 = vmax.xlane.f32.xlu0 %v945
      %v947 = vpop.xlane.xlu0 %946
      %v948 = vsel %vm708, %v938, -inf
      %949 = vmax.xlane.f32.xlu0 %v948
      %v950 = vpop.xlane.xlu0 %949
      %v951 = vsub.f32 %v935, %v941
      %v952 = vsub.f32 %v936, %v944
      %v953 = vsub.f32 %v937, %v947
      %v954 = vsub.f32 %v938, %v950
      %v955 = vmul.f32 %v951, 1.442695
      %v956 = vpow.pop %v955
      %v957 = vmul.f32 %v952, 1.442695
      %v958 = vpow.pop %v957
      %v959 = vmul.f32 %v953, 1.442695
      %v960 = vpow.pop %v959
      %v961 = vmul.f32 %v954, 1.442695
      %v962 = vpow.pop %v961
      %v963 = vsel %vm708, %v956, 0.0
      %964 = vadd.xlane.f32.xlu0 %v963
      %v965 = vpop.xlane.xlu0 %964
      %v966 = vsel %vm708, %v958, 0.0
      %967 = vadd.xlane.f32.xlu0 %v966
      %v968 = vpop.xlane.xlu0 %967
      %v969 = vsel %vm708, %v960, 0.0
      %970 = vadd.xlane.f32.xlu0 %v969
      %v971 = vpop.xlane.xlu0 %970
      %v972 = vsel %vm708, %v962, 0.0
      %973 = vadd.xlane.f32.xlu0 %v972
      %v974 = vpop.xlane.xlu0 %973
      %v975 = vpack.c.bf16 %v958, %v956
      %v976 = vpack.c.bf16 %v962, %v960
      %977 = vrot.lane.b32.xlu0 %v771, 124
      %v978 = vpop.permute.xlu0 %977
      %979 = vrot.lane.b32.xlu0 %v772, 124
      %v980 = vpop.permute.xlu0 %979
      %981 = vrot.lane.b32.xlu0 %v773, 124
      %v982 = vpop.permute.xlu0 %981
      %983 = vrot.lane.b32.xlu0 %v774, 124
      %v984 = vpop.permute.xlu0 %983
      %985 = vrot.lane.b32.xlu0 %v775, 124
      %v986 = vpop.permute.xlu0 %985
      %987 = vrot.lane.b32.xlu0 %v776, 124
      %v988 = vpop.permute.xlu0 %987
      %v996 = vsel %vm708, %v975, 0
      %v999 = vsel %vm708, %v976, 0
      %1001 = vmatprep.subr.bf16.mxu0 0
      %1002 = vmatpush1.bf16.msra.mxu0 0
      %1003 = vmatprep.subr.bf16.mxu0 0
      %1004 = vmatpush1.bf16.msra.mxu0 0
      %1005 = vmatprep.subr.bf16.mxu0 0
      %1006 = vmatpush1.bf16.msra.mxu0 %v988
      %1007 = vmatprep.subr.bf16.mxu0 0
      %1008 = vmatpush1.bf16.msra.mxu0 %v986
      %1009 = vmatprep.subr.bf16.mxu0 0
      %1010 = vmatpush1.bf16.msra.mxu0 %v984
      %1011 = vmatprep.subr.bf16.mxu0 0
      %1012 = vmatpush1.bf16.msra.mxu0 %v982
      %1013 = vmatprep.subr.bf16.mxu0 0
      %1014 = vmatpush1.bf16.msra.mxu0 %v980
      %1015 = vmatprep.subr.bf16.mxu0 0
      %1016 = vmatpush1.bf16.msra.mxu0 %v978
      %1017 = vmatprep.subr.bf16.mxu0 0
      %1018 = vmatpush2.bf16.msra.mxu0 0
      %1019 = vmatprep.subr.bf16.mxu0 0
      %1020 = vmatpush2.bf16.msra.mxu0 0
      %1021 = vmatprep.subr.bf16.mxu0 0
      %1022 = vmatpush2.bf16.msra.mxu0 0
      %1023 = vmatprep.subr.bf16.mxu0 0
      %1024 = vmatpush2.bf16.msra.mxu0 0
      %1025 = vmatprep.subr.bf16.mxu0 0
      %1026 = vmatpush2.bf16.msra.mxu0 0
      %1027 = vmatprep.subr.bf16.mxu0 0
      %1028 = vmatpush2.bf16.msra.mxu0 0
      %1029 = vmatprep.subr.bf16.mxu0 0
      %1030 = vmatpush2.bf16.msra.mxu0 0
      %1031 = vmatprep.subr.bf16.mxu0 0
      %1032 = vmatpush2.bf16.msra.mxu0 0
      %1033 = vmatprep.mubr.bf16.mxu0 0
      %1034 = vmatmul.mubr.bf16.gmra.mxu0 %v996
      %v1035 = vpop.f32.mrf.mxu0
      %v1036 = vadd.f32 0.0, %v1035
      %v1037 = vpop.f32.mrf.mxu0
      %v1038 = vpop.f32.mrf.mxu0
      %v1039 = vadd.f32 0.0, %v1038
      %v1040 = vpop.f32.mrf.mxu0
      %1041 = vmatprep.mubr.bf16.mxu0 0
      %1042 = vmatmul.mubr.bf16.gmra.mxu0 %v999
      %v1043 = vpop.f32.mrf.mxu0
      %v1044 = vadd.f32 0.0, %v1043
      %v1045 = vpop.f32.mrf.mxu0
      %v1046 = vpop.f32.mrf.mxu0
      %v1047 = vadd.f32 0.0, %v1046
      %v1048 = vpop.f32.mrf.mxu0
      %1049 = vdwg.mxu0
      %v1050 = vrcp.pop %v965
      %v1051 = vrcp.pop %v968
      %v1052 = vrcp.pop %v971
      %v1053 = vrcp.pop %v974
      %v1054 = vmul.f32 %v1036, %v1050
      %v1055 = vmul.f32 %v1039, %v1051
      %v1056 = vmul.f32 %v1044, %v1052
      %v1057 = vmul.f32 %v1047, %v1053
      %1058 = vrot.lane.b32.xlu0 %v596, 120
      %v1059 = vpop.permute.xlu0 %1058
      %1060 = vrot.lane.b32.xlu0 %v597, 120
      %v1061 = vpop.permute.xlu0 %1060
      %1062 = vrot.lane.b32.xlu0 %v622, 120
      %v1063 = vpop.permute.xlu0 %1062
      %1064 = vrot.lane.b32.xlu0 %v623, 120
      %v1065 = vpop.permute.xlu0 %1064
      %1066 = vrot.lane.b32.xlu0 %v624, 120
      %v1067 = vpop.permute.xlu0 %1066
      %1068 = vrot.lane.b32.xlu0 %v625, 120
      %v1069 = vpop.permute.xlu0 %1068
      %1070 = vrot.lane.b32.xlu0 %v626, 120
      %v1071 = vpop.permute.xlu0 %1070
      %1072 = vrot.lane.b32.xlu0 %v627, 120
      %v1073 = vpop.permute.xlu0 %1072
      %v1075 = vsel %vm628, %v1059, 0
      %v1078 = vsel %vm628, %v1061, 0
      %v1081 = vsel %vm628, %v1063, 0
      %v1084 = vsel %vm628, %v1065, 0
      %v1087 = vsel %vm628, %v1067, 0
      %v1090 = vsel %vm628, %v1069, 0
      %v1093 = vsel %vm628, %v1071, 0
      %v1096 = vsel %vm628, %v1073, 0
      %1098 = vmatprep.subr.bf16.mxu0 0
      %1099 = vmatpush1.bf16.xpose.msra.mxu0 0
      %1100 = vmatprep.subr.bf16.mxu0 0
      %1101 = vmatpush1.bf16.xpose.msra.mxu0 0
      %1102 = vmatprep.subr.bf16.mxu0 0
      %1103 = vmatpush1.bf16.xpose.msra.mxu0 %v1096
      %1104 = vmatprep.subr.bf16.mxu0 0
      %1105 = vmatpush1.bf16.xpose.msra.mxu0 %v1093
      %1106 = vmatprep.subr.bf16.mxu0 0
      %1107 = vmatpush1.bf16.xpose.msra.mxu0 %v1090
      %1108 = vmatprep.subr.bf16.mxu0 0
      %1109 = vmatpush1.bf16.xpose.msra.mxu0 %v1087
      %1110 = vmatprep.subr.bf16.mxu0 0
      %1111 = vmatpush1.bf16.xpose.msra.mxu0 %v1084
      %1112 = vmatprep.subr.bf16.mxu0 0
      %1113 = vmatpush1.bf16.xpose.msra.mxu0 %v1081
      %1114 = vmatprep.subr.bf16.mxu0 0
      %1115 = vmatpush2.bf16.xpose.msra.mxu0 0
      %1116 = vmatprep.subr.bf16.mxu0 0
      %1117 = vmatpush2.bf16.xpose.msra.mxu0 0
      %1118 = vmatprep.subr.bf16.mxu0 0
      %1119 = vmatpush2.bf16.xpose.msra.mxu0 0
      %1120 = vmatprep.subr.bf16.mxu0 0
      %1121 = vmatpush2.bf16.xpose.msra.mxu0 0
      %1122 = vmatprep.subr.bf16.mxu0 0
      %1123 = vmatpush2.bf16.xpose.msra.mxu0 0
      %1124 = vmatprep.subr.bf16.mxu0 0
      %1125 = vmatpush2.bf16.xpose.msra.mxu0 0
      %1126 = vmatprep.subr.bf16.mxu0 0
      %1127 = vmatpush2.bf16.xpose.msra.mxu0 0
      %1128 = vmatprep.subr.bf16.mxu0 0
      %1129 = vmatpush2.bf16.xpose.msra.mxu0 0
      %1130 = vmatprep.mubr.bf16.mxu0 0
      %1131 = vmatmul.mubr.bf16.gmra.mxu0 %v1075
      %v1132 = vpop.f32.mrf.mxu0
      %v1133 = vadd.f32 0.0, %v1132
      %v1134 = vpop.f32.mrf.mxu0
      %v1135 = vpop.f32.mrf.mxu0
      %v1136 = vadd.f32 0.0, %v1135
      %v1137 = vpop.f32.mrf.mxu0
      %1138 = vmatprep.mubr.bf16.mxu0 0
      %1139 = vmatmul.mubr.bf16.gmra.mxu0 %v1078
      %v1140 = vpop.f32.mrf.mxu0
      %v1141 = vadd.f32 0.0, %v1140
      %v1142 = vpop.f32.mrf.mxu0
      %v1143 = vpop.f32.mrf.mxu0
      %v1144 = vadd.f32 0.0, %v1143
      %v1145 = vpop.f32.mrf.mxu0
      %1146 = vdwg.mxu0
      %v1147 = vsel %vm703, %v1133, -1e+30
      %v1148 = vsel %vm703, %v1136, -1e+30
      %v1149 = vsel %vm703, %v1141, -1e+30
      %v1150 = vsel %vm703, %v1144, -1e+30
      %v1151 = vsel %vm708, %v1147, -inf
      %1152 = vmax.xlane.f32.xlu0 %v1151
      %v1153 = vpop.xlane.xlu0 %1152
      %v1154 = vsel %vm708, %v1148, -inf
      %1155 = vmax.xlane.f32.xlu0 %v1154
      %v1156 = vpop.xlane.xlu0 %1155
      %v1157 = vsel %vm708, %v1149, -inf
      %1158 = vmax.xlane.f32.xlu0 %v1157
      %v1159 = vpop.xlane.xlu0 %1158
      %v1160 = vsel %vm708, %v1150, -inf
      %1161 = vmax.xlane.f32.xlu0 %v1160
      %v1162 = vpop.xlane.xlu0 %1161
      %v1163 = vsub.f32 %v1147, %v1153
      %v1164 = vsub.f32 %v1148, %v1156
      %v1165 = vsub.f32 %v1149, %v1159
      %v1166 = vsub.f32 %v1150, %v1162
      %v1167 = vmul.f32 %v1163, 1.442695
      %v1168 = vpow.pop %v1167
      %v1169 = vmul.f32 %v1164, 1.442695
      %v1170 = vpow.pop %v1169
      %v1171 = vmul.f32 %v1165, 1.442695
      %v1172 = vpow.pop %v1171
      %v1173 = vmul.f32 %v1166, 1.442695
      %v1174 = vpow.pop %v1173
      %v1175 = vsel %vm708, %v1168, 0.0
      %1176 = vadd.xlane.f32.xlu0 %v1175
      %v1177 = vpop.xlane.xlu0 %1176
      %v1178 = vsel %vm708, %v1170, 0.0
      %1179 = vadd.xlane.f32.xlu0 %v1178
      %v1180 = vpop.xlane.xlu0 %1179
      %v1181 = vsel %vm708, %v1172, 0.0
      %1182 = vadd.xlane.f32.xlu0 %v1181
      %v1183 = vpop.xlane.xlu0 %1182
      %v1184 = vsel %vm708, %v1174, 0.0
      %1185 = vadd.xlane.f32.xlu0 %v1184
      %v1186 = vpop.xlane.xlu0 %1185
      %v1187 = vpack.c.bf16 %v1170, %v1168
      %v1188 = vpack.c.bf16 %v1174, %v1172
      %1189 = vrot.lane.b32.xlu0 %v771, 120
      %v1190 = vpop.permute.xlu0 %1189
      %1191 = vrot.lane.b32.xlu0 %v772, 120
      %v1192 = vpop.permute.xlu0 %1191
      %1193 = vrot.lane.b32.xlu0 %v773, 120
      %v1194 = vpop.permute.xlu0 %1193
      %1195 = vrot.lane.b32.xlu0 %v774, 120
      %v1196 = vpop.permute.xlu0 %1195
      %1197 = vrot.lane.b32.xlu0 %v775, 120
      %v1198 = vpop.permute.xlu0 %1197
      %1199 = vrot.lane.b32.xlu0 %v776, 120
      %v1200 = vpop.permute.xlu0 %1199
      %v1208 = vsel %vm708, %v1187, 0
      %v1211 = vsel %vm708, %v1188, 0
      %1213 = vmatprep.subr.bf16.mxu0 0
      %1214 = vmatpush1.bf16.msra.mxu0 0
      %1215 = vmatprep.subr.bf16.mxu0 0
      %1216 = vmatpush1.bf16.msra.mxu0 0
      %1217 = vmatprep.subr.bf16.mxu0 0
      %1218 = vmatpush1.bf16.msra.mxu0 %v1200
      %1219 = vmatprep.subr.bf16.mxu0 0
      %1220 = vmatpush1.bf16.msra.mxu0 %v1198
      %1221 = vmatprep.subr.bf16.mxu0 0
      %1222 = vmatpush1.bf16.msra.mxu0 %v1196
      %1223 = vmatprep.subr.bf16.mxu0 0
      %1224 = vmatpush1.bf16.msra.mxu0 %v1194
      %1225 = vmatprep.subr.bf16.mxu0 0
      %1226 = vmatpush1.bf16.msra.mxu0 %v1192
      %1227 = vmatprep.subr.bf16.mxu0 0
      %1228 = vmatpush1.bf16.msra.mxu0 %v1190
      %1229 = vmatprep.subr.bf16.mxu0 0
      %1230 = vmatpush2.bf16.msra.mxu0 0
      %1231 = vmatprep.subr.bf16.mxu0 0
      %1232 = vmatpush2.bf16.msra.mxu0 0
      %1233 = vmatprep.subr.bf16.mxu0 0
      %1234 = vmatpush2.bf16.msra.mxu0 0
      %1235 = vmatprep.subr.bf16.mxu0 0
      %1236 = vmatpush2.bf16.msra.mxu0 0
      %1237 = vmatprep.subr.bf16.mxu0 0
      %1238 = vmatpush2.bf16.msra.mxu0 0
      %1239 = vmatprep.subr.bf16.mxu0 0
      %1240 = vmatpush2.bf16.msra.mxu0 0
      %1241 = vmatprep.subr.bf16.mxu0 0
      %1242 = vmatpush2.bf16.msra.mxu0 0
      %1243 = vmatprep.subr.bf16.mxu0 0
      %1244 = vmatpush2.bf16.msra.mxu0 0
      %1245 = vmatprep.mubr.bf16.mxu0 0
      %1246 = vmatmul.mubr.bf16.gmra.mxu0 %v1208
      %v1247 = vpop.f32.mrf.mxu0
      %v1248 = vadd.f32 0.0, %v1247
      %v1249 = vpop.f32.mrf.mxu0
      %v1250 = vpop.f32.mrf.mxu0
      %v1251 = vadd.f32 0.0, %v1250
      %v1252 = vpop.f32.mrf.mxu0
      %1253 = vmatprep.mubr.bf16.mxu0 0
      %1254 = vmatmul.mubr.bf16.gmra.mxu0 %v1211
      %v1255 = vpop.f32.mrf.mxu0
      %v1256 = vadd.f32 0.0, %v1255
      %v1257 = vpop.f32.mrf.mxu0
      %v1258 = vpop.f32.mrf.mxu0
      %v1259 = vadd.f32 0.0, %v1258
      %v1260 = vpop.f32.mrf.mxu0
      %1261 = vdwg.mxu0
      %v1262 = vrcp.pop %v1177
      %v1263 = vrcp.pop %v1180
      %v1264 = vrcp.pop %v1183
      %v1265 = vrcp.pop %v1186
      %v1266 = vmul.f32 %v1248, %v1262
      %v1267 = vmul.f32 %v1251, %v1263
      %v1268 = vmul.f32 %v1256, %v1264
      %v1269 = vmul.f32 %v1259, %v1265
      %1270 = vrot.lane.b32.xlu0 %v596, 116
      %v1271 = vpop.permute.xlu0 %1270
      %1272 = vrot.lane.b32.xlu0 %v597, 116
      %v1273 = vpop.permute.xlu0 %1272
      %1274 = vrot.lane.b32.xlu0 %v622, 116
      %v1275 = vpop.permute.xlu0 %1274
      %1276 = vrot.lane.b32.xlu0 %v623, 116
      %v1277 = vpop.permute.xlu0 %1276
      %1278 = vrot.lane.b32.xlu0 %v624, 116
      %v1279 = vpop.permute.xlu0 %1278
      %1280 = vrot.lane.b32.xlu0 %v625, 116
      %v1281 = vpop.permute.xlu0 %1280
      %1282 = vrot.lane.b32.xlu0 %v626, 116
      %v1283 = vpop.permute.xlu0 %1282
      %1284 = vrot.lane.b32.xlu0 %v627, 116
      %v1285 = vpop.permute.xlu0 %1284
      %v1287 = vsel %vm628, %v1271, 0
      %v1290 = vsel %vm628, %v1273, 0
      %v1293 = vsel %vm628, %v1275, 0
      %v1296 = vsel %vm628, %v1277, 0
      %v1299 = vsel %vm628, %v1279, 0
      %v1302 = vsel %vm628, %v1281, 0
      %v1305 = vsel %vm628, %v1283, 0
      %v1308 = vsel %vm628, %v1285, 0
      %1310 = vmatprep.subr.bf16.mxu0 0
      %1311 = vmatpush1.bf16.xpose.msra.mxu0 0
      %1312 = vmatprep.subr.bf16.mxu0 0
      %1313 = vmatpush1.bf16.xpose.msra.mxu0 0
      %1314 = vmatprep.subr.bf16.mxu0 0
      %1315 = vmatpush1.bf16.xpose.msra.mxu0 %v1308
      %1316 = vmatprep.subr.bf16.mxu0 0
      %1317 = vmatpush1.bf16.xpose.msra.mxu0 %v1305
      %1318 = vmatprep.subr.bf16.mxu0 0
      %1319 = vmatpush1.bf16.xpose.msra.mxu0 %v1302
      %1320 = vmatprep.subr.bf16.mxu0 0
      %1321 = vmatpush1.bf16.xpose.msra.mxu0 %v1299
      %1322 = vmatprep.subr.bf16.mxu0 0
      %1323 = vmatpush1.bf16.xpose.msra.mxu0 %v1296
      %1324 = vmatprep.subr.bf16.mxu0 0
      %1325 = vmatpush1.bf16.xpose.msra.mxu0 %v1293
      %1326 = vmatprep.subr.bf16.mxu0 0
      %1327 = vmatpush2.bf16.xpose.msra.mxu0 0
      %1328 = vmatprep.subr.bf16.mxu0 0
      %1329 = vmatpush2.bf16.xpose.msra.mxu0 0
      %1330 = vmatprep.subr.bf16.mxu0 0
      %1331 = vmatpush2.bf16.xpose.msra.mxu0 0
      %1332 = vmatprep.subr.bf16.mxu0 0
      %1333 = vmatpush2.bf16.xpose.msra.mxu0 0
      %1334 = vmatprep.subr.bf16.mxu0 0
      %1335 = vmatpush2.bf16.xpose.msra.mxu0 0
      %1336 = vmatprep.subr.bf16.mxu0 0
      %1337 = vmatpush2.bf16.xpose.msra.mxu0 0
      %1338 = vmatprep.subr.bf16.mxu0 0
      %1339 = vmatpush2.bf16.xpose.msra.mxu0 0
      %1340 = vmatprep.subr.bf16.mxu0 0
      %1341 = vmatpush2.bf16.xpose.msra.mxu0 0
      %1342 = vmatprep.mubr.bf16.mxu0 0
      %1343 = vmatmul.mubr.bf16.gmra.mxu0 %v1287
      %v1344 = vpop.f32.mrf.mxu0
      %v1345 = vadd.f32 0.0, %v1344
      %v1346 = vpop.f32.mrf.mxu0
      %v1347 = vpop.f32.mrf.mxu0
      %v1348 = vadd.f32 0.0, %v1347
      %v1349 = vpop.f32.mrf.mxu0
      %1350 = vmatprep.mubr.bf16.mxu0 0
      %1351 = vmatmul.mubr.bf16.gmra.mxu0 %v1290
      %v1352 = vpop.f32.mrf.mxu0
      %v1353 = vadd.f32 0.0, %v1352
      %v1354 = vpop.f32.mrf.mxu0
      %v1355 = vpop.f32.mrf.mxu0
      %v1356 = vadd.f32 0.0, %v1355
      %v1357 = vpop.f32.mrf.mxu0
      %1358 = vdwg.mxu0
      %v1359 = vsel %vm703, %v1345, -1e+30
      %v1360 = vsel %vm703, %v1348, -1e+30
      %v1361 = vsel %vm703, %v1353, -1e+30
      %v1362 = vsel %vm703, %v1356, -1e+30
      %v1363 = vsel %vm708, %v1359, -inf
      %1364 = vmax.xlane.f32.xlu0 %v1363
      %v1365 = vpop.xlane.xlu0 %1364
      %v1366 = vsel %vm708, %v1360, -inf
      %1367 = vmax.xlane.f32.xlu0 %v1366
      %v1368 = vpop.xlane.xlu0 %1367
      %v1369 = vsel %vm708, %v1361, -inf
      %1370 = vmax.xlane.f32.xlu0 %v1369
      %v1371 = vpop.xlane.xlu0 %1370
      %v1372 = vsel %vm708, %v1362, -inf
      %1373 = vmax.xlane.f32.xlu0 %v1372
      %v1374 = vpop.xlane.xlu0 %1373
      %v1375 = vsub.f32 %v1359, %v1365
      %v1376 = vsub.f32 %v1360, %v1368
      %v1377 = vsub.f32 %v1361, %v1371
      %v1378 = vsub.f32 %v1362, %v1374
      %v1379 = vmul.f32 %v1375, 1.442695
      %v1380 = vpow.pop %v1379
      %v1381 = vmul.f32 %v1376, 1.442695
      %v1382 = vpow.pop %v1381
      %v1383 = vmul.f32 %v1377, 1.442695
      %v1384 = vpow.pop %v1383
      %v1385 = vmul.f32 %v1378, 1.442695
      %v1386 = vpow.pop %v1385
      %v1387 = vsel %vm708, %v1380, 0.0
      %1388 = vadd.xlane.f32.xlu0 %v1387
      %v1389 = vpop.xlane.xlu0 %1388
      %v1390 = vsel %vm708, %v1382, 0.0
      %1391 = vadd.xlane.f32.xlu0 %v1390
      %v1392 = vpop.xlane.xlu0 %1391
      %v1393 = vsel %vm708, %v1384, 0.0
      %1394 = vadd.xlane.f32.xlu0 %v1393
      %v1395 = vpop.xlane.xlu0 %1394
      %v1396 = vsel %vm708, %v1386, 0.0
      %1397 = vadd.xlane.f32.xlu0 %v1396
      %v1398 = vpop.xlane.xlu0 %1397
      %v1399 = vpack.c.bf16 %v1382, %v1380
      %v1400 = vpack.c.bf16 %v1386, %v1384
      %1401 = vrot.lane.b32.xlu0 %v771, 116
      %v1402 = vpop.permute.xlu0 %1401
      %1403 = vrot.lane.b32.xlu0 %v772, 116
      %v1404 = vpop.permute.xlu0 %1403
      %1405 = vrot.lane.b32.xlu0 %v773, 116
      %v1406 = vpop.permute.xlu0 %1405
      %1407 = vrot.lane.b32.xlu0 %v774, 116
      %v1408 = vpop.permute.xlu0 %1407
      %1409 = vrot.lane.b32.xlu0 %v775, 116
      %v1410 = vpop.permute.xlu0 %1409
      %1411 = vrot.lane.b32.xlu0 %v776, 116
      %v1412 = vpop.permute.xlu0 %1411
      %v1420 = vsel %vm708, %v1399, 0
      %v1423 = vsel %vm708, %v1400, 0
      %1425 = vmatprep.subr.bf16.mxu0 0
      %1426 = vmatpush1.bf16.msra.mxu0 0
      %1427 = vmatprep.subr.bf16.mxu0 0
      %1428 = vmatpush1.bf16.msra.mxu0 0
      %1429 = vmatprep.subr.bf16.mxu0 0
      %1430 = vmatpush1.bf16.msra.mxu0 %v1412
      %1431 = vmatprep.subr.bf16.mxu0 0
      %1432 = vmatpush1.bf16.msra.mxu0 %v1410
      %1433 = vmatprep.subr.bf16.mxu0 0
      %1434 = vmatpush1.bf16.msra.mxu0 %v1408
      %1435 = vmatprep.subr.bf16.mxu0 0
      %1436 = vmatpush1.bf16.msra.mxu0 %v1406
      %1437 = vmatprep.subr.bf16.mxu0 0
      %1438 = vmatpush1.bf16.msra.mxu0 %v1404
      %1439 = vmatprep.subr.bf16.mxu0 0
      %1440 = vmatpush1.bf16.msra.mxu0 %v1402
      %1441 = vmatprep.subr.bf16.mxu0 0
      %1442 = vmatpush2.bf16.msra.mxu0 0
      %1443 = vmatprep.subr.bf16.mxu0 0
      %1444 = vmatpush2.bf16.msra.mxu0 0
      %1445 = vmatprep.subr.bf16.mxu0 0
      %1446 = vmatpush2.bf16.msra.mxu0 0
      %1447 = vmatprep.subr.bf16.mxu0 0
      %1448 = vmatpush2.bf16.msra.mxu0 0
      %1449 = vmatprep.subr.bf16.mxu0 0
      %1450 = vmatpush2.bf16.msra.mxu0 0
      %1451 = vmatprep.subr.bf16.mxu0 0
      %1452 = vmatpush2.bf16.msra.mxu0 0
      %1453 = vmatprep.subr.bf16.mxu0 0
      %1454 = vmatpush2.bf16.msra.mxu0 0
      %1455 = vmatprep.subr.bf16.mxu0 0
      %1456 = vmatpush2.bf16.msra.mxu0 0
      %1457 = vmatprep.mubr.bf16.mxu0 0
      %1458 = vmatmul.mubr.bf16.gmra.mxu0 %v1420
      %v1459 = vpop.f32.mrf.mxu0
      %v1460 = vadd.f32 0.0, %v1459
      %v1461 = vpop.f32.mrf.mxu0
      %v1462 = vpop.f32.mrf.mxu0
      %v1463 = vadd.f32 0.0, %v1462
      %v1464 = vpop.f32.mrf.mxu0
      %1465 = vmatprep.mubr.bf16.mxu0 0
      %1466 = vmatmul.mubr.bf16.gmra.mxu0 %v1423
      %v1467 = vpop.f32.mrf.mxu0
      %v1468 = vadd.f32 0.0, %v1467
      %v1469 = vpop.f32.mrf.mxu0
      %v1470 = vpop.f32.mrf.mxu0
      %v1471 = vadd.f32 0.0, %v1470
      %v1472 = vpop.f32.mrf.mxu0
      %1473 = vdwg.mxu0
      %v1474 = vrcp.pop %v1389
      %v1475 = vrcp.pop %v1392
      %v1476 = vrcp.pop %v1395
      %v1477 = vrcp.pop %v1398
      %v1478 = vmul.f32 %v1460, %v1474
      %v1479 = vmul.f32 %v1463, %v1475
      %v1480 = vmul.f32 %v1468, %v1476
      %v1481 = vmul.f32 %v1471, %v1477
      %1482 = vrot.lane.b32.xlu0 %v596, 112
      %v1483 = vpop.permute.xlu0 %1482
      %1484 = vrot.lane.b32.xlu0 %v597, 112
      %v1485 = vpop.permute.xlu0 %1484
      %1486 = vrot.lane.b32.xlu0 %v622, 112
      %v1487 = vpop.permute.xlu0 %1486
      %1488 = vrot.lane.b32.xlu0 %v623, 112
      %v1489 = vpop.permute.xlu0 %1488
      %1490 = vrot.lane.b32.xlu0 %v624, 112
      %v1491 = vpop.permute.xlu0 %1490
      %1492 = vrot.lane.b32.xlu0 %v625, 112
      %v1493 = vpop.permute.xlu0 %1492
      %1494 = vrot.lane.b32.xlu0 %v626, 112
      %v1495 = vpop.permute.xlu0 %1494
      %1496 = vrot.lane.b32.xlu0 %v627, 112
      %v1497 = vpop.permute.xlu0 %1496
      %v1499 = vsel %vm628, %v1483, 0
      %v1502 = vsel %vm628, %v1485, 0
      %v1505 = vsel %vm628, %v1487, 0
      %v1508 = vsel %vm628, %v1489, 0
      %v1511 = vsel %vm628, %v1491, 0
      %v1514 = vsel %vm628, %v1493, 0
      %v1517 = vsel %vm628, %v1495, 0
      %v1520 = vsel %vm628, %v1497, 0
      %1522 = vmatprep.subr.bf16.mxu0 0
      %1523 = vmatpush1.bf16.xpose.msra.mxu0 0
      %1524 = vmatprep.subr.bf16.mxu0 0
      %1525 = vmatpush1.bf16.xpose.msra.mxu0 0
      %1526 = vmatprep.subr.bf16.mxu0 0
      %1527 = vmatpush1.bf16.xpose.msra.mxu0 %v1520
      %1528 = vmatprep.subr.bf16.mxu0 0
      %1529 = vmatpush1.bf16.xpose.msra.mxu0 %v1517
      %1530 = vmatprep.subr.bf16.mxu0 0
      %1531 = vmatpush1.bf16.xpose.msra.mxu0 %v1514
      %1532 = vmatprep.subr.bf16.mxu0 0
      %1533 = vmatpush1.bf16.xpose.msra.mxu0 %v1511
      %1534 = vmatprep.subr.bf16.mxu0 0
      %1535 = vmatpush1.bf16.xpose.msra.mxu0 %v1508
      %1536 = vmatprep.subr.bf16.mxu0 0
      %1537 = vmatpush1.bf16.xpose.msra.mxu0 %v1505
      %1538 = vmatprep.subr.bf16.mxu0 0
      %1539 = vmatpush2.bf16.xpose.msra.mxu0 0
      %1540 = vmatprep.subr.bf16.mxu0 0
      %1541 = vmatpush2.bf16.xpose.msra.mxu0 0
      %1542 = vmatprep.subr.bf16.mxu0 0
      %1543 = vmatpush2.bf16.xpose.msra.mxu0 0
      %1544 = vmatprep.subr.bf16.mxu0 0
      %1545 = vmatpush2.bf16.xpose.msra.mxu0 0
      %1546 = vmatprep.subr.bf16.mxu0 0
      %1547 = vmatpush2.bf16.xpose.msra.mxu0 0
      %1548 = vmatprep.subr.bf16.mxu0 0
      %1549 = vmatpush2.bf16.xpose.msra.mxu0 0
      %1550 = vmatprep.subr.bf16.mxu0 0
      %1551 = vmatpush2.bf16.xpose.msra.mxu0 0
      %1552 = vmatprep.subr.bf16.mxu0 0
      %1553 = vmatpush2.bf16.xpose.msra.mxu0 0
      %1554 = vmatprep.mubr.bf16.mxu0 0
      %1555 = vmatmul.mubr.bf16.gmra.mxu0 %v1499
      %v1556 = vpop.f32.mrf.mxu0
      %v1557 = vadd.f32 0.0, %v1556
      %v1558 = vpop.f32.mrf.mxu0
      %v1559 = vpop.f32.mrf.mxu0
      %v1560 = vadd.f32 0.0, %v1559
      %v1561 = vpop.f32.mrf.mxu0
      %1562 = vmatprep.mubr.bf16.mxu0 0
      %1563 = vmatmul.mubr.bf16.gmra.mxu0 %v1502
      %v1564 = vpop.f32.mrf.mxu0
      %v1565 = vadd.f32 0.0, %v1564
      %v1566 = vpop.f32.mrf.mxu0
      %v1567 = vpop.f32.mrf.mxu0
      %v1568 = vadd.f32 0.0, %v1567
      %v1569 = vpop.f32.mrf.mxu0
      %1570 = vdwg.mxu0
      %v1571 = vsel %vm703, %v1557, -1e+30
      %v1572 = vsel %vm703, %v1560, -1e+30
      %v1573 = vsel %vm703, %v1565, -1e+30
      %v1574 = vsel %vm703, %v1568, -1e+30
      %v1575 = vsel %vm708, %v1571, -inf
      %1576 = vmax.xlane.f32.xlu0 %v1575
      %v1577 = vpop.xlane.xlu0 %1576
      %v1578 = vsel %vm708, %v1572, -inf
      %1579 = vmax.xlane.f32.xlu0 %v1578
      %v1580 = vpop.xlane.xlu0 %1579
      %v1581 = vsel %vm708, %v1573, -inf
      %1582 = vmax.xlane.f32.xlu0 %v1581
      %v1583 = vpop.xlane.xlu0 %1582
      %v1584 = vsel %vm708, %v1574, -inf
      %1585 = vmax.xlane.f32.xlu0 %v1584
      %v1586 = vpop.xlane.xlu0 %1585
      %v1587 = vsub.f32 %v1571, %v1577
      %v1588 = vsub.f32 %v1572, %v1580
      %v1589 = vsub.f32 %v1573, %v1583
      %v1590 = vsub.f32 %v1574, %v1586
      %v1591 = vmul.f32 %v1587, 1.442695
      %v1592 = vpow.pop %v1591
      %v1593 = vmul.f32 %v1588, 1.442695
      %v1594 = vpow.pop %v1593
      %v1595 = vmul.f32 %v1589, 1.442695
      %v1596 = vpow.pop %v1595
      %v1597 = vmul.f32 %v1590, 1.442695
      %v1598 = vpow.pop %v1597
      %v1599 = vsel %vm708, %v1592, 0.0
      %1600 = vadd.xlane.f32.xlu0 %v1599
      %v1601 = vpop.xlane.xlu0 %1600
      %v1602 = vsel %vm708, %v1594, 0.0
      %1603 = vadd.xlane.f32.xlu0 %v1602
      %v1604 = vpop.xlane.xlu0 %1603
      %v1605 = vsel %vm708, %v1596, 0.0
      %1606 = vadd.xlane.f32.xlu0 %v1605
      %v1607 = vpop.xlane.xlu0 %1606
      %v1608 = vsel %vm708, %v1598, 0.0
      %1609 = vadd.xlane.f32.xlu0 %v1608
      %v1610 = vpop.xlane.xlu0 %1609
      %v1611 = vpack.c.bf16 %v1594, %v1592
      %v1612 = vpack.c.bf16 %v1598, %v1596
      %1613 = vrot.lane.b32.xlu0 %v771, 112
      %v1614 = vpop.permute.xlu0 %1613
      %1615 = vrot.lane.b32.xlu0 %v772, 112
      %v1616 = vpop.permute.xlu0 %1615
      %1617 = vrot.lane.b32.xlu0 %v773, 112
      %v1618 = vpop.permute.xlu0 %1617
      %1619 = vrot.lane.b32.xlu0 %v774, 112
      %v1620 = vpop.permute.xlu0 %1619
      %1621 = vrot.lane.b32.xlu0 %v775, 112
      %v1622 = vpop.permute.xlu0 %1621
      %1623 = vrot.lane.b32.xlu0 %v776, 112
      %v1624 = vpop.permute.xlu0 %1623
      %v1632 = vsel %vm708, %v1611, 0
      %v1635 = vsel %vm708, %v1612, 0
      %1637 = vmatprep.subr.bf16.mxu0 0
      %1638 = vmatpush1.bf16.msra.mxu0 0
      %1639 = vmatprep.subr.bf16.mxu0 0
      %1640 = vmatpush1.bf16.msra.mxu0 0
      %1641 = vmatprep.subr.bf16.mxu0 0
      %1642 = vmatpush1.bf16.msra.mxu0 %v1624
      %1643 = vmatprep.subr.bf16.mxu0 0
      %1644 = vmatpush1.bf16.msra.mxu0 %v1622
      %1645 = vmatprep.subr.bf16.mxu0 0
      %1646 = vmatpush1.bf16.msra.mxu0 %v1620
      %1647 = vmatprep.subr.bf16.mxu0 0
      %1648 = vmatpush1.bf16.msra.mxu0 %v1618
      %1649 = vmatprep.subr.bf16.mxu0 0
      %1650 = vmatpush1.bf16.msra.mxu0 %v1616
      %1651 = vmatprep.subr.bf16.mxu0 0
      %1652 = vmatpush1.bf16.msra.mxu0 %v1614
      %1653 = vmatprep.subr.bf16.mxu0 0
      %1654 = vmatpush2.bf16.msra.mxu0 0
      %1655 = vmatprep.subr.bf16.mxu0 0
      %1656 = vmatpush2.bf16.msra.mxu0 0
      %1657 = vmatprep.subr.bf16.mxu0 0
      %1658 = vmatpush2.bf16.msra.mxu0 0
      %1659 = vmatprep.subr.bf16.mxu0 0
      %1660 = vmatpush2.bf16.msra.mxu0 0
      %1661 = vmatprep.subr.bf16.mxu0 0
      %1662 = vmatpush2.bf16.msra.mxu0 0
      %1663 = vmatprep.subr.bf16.mxu0 0
      %1664 = vmatpush2.bf16.msra.mxu0 0
      %1665 = vmatprep.subr.bf16.mxu0 0
      %1666 = vmatpush2.bf16.msra.mxu0 0
      %1667 = vmatprep.subr.bf16.mxu0 0
      %1668 = vmatpush2.bf16.msra.mxu0 0
      %1669 = vmatprep.mubr.bf16.mxu0 0
      %1670 = vmatmul.mubr.bf16.gmra.mxu0 %v1632
      %v1671 = vpop.f32.mrf.mxu0
      %v1672 = vadd.f32 0.0, %v1671
      %v1673 = vpop.f32.mrf.mxu0
      %v1674 = vpop.f32.mrf.mxu0
      %v1675 = vadd.f32 0.0, %v1674
      %v1676 = vpop.f32.mrf.mxu0
      %1677 = vmatprep.mubr.bf16.mxu0 0
      %1678 = vmatmul.mubr.bf16.gmra.mxu0 %v1635
      %v1679 = vpop.f32.mrf.mxu0
      %v1680 = vadd.f32 0.0, %v1679
      %v1681 = vpop.f32.mrf.mxu0
      %v1682 = vpop.f32.mrf.mxu0
      %v1683 = vadd.f32 0.0, %v1682
      %v1684 = vpop.f32.mrf.mxu0
      %1685 = vdwg.mxu0
      %v1686 = vrcp.pop %v1601
      %v1687 = vrcp.pop %v1604
      %v1688 = vrcp.pop %v1607
      %v1689 = vrcp.pop %v1610
      %v1690 = vmul.f32 %v1672, %v1686
      %v1691 = vmul.f32 %v1675, %v1687
      %v1692 = vmul.f32 %v1680, %v1688
      %v1693 = vmul.f32 %v1683, %v1689
      %1694 = vrot.lane.b32.xlu0 %v596, 108
      %v1695 = vpop.permute.xlu0 %1694
      %1696 = vrot.lane.b32.xlu0 %v597, 108
      %v1697 = vpop.permute.xlu0 %1696
      %1698 = vrot.lane.b32.xlu0 %v622, 108
      %v1699 = vpop.permute.xlu0 %1698
      %1700 = vrot.lane.b32.xlu0 %v623, 108
      %v1701 = vpop.permute.xlu0 %1700
      %1702 = vrot.lane.b32.xlu0 %v624, 108
      %v1703 = vpop.permute.xlu0 %1702
      %1704 = vrot.lane.b32.xlu0 %v625, 108
      %v1705 = vpop.permute.xlu0 %1704
      %1706 = vrot.lane.b32.xlu0 %v626, 108
      %v1707 = vpop.permute.xlu0 %1706
      %1708 = vrot.lane.b32.xlu0 %v627, 108
      %v1709 = vpop.permute.xlu0 %1708
      %v1711 = vsel %vm628, %v1695, 0
      %v1714 = vsel %vm628, %v1697, 0
      %v1717 = vsel %vm628, %v1699, 0
      %v1720 = vsel %vm628, %v1701, 0
      %v1723 = vsel %vm628, %v1703, 0
      %v1726 = vsel %vm628, %v1705, 0
      %v1729 = vsel %vm628, %v1707, 0
      %v1732 = vsel %vm628, %v1709, 0
      %1734 = vmatprep.subr.bf16.mxu0 0
      %1735 = vmatpush1.bf16.xpose.msra.mxu0 0
      %1736 = vmatprep.subr.bf16.mxu0 0
      %1737 = vmatpush1.bf16.xpose.msra.mxu0 0
      %1738 = vmatprep.subr.bf16.mxu0 0
      %1739 = vmatpush1.bf16.xpose.msra.mxu0 %v1732
      %1740 = vmatprep.subr.bf16.mxu0 0
      %1741 = vmatpush1.bf16.xpose.msra.mxu0 %v1729
      %1742 = vmatprep.subr.bf16.mxu0 0
      %1743 = vmatpush1.bf16.xpose.msra.mxu0 %v1726
      %1744 = vmatprep.subr.bf16.mxu0 0
      %1745 = vmatpush1.bf16.xpose.msra.mxu0 %v1723
      %1746 = vmatprep.subr.bf16.mxu0 0
      %1747 = vmatpush1.bf16.xpose.msra.mxu0 %v1720
      %1748 = vmatprep.subr.bf16.mxu0 0
      %1749 = vmatpush1.bf16.xpose.msra.mxu0 %v1717
      %1750 = vmatprep.subr.bf16.mxu0 0
      %1751 = vmatpush2.bf16.xpose.msra.mxu0 0
      %1752 = vmatprep.subr.bf16.mxu0 0
      %1753 = vmatpush2.bf16.xpose.msra.mxu0 0
      %1754 = vmatprep.subr.bf16.mxu0 0
      %1755 = vmatpush2.bf16.xpose.msra.mxu0 0
      %1756 = vmatprep.subr.bf16.mxu0 0
      %1757 = vmatpush2.bf16.xpose.msra.mxu0 0
      %1758 = vmatprep.subr.bf16.mxu0 0
      %1759 = vmatpush2.bf16.xpose.msra.mxu0 0
      %1760 = vmatprep.subr.bf16.mxu0 0
      %1761 = vmatpush2.bf16.xpose.msra.mxu0 0
      %1762 = vmatprep.subr.bf16.mxu0 0
      %1763 = vmatpush2.bf16.xpose.msra.mxu0 0
      %1764 = vmatprep.subr.bf16.mxu0 0
      %1765 = vmatpush2.bf16.xpose.msra.mxu0 0
      %1766 = vmatprep.mubr.bf16.mxu0 0
      %1767 = vmatmul.mubr.bf16.gmra.mxu0 %v1711
      %v1768 = vpop.f32.mrf.mxu0
      %v1769 = vadd.f32 0.0, %v1768
      %v1770 = vpop.f32.mrf.mxu0
      %v1771 = vpop.f32.mrf.mxu0
      %v1772 = vadd.f32 0.0, %v1771
      %v1773 = vpop.f32.mrf.mxu0
      %1774 = vmatprep.mubr.bf16.mxu0 0
      %1775 = vmatmul.mubr.bf16.gmra.mxu0 %v1714
      %v1776 = vpop.f32.mrf.mxu0
      %v1777 = vadd.f32 0.0, %v1776
      %v1778 = vpop.f32.mrf.mxu0
      %v1779 = vpop.f32.mrf.mxu0
      %v1780 = vadd.f32 0.0, %v1779
      %v1781 = vpop.f32.mrf.mxu0
      %1782 = vdwg.mxu0
      %v1783 = vsel %vm703, %v1769, -1e+30
      %v1784 = vsel %vm703, %v1772, -1e+30
      %v1785 = vsel %vm703, %v1777, -1e+30
      %v1786 = vsel %vm703, %v1780, -1e+30
      %v1787 = vsel %vm708, %v1783, -inf
      %1788 = vmax.xlane.f32.xlu0 %v1787
      %v1789 = vpop.xlane.xlu0 %1788
      %v1790 = vsel %vm708, %v1784, -inf
      %1791 = vmax.xlane.f32.xlu0 %v1790
      %v1792 = vpop.xlane.xlu0 %1791
      %v1793 = vsel %vm708, %v1785, -inf
      %1794 = vmax.xlane.f32.xlu0 %v1793
      %v1795 = vpop.xlane.xlu0 %1794
      %v1796 = vsel %vm708, %v1786, -inf
      %1797 = vmax.xlane.f32.xlu0 %v1796
      %v1798 = vpop.xlane.xlu0 %1797
      %v1799 = vsub.f32 %v1783, %v1789
      %v1800 = vsub.f32 %v1784, %v1792
      %v1801 = vsub.f32 %v1785, %v1795
      %v1802 = vsub.f32 %v1786, %v1798
      %v1803 = vmul.f32 %v1799, 1.442695
      %v1804 = vpow.pop %v1803
      %v1805 = vmul.f32 %v1800, 1.442695
      %v1806 = vpow.pop %v1805
      %v1807 = vmul.f32 %v1801, 1.442695
      %v1808 = vpow.pop %v1807
      %v1809 = vmul.f32 %v1802, 1.442695
      %v1810 = vpow.pop %v1809
      %v1811 = vsel %vm708, %v1804, 0.0
      %1812 = vadd.xlane.f32.xlu0 %v1811
      %v1813 = vpop.xlane.xlu0 %1812
      %v1814 = vsel %vm708, %v1806, 0.0
      %1815 = vadd.xlane.f32.xlu0 %v1814
      %v1816 = vpop.xlane.xlu0 %1815
      %v1817 = vsel %vm708, %v1808, 0.0
      %1818 = vadd.xlane.f32.xlu0 %v1817
      %v1819 = vpop.xlane.xlu0 %1818
      %v1820 = vsel %vm708, %v1810, 0.0
      %1821 = vadd.xlane.f32.xlu0 %v1820
      %v1822 = vpop.xlane.xlu0 %1821
      %v1823 = vpack.c.bf16 %v1806, %v1804
      %v1824 = vpack.c.bf16 %v1810, %v1808
      %1825 = vrot.lane.b32.xlu0 %v771, 108
      %v1826 = vpop.permute.xlu0 %1825
      %1827 = vrot.lane.b32.xlu0 %v772, 108
      %v1828 = vpop.permute.xlu0 %1827
      %1829 = vrot.lane.b32.xlu0 %v773, 108
      %v1830 = vpop.permute.xlu0 %1829
      %1831 = vrot.lane.b32.xlu0 %v774, 108
      %v1832 = vpop.permute.xlu0 %1831
      %1833 = vrot.lane.b32.xlu0 %v775, 108
      %v1834 = vpop.permute.xlu0 %1833
      %1835 = vrot.lane.b32.xlu0 %v776, 108
      %v1836 = vpop.permute.xlu0 %1835
      %v1844 = vsel %vm708, %v1823, 0
      %v1847 = vsel %vm708, %v1824, 0
      %1849 = vmatprep.subr.bf16.mxu0 0
      %1850 = vmatpush1.bf16.msra.mxu0 0
      %1851 = vmatprep.subr.bf16.mxu0 0
      %1852 = vmatpush1.bf16.msra.mxu0 0
      %1853 = vmatprep.subr.bf16.mxu0 0
      %1854 = vmatpush1.bf16.msra.mxu0 %v1836
      %1855 = vmatprep.subr.bf16.mxu0 0
      %1856 = vmatpush1.bf16.msra.mxu0 %v1834
      %1857 = vmatprep.subr.bf16.mxu0 0
      %1858 = vmatpush1.bf16.msra.mxu0 %v1832
      %1859 = vmatprep.subr.bf16.mxu0 0
      %1860 = vmatpush1.bf16.msra.mxu0 %v1830
      %1861 = vmatprep.subr.bf16.mxu0 0
      %1862 = vmatpush1.bf16.msra.mxu0 %v1828
      %1863 = vmatprep.subr.bf16.mxu0 0
      %1864 = vmatpush1.bf16.msra.mxu0 %v1826
      %1865 = vmatprep.subr.bf16.mxu0 0
      %1866 = vmatpush2.bf16.msra.mxu0 0
      %1867 = vmatprep.subr.bf16.mxu0 0
      %1868 = vmatpush2.bf16.msra.mxu0 0
      %1869 = vmatprep.subr.bf16.mxu0 0
      %1870 = vmatpush2.bf16.msra.mxu0 0
      %1871 = vmatprep.subr.bf16.mxu0 0
      %1872 = vmatpush2.bf16.msra.mxu0 0
      %1873 = vmatprep.subr.bf16.mxu0 0
      %1874 = vmatpush2.bf16.msra.mxu0 0
      %1875 = vmatprep.subr.bf16.mxu0 0
      %1876 = vmatpush2.bf16.msra.mxu0 0
      %1877 = vmatprep.subr.bf16.mxu0 0
      %1878 = vmatpush2.bf16.msra.mxu0 0
      %1879 = vmatprep.subr.bf16.mxu0 0
      %1880 = vmatpush2.bf16.msra.mxu0 0
      %1881 = vmatprep.mubr.bf16.mxu0 0
      %1882 = vmatmul.mubr.bf16.gmra.mxu0 %v1844
      %v1883 = vpop.f32.mrf.mxu0
      %v1884 = vadd.f32 0.0, %v1883
      %v1885 = vpop.f32.mrf.mxu0
      %v1886 = vpop.f32.mrf.mxu0
      %v1887 = vadd.f32 0.0, %v1886
      %v1888 = vpop.f32.mrf.mxu0
      %1889 = vmatprep.mubr.bf16.mxu0 0
      %1890 = vmatmul.mubr.bf16.gmra.mxu0 %v1847
      %v1891 = vpop.f32.mrf.mxu0
      %v1892 = vadd.f32 0.0, %v1891
      %v1893 = vpop.f32.mrf.mxu0
      %v1894 = vpop.f32.mrf.mxu0
      %v1895 = vadd.f32 0.0, %v1894
      %v1896 = vpop.f32.mrf.mxu0
      %1897 = vdwg.mxu0
      %v1898 = vrcp.pop %v1813
      %v1899 = vrcp.pop %v1816
      %v1900 = vrcp.pop %v1819
      %v1901 = vrcp.pop %v1822
      %v1902 = vmul.f32 %v1884, %v1898
      %v1903 = vmul.f32 %v1887, %v1899
      %v1904 = vmul.f32 %v1892, %v1900
      %v1905 = vmul.f32 %v1895, %v1901
      %1906 = vrot.lane.b32.xlu0 %v596, 104
      %v1907 = vpop.permute.xlu0 %1906
      %1908 = vrot.lane.b32.xlu0 %v597, 104
      %v1909 = vpop.permute.xlu0 %1908
      %1910 = vrot.lane.b32.xlu0 %v622, 104
      %v1911 = vpop.permute.xlu0 %1910
      %1912 = vrot.lane.b32.xlu0 %v623, 104
      %v1913 = vpop.permute.xlu0 %1912
      %1914 = vrot.lane.b32.xlu0 %v624, 104
      %v1915 = vpop.permute.xlu0 %1914
      %1916 = vrot.lane.b32.xlu0 %v625, 104
      %v1917 = vpop.permute.xlu0 %1916
      %1918 = vrot.lane.b32.xlu0 %v626, 104
      %v1919 = vpop.permute.xlu0 %1918
      %1920 = vrot.lane.b32.xlu0 %v627, 104
      %v1921 = vpop.permute.xlu0 %1920
      %v1923 = vsel %vm628, %v1907, 0
      %v1926 = vsel %vm628, %v1909, 0
      %v1929 = vsel %vm628, %v1911, 0
      %v1932 = vsel %vm628, %v1913, 0
      %v1935 = vsel %vm628, %v1915, 0
      %v1938 = vsel %vm628, %v1917, 0
      %v1941 = vsel %vm628, %v1919, 0
      %v1944 = vsel %vm628, %v1921, 0
      %1946 = vmatprep.subr.bf16.mxu0 0
      %1947 = vmatpush1.bf16.xpose.msra.mxu0 0
      %1948 = vmatprep.subr.bf16.mxu0 0
      %1949 = vmatpush1.bf16.xpose.msra.mxu0 0
      %1950 = vmatprep.subr.bf16.mxu0 0
      %1951 = vmatpush1.bf16.xpose.msra.mxu0 %v1944
      %1952 = vmatprep.subr.bf16.mxu0 0
      %1953 = vmatpush1.bf16.xpose.msra.mxu0 %v1941
      %1954 = vmatprep.subr.bf16.mxu0 0
      %1955 = vmatpush1.bf16.xpose.msra.mxu0 %v1938
      %1956 = vmatprep.subr.bf16.mxu0 0
      %1957 = vmatpush1.bf16.xpose.msra.mxu0 %v1935
      %1958 = vmatprep.subr.bf16.mxu0 0
      %1959 = vmatpush1.bf16.xpose.msra.mxu0 %v1932
      %1960 = vmatprep.subr.bf16.mxu0 0
      %1961 = vmatpush1.bf16.xpose.msra.mxu0 %v1929
      %1962 = vmatprep.subr.bf16.mxu0 0
      %1963 = vmatpush2.bf16.xpose.msra.mxu0 0
      %1964 = vmatprep.subr.bf16.mxu0 0
      %1965 = vmatpush2.bf16.xpose.msra.mxu0 0
      %1966 = vmatprep.subr.bf16.mxu0 0
      %1967 = vmatpush2.bf16.xpose.msra.mxu0 0
      %1968 = vmatprep.subr.bf16.mxu0 0
      %1969 = vmatpush2.bf16.xpose.msra.mxu0 0
      %1970 = vmatprep.subr.bf16.mxu0 0
      %1971 = vmatpush2.bf16.xpose.msra.mxu0 0
      %1972 = vmatprep.subr.bf16.mxu0 0
      %1973 = vmatpush2.bf16.xpose.msra.mxu0 0
      %1974 = vmatprep.subr.bf16.mxu0 0
      %1975 = vmatpush2.bf16.xpose.msra.mxu0 0
      %1976 = vmatprep.subr.bf16.mxu0 0
      %1977 = vmatpush2.bf16.xpose.msra.mxu0 0
      %1978 = vmatprep.mubr.bf16.mxu0 0
      %1979 = vmatmul.mubr.bf16.gmra.mxu0 %v1923
      %v1980 = vpop.f32.mrf.mxu0
      %v1981 = vadd.f32 0.0, %v1980
      %v1982 = vpop.f32.mrf.mxu0
      %v1983 = vpop.f32.mrf.mxu0
      %v1984 = vadd.f32 0.0, %v1983
      %v1985 = vpop.f32.mrf.mxu0
      %1986 = vmatprep.mubr.bf16.mxu0 0
      %1987 = vmatmul.mubr.bf16.gmra.mxu0 %v1926
      %v1988 = vpop.f32.mrf.mxu0
      %v1989 = vadd.f32 0.0, %v1988
      %v1990 = vpop.f32.mrf.mxu0
      %v1991 = vpop.f32.mrf.mxu0
      %v1992 = vadd.f32 0.0, %v1991
      %v1993 = vpop.f32.mrf.mxu0
      %1994 = vdwg.mxu0
      %v1995 = vsel %vm703, %v1981, -1e+30
      %v1996 = vsel %vm703, %v1984, -1e+30
      %v1997 = vsel %vm703, %v1989, -1e+30
      %v1998 = vsel %vm703, %v1992, -1e+30
      %v1999 = vsel %vm708, %v1995, -inf
      %2000 = vmax.xlane.f32.xlu0 %v1999
      %v2001 = vpop.xlane.xlu0 %2000
      %v2002 = vsel %vm708, %v1996, -inf
      %2003 = vmax.xlane.f32.xlu0 %v2002
      %v2004 = vpop.xlane.xlu0 %2003
      %v2005 = vsel %vm708, %v1997, -inf
      %2006 = vmax.xlane.f32.xlu0 %v2005
      %v2007 = vpop.xlane.xlu0 %2006
      %v2008 = vsel %vm708, %v1998, -inf
      %2009 = vmax.xlane.f32.xlu0 %v2008
      %v2010 = vpop.xlane.xlu0 %2009
      %v2011 = vsub.f32 %v1995, %v2001
      %v2012 = vsub.f32 %v1996, %v2004
      %v2013 = vsub.f32 %v1997, %v2007
      %v2014 = vsub.f32 %v1998, %v2010
      %v2015 = vmul.f32 %v2011, 1.442695
      %v2016 = vpow.pop %v2015
      %v2017 = vmul.f32 %v2012, 1.442695
      %v2018 = vpow.pop %v2017
      %v2019 = vmul.f32 %v2013, 1.442695
      %v2020 = vpow.pop %v2019
      %v2021 = vmul.f32 %v2014, 1.442695
      %v2022 = vpow.pop %v2021
      %v2023 = vsel %vm708, %v2016, 0.0
      %2024 = vadd.xlane.f32.xlu0 %v2023
      %v2025 = vpop.xlane.xlu0 %2024
      %v2026 = vsel %vm708, %v2018, 0.0
      %2027 = vadd.xlane.f32.xlu0 %v2026
      %v2028 = vpop.xlane.xlu0 %2027
      %v2029 = vsel %vm708, %v2020, 0.0
      %2030 = vadd.xlane.f32.xlu0 %v2029
      %v2031 = vpop.xlane.xlu0 %2030
      %v2032 = vsel %vm708, %v2022, 0.0
      %2033 = vadd.xlane.f32.xlu0 %v2032
      %v2034 = vpop.xlane.xlu0 %2033
      %v2035 = vpack.c.bf16 %v2018, %v2016
      %v2036 = vpack.c.bf16 %v2022, %v2020
      %2037 = vrot.lane.b32.xlu0 %v771, 104
      %v2038 = vpop.permute.xlu0 %2037
      %2039 = vrot.lane.b32.xlu0 %v772, 104
      %v2040 = vpop.permute.xlu0 %2039
      %2041 = vrot.lane.b32.xlu0 %v773, 104
      %v2042 = vpop.permute.xlu0 %2041
      %2043 = vrot.lane.b32.xlu0 %v774, 104
      %v2044 = vpop.permute.xlu0 %2043
      %2045 = vrot.lane.b32.xlu0 %v775, 104
      %v2046 = vpop.permute.xlu0 %2045
      %2047 = vrot.lane.b32.xlu0 %v776, 104
      %v2048 = vpop.permute.xlu0 %2047
      %v2056 = vsel %vm708, %v2035, 0
      %v2059 = vsel %vm708, %v2036, 0
      %2061 = vmatprep.subr.bf16.mxu0 0
      %2062 = vmatpush1.bf16.msra.mxu0 0
      %2063 = vmatprep.subr.bf16.mxu0 0
      %2064 = vmatpush1.bf16.msra.mxu0 0
      %2065 = vmatprep.subr.bf16.mxu0 0
      %2066 = vmatpush1.bf16.msra.mxu0 %v2048
      %2067 = vmatprep.subr.bf16.mxu0 0
      %2068 = vmatpush1.bf16.msra.mxu0 %v2046
      %2069 = vmatprep.subr.bf16.mxu0 0
      %2070 = vmatpush1.bf16.msra.mxu0 %v2044
      %2071 = vmatprep.subr.bf16.mxu0 0
      %2072 = vmatpush1.bf16.msra.mxu0 %v2042
      %2073 = vmatprep.subr.bf16.mxu0 0
      %2074 = vmatpush1.bf16.msra.mxu0 %v2040
      %2075 = vmatprep.subr.bf16.mxu0 0
      %2076 = vmatpush1.bf16.msra.mxu0 %v2038
      %2077 = vmatprep.subr.bf16.mxu0 0
      %2078 = vmatpush2.bf16.msra.mxu0 0
      %2079 = vmatprep.subr.bf16.mxu0 0
      %2080 = vmatpush2.bf16.msra.mxu0 0
      %2081 = vmatprep.subr.bf16.mxu0 0
      %2082 = vmatpush2.bf16.msra.mxu0 0
      %2083 = vmatprep.subr.bf16.mxu0 0
      %2084 = vmatpush2.bf16.msra.mxu0 0
      %2085 = vmatprep.subr.bf16.mxu0 0
      %2086 = vmatpush2.bf16.msra.mxu0 0
      %2087 = vmatprep.subr.bf16.mxu0 0
      %2088 = vmatpush2.bf16.msra.mxu0 0
      %2089 = vmatprep.subr.bf16.mxu0 0
      %2090 = vmatpush2.bf16.msra.mxu0 0
      %2091 = vmatprep.subr.bf16.mxu0 0
      %2092 = vmatpush2.bf16.msra.mxu0 0
      %2093 = vmatprep.mubr.bf16.mxu0 0
      %2094 = vmatmul.mubr.bf16.gmra.mxu0 %v2056
      %v2095 = vpop.f32.mrf.mxu0
      %v2096 = vadd.f32 0.0, %v2095
      %v2097 = vpop.f32.mrf.mxu0
      %v2098 = vpop.f32.mrf.mxu0
      %v2099 = vadd.f32 0.0, %v2098
      %v2100 = vpop.f32.mrf.mxu0
      %2101 = vmatprep.mubr.bf16.mxu0 0
      %2102 = vmatmul.mubr.bf16.gmra.mxu0 %v2059
      %v2103 = vpop.f32.mrf.mxu0
      %v2104 = vadd.f32 0.0, %v2103
      %v2105 = vpop.f32.mrf.mxu0
      %v2106 = vpop.f32.mrf.mxu0
      %v2107 = vadd.f32 0.0, %v2106
      %v2108 = vpop.f32.mrf.mxu0
      %2109 = vdwg.mxu0
      %v2110 = vrcp.pop %v2025
      %v2111 = vrcp.pop %v2028
      %v2112 = vrcp.pop %v2031
      %v2113 = vrcp.pop %v2034
      %v2114 = vmul.f32 %v2096, %v2110
      %v2115 = vmul.f32 %v2099, %v2111
      %v2116 = vmul.f32 %v2104, %v2112
      %v2117 = vmul.f32 %v2107, %v2113
      %2118 = vrot.lane.b32.xlu0 %v596, 100
      %v2119 = vpop.permute.xlu0 %2118
      %2120 = vrot.lane.b32.xlu0 %v597, 100
      %v2121 = vpop.permute.xlu0 %2120
      %2122 = vrot.lane.b32.xlu0 %v622, 100
      %v2123 = vpop.permute.xlu0 %2122
      %2124 = vrot.lane.b32.xlu0 %v623, 100
      %v2125 = vpop.permute.xlu0 %2124
      %2126 = vrot.lane.b32.xlu0 %v624, 100
      %v2127 = vpop.permute.xlu0 %2126
      %2128 = vrot.lane.b32.xlu0 %v625, 100
      %v2129 = vpop.permute.xlu0 %2128
      %2130 = vrot.lane.b32.xlu0 %v626, 100
      %v2131 = vpop.permute.xlu0 %2130
      %2132 = vrot.lane.b32.xlu0 %v627, 100
      %v2133 = vpop.permute.xlu0 %2132
      %v2135 = vsel %vm628, %v2119, 0
      %v2138 = vsel %vm628, %v2121, 0
      %v2141 = vsel %vm628, %v2123, 0
      %v2144 = vsel %vm628, %v2125, 0
      %v2147 = vsel %vm628, %v2127, 0
      %v2150 = vsel %vm628, %v2129, 0
      %v2153 = vsel %vm628, %v2131, 0
      %v2156 = vsel %vm628, %v2133, 0
      %2158 = vmatprep.subr.bf16.mxu0 0
      %2159 = vmatpush1.bf16.xpose.msra.mxu0 0
      %2160 = vmatprep.subr.bf16.mxu0 0
      %2161 = vmatpush1.bf16.xpose.msra.mxu0 0
      %2162 = vmatprep.subr.bf16.mxu0 0
      %2163 = vmatpush1.bf16.xpose.msra.mxu0 %v2156
      %2164 = vmatprep.subr.bf16.mxu0 0
      %2165 = vmatpush1.bf16.xpose.msra.mxu0 %v2153
      %2166 = vmatprep.subr.bf16.mxu0 0
      %2167 = vmatpush1.bf16.xpose.msra.mxu0 %v2150
      %2168 = vmatprep.subr.bf16.mxu0 0
      %2169 = vmatpush1.bf16.xpose.msra.mxu0 %v2147
      %2170 = vmatprep.subr.bf16.mxu0 0
      %2171 = vmatpush1.bf16.xpose.msra.mxu0 %v2144
      %2172 = vmatprep.subr.bf16.mxu0 0
      %2173 = vmatpush1.bf16.xpose.msra.mxu0 %v2141
      %2174 = vmatprep.subr.bf16.mxu0 0
      %2175 = vmatpush2.bf16.xpose.msra.mxu0 0
      %2176 = vmatprep.subr.bf16.mxu0 0
      %2177 = vmatpush2.bf16.xpose.msra.mxu0 0
      %2178 = vmatprep.subr.bf16.mxu0 0
      %2179 = vmatpush2.bf16.xpose.msra.mxu0 0
      %2180 = vmatprep.subr.bf16.mxu0 0
      %2181 = vmatpush2.bf16.xpose.msra.mxu0 0
      %2182 = vmatprep.subr.bf16.mxu0 0
      %2183 = vmatpush2.bf16.xpose.msra.mxu0 0
      %2184 = vmatprep.subr.bf16.mxu0 0
      %2185 = vmatpush2.bf16.xpose.msra.mxu0 0
      %2186 = vmatprep.subr.bf16.mxu0 0
      %2187 = vmatpush2.bf16.xpose.msra.mxu0 0
      %2188 = vmatprep.subr.bf16.mxu0 0
      %2189 = vmatpush2.bf16.xpose.msra.mxu0 0
      %2190 = vmatprep.mubr.bf16.mxu0 0
      %2191 = vmatmul.mubr.bf16.gmra.mxu0 %v2135
      %v2192 = vpop.f32.mrf.mxu0
      %v2193 = vadd.f32 0.0, %v2192
      %v2194 = vpop.f32.mrf.mxu0
      %v2195 = vpop.f32.mrf.mxu0
      %v2196 = vadd.f32 0.0, %v2195
      %v2197 = vpop.f32.mrf.mxu0
      %2198 = vmatprep.mubr.bf16.mxu0 0
      %2199 = vmatmul.mubr.bf16.gmra.mxu0 %v2138
      %v2200 = vpop.f32.mrf.mxu0
      %v2201 = vadd.f32 0.0, %v2200
      %v2202 = vpop.f32.mrf.mxu0
      %v2203 = vpop.f32.mrf.mxu0
      %v2204 = vadd.f32 0.0, %v2203
      %v2205 = vpop.f32.mrf.mxu0
      %2206 = vdwg.mxu0
      %v2207 = vsel %vm703, %v2193, -1e+30
      %v2208 = vsel %vm703, %v2196, -1e+30
      %v2209 = vsel %vm703, %v2201, -1e+30
      %v2210 = vsel %vm703, %v2204, -1e+30
      %v2211 = vsel %vm708, %v2207, -inf
      %2212 = vmax.xlane.f32.xlu0 %v2211
      %v2213 = vpop.xlane.xlu0 %2212
      %v2214 = vsel %vm708, %v2208, -inf
      %2215 = vmax.xlane.f32.xlu0 %v2214
      %v2216 = vpop.xlane.xlu0 %2215
      %v2217 = vsel %vm708, %v2209, -inf
      %2218 = vmax.xlane.f32.xlu0 %v2217
      %v2219 = vpop.xlane.xlu0 %2218
      %v2220 = vsel %vm708, %v2210, -inf
      %2221 = vmax.xlane.f32.xlu0 %v2220
      %v2222 = vpop.xlane.xlu0 %2221
      %v2223 = vsub.f32 %v2207, %v2213
      %v2224 = vsub.f32 %v2208, %v2216
      %v2225 = vsub.f32 %v2209, %v2219
      %v2226 = vsub.f32 %v2210, %v2222
      %v2227 = vmul.f32 %v2223, 1.442695
      %v2228 = vpow.pop %v2227
      %v2229 = vmul.f32 %v2224, 1.442695
      %v2230 = vpow.pop %v2229
      %v2231 = vmul.f32 %v2225, 1.442695
      %v2232 = vpow.pop %v2231
      %v2233 = vmul.f32 %v2226, 1.442695
      %v2234 = vpow.pop %v2233
      %v2235 = vsel %vm708, %v2228, 0.0
      %2236 = vadd.xlane.f32.xlu0 %v2235
      %v2237 = vpop.xlane.xlu0 %2236
      %v2238 = vsel %vm708, %v2230, 0.0
      %2239 = vadd.xlane.f32.xlu0 %v2238
      %v2240 = vpop.xlane.xlu0 %2239
      %v2241 = vsel %vm708, %v2232, 0.0
      %2242 = vadd.xlane.f32.xlu0 %v2241
      %v2243 = vpop.xlane.xlu0 %2242
      %v2244 = vsel %vm708, %v2234, 0.0
      %2245 = vadd.xlane.f32.xlu0 %v2244
      %v2246 = vpop.xlane.xlu0 %2245
      %v2247 = vpack.c.bf16 %v2230, %v2228
      %v2248 = vpack.c.bf16 %v2234, %v2232
      %2249 = vrot.lane.b32.xlu0 %v771, 100
      %v2250 = vpop.permute.xlu0 %2249
      %2251 = vrot.lane.b32.xlu0 %v772, 100
      %v2252 = vpop.permute.xlu0 %2251
      %2253 = vrot.lane.b32.xlu0 %v773, 100
      %v2254 = vpop.permute.xlu0 %2253
      %2255 = vrot.lane.b32.xlu0 %v774, 100
      %v2256 = vpop.permute.xlu0 %2255
      %2257 = vrot.lane.b32.xlu0 %v775, 100
      %v2258 = vpop.permute.xlu0 %2257
      %2259 = vrot.lane.b32.xlu0 %v776, 100
      %v2260 = vpop.permute.xlu0 %2259
      %v2268 = vsel %vm708, %v2247, 0
      %v2271 = vsel %vm708, %v2248, 0
      %2273 = vmatprep.subr.bf16.mxu0 0
      %2274 = vmatpush1.bf16.msra.mxu0 0
      %2275 = vmatprep.subr.bf16.mxu0 0
      %2276 = vmatpush1.bf16.msra.mxu0 0
      %2277 = vmatprep.subr.bf16.mxu0 0
      %2278 = vmatpush1.bf16.msra.mxu0 %v2260
      %2279 = vmatprep.subr.bf16.mxu0 0
      %2280 = vmatpush1.bf16.msra.mxu0 %v2258
      %2281 = vmatprep.subr.bf16.mxu0 0
      %2282 = vmatpush1.bf16.msra.mxu0 %v2256
      %2283 = vmatprep.subr.bf16.mxu0 0
      %2284 = vmatpush1.bf16.msra.mxu0 %v2254
      %2285 = vmatprep.subr.bf16.mxu0 0
      %2286 = vmatpush1.bf16.msra.mxu0 %v2252
      %2287 = vmatprep.subr.bf16.mxu0 0
      %2288 = vmatpush1.bf16.msra.mxu0 %v2250
      %2289 = vmatprep.subr.bf16.mxu0 0
      %2290 = vmatpush2.bf16.msra.mxu0 0
      %2291 = vmatprep.subr.bf16.mxu0 0
      %2292 = vmatpush2.bf16.msra.mxu0 0
      %2293 = vmatprep.subr.bf16.mxu0 0
      %2294 = vmatpush2.bf16.msra.mxu0 0
      %2295 = vmatprep.subr.bf16.mxu0 0
      %2296 = vmatpush2.bf16.msra.mxu0 0
      %2297 = vmatprep.subr.bf16.mxu0 0
      %2298 = vmatpush2.bf16.msra.mxu0 0
      %2299 = vmatprep.subr.bf16.mxu0 0
      %2300 = vmatpush2.bf16.msra.mxu0 0
      %2301 = vmatprep.subr.bf16.mxu0 0
      %2302 = vmatpush2.bf16.msra.mxu0 0
      %2303 = vmatprep.subr.bf16.mxu0 0
      %2304 = vmatpush2.bf16.msra.mxu0 0
      %2305 = vmatprep.mubr.bf16.mxu0 0
      %2306 = vmatmul.mubr.bf16.gmra.mxu0 %v2268
      %v2307 = vpop.f32.mrf.mxu0
      %v2308 = vadd.f32 0.0, %v2307
      %v2309 = vpop.f32.mrf.mxu0
      %v2310 = vpop.f32.mrf.mxu0
      %v2311 = vadd.f32 0.0, %v2310
      %v2312 = vpop.f32.mrf.mxu0
      %2313 = vmatprep.mubr.bf16.mxu0 0
      %2314 = vmatmul.mubr.bf16.gmra.mxu0 %v2271
      %v2315 = vpop.f32.mrf.mxu0
      %v2316 = vadd.f32 0.0, %v2315
      %v2317 = vpop.f32.mrf.mxu0
      %v2318 = vpop.f32.mrf.mxu0
      %v2319 = vadd.f32 0.0, %v2318
      %v2320 = vpop.f32.mrf.mxu0
      %2321 = vdwg.mxu0
      %v2322 = vrcp.pop %v2237
      %v2323 = vrcp.pop %v2240
      %v2324 = vrcp.pop %v2243
      %v2325 = vrcp.pop %v2246
      %v2326 = vmul.f32 %v2308, %v2322
      %v2327 = vmul.f32 %v2311, %v2323
      %v2328 = vmul.f32 %v2316, %v2324
      %v2329 = vmul.f32 %v2319, %v2325
      %2334 = vrot.lane.b32.xlu0 %v1054, 4
      %v2335 = vpop.permute.xlu0 %2334
      %2336 = vrot.lane.b32.xlu0 %v1055, 4
      %v2337 = vpop.permute.xlu0 %2336
      %2338 = vrot.lane.b32.xlu0 %v1056, 4
      %v2339 = vpop.permute.xlu0 %2338
      %2340 = vrot.lane.b32.xlu0 %v1057, 4
      %v2341 = vpop.permute.xlu0 %2340
      %2350 = vrot.lane.b32.xlu0 %v1266, 8
      %v2351 = vpop.permute.xlu0 %2350
      %2352 = vrot.lane.b32.xlu0 %v1267, 8
      %v2353 = vpop.permute.xlu0 %2352
      %2354 = vrot.lane.b32.xlu0 %v1268, 8
      %v2355 = vpop.permute.xlu0 %2354
      %2356 = vrot.lane.b32.xlu0 %v1269, 8
      %v2357 = vpop.permute.xlu0 %2356
      %2366 = vrot.lane.b32.xlu0 %v1478, 12
      %v2367 = vpop.permute.xlu0 %2366
      %2368 = vrot.lane.b32.xlu0 %v1479, 12
      %v2369 = vpop.permute.xlu0 %2368
      %2370 = vrot.lane.b32.xlu0 %v1480, 12
      %v2371 = vpop.permute.xlu0 %2370
      %2372 = vrot.lane.b32.xlu0 %v1481, 12
      %v2373 = vpop.permute.xlu0 %2372
      %2382 = vrot.lane.b32.xlu0 %v1690, 16
      %v2383 = vpop.permute.xlu0 %2382
      %2384 = vrot.lane.b32.xlu0 %v1691, 16
      %v2385 = vpop.permute.xlu0 %2384
      %2386 = vrot.lane.b32.xlu0 %v1692, 16
      %v2387 = vpop.permute.xlu0 %2386
      %2388 = vrot.lane.b32.xlu0 %v1693, 16
      %v2389 = vpop.permute.xlu0 %2388
      %2398 = vrot.lane.b32.xlu0 %v1902, 20
      %v2399 = vpop.permute.xlu0 %2398
      %2400 = vrot.lane.b32.xlu0 %v1903, 20
      %v2401 = vpop.permute.xlu0 %2400
      %2402 = vrot.lane.b32.xlu0 %v1904, 20
      %v2403 = vpop.permute.xlu0 %2402
      %2404 = vrot.lane.b32.xlu0 %v1905, 20
      %v2405 = vpop.permute.xlu0 %2404
      %2414 = vrot.lane.b32.xlu0 %v2114, 24
      %v2415 = vpop.permute.xlu0 %2414
      %2416 = vrot.lane.b32.xlu0 %v2115, 24
      %v2417 = vpop.permute.xlu0 %2416
      %2418 = vrot.lane.b32.xlu0 %v2116, 24
      %v2419 = vpop.permute.xlu0 %2418
      %2420 = vrot.lane.b32.xlu0 %v2117, 24
      %v2421 = vpop.permute.xlu0 %2420
      %2430 = vrot.lane.b32.xlu0 %v2326, 28
      %v2431 = vpop.permute.xlu0 %2430
      %2432 = vrot.lane.b32.xlu0 %v2327, 28
      %v2433 = vpop.permute.xlu0 %2432
      %2434 = vrot.lane.b32.xlu0 %v2328, 28
      %v2435 = vpop.permute.xlu0 %2434
      %2436 = vrot.lane.b32.xlu0 %v2329, 28
      %v2437 = vpop.permute.xlu0 %2436
      %v2442 = vsel %vm628, %v842, %v2335
      %v2443 = vsel %vm628, %v843, %v2337
      %v2444 = vsel %vm628, %v844, %v2339
      %v2445 = vsel %vm628, %v845, %v2341
      %vm2446 = vcmask 64512
      %v2447 = vsel %vm2446, %v2442, %v2351
      %v2448 = vsel %vm2446, %v2443, %v2353
      %v2449 = vsel %vm2446, %v2444, %v2355
      %v2450 = vsel %vm2446, %v2445, %v2357
      %vm2451 = vcmask 97280
      %v2452 = vsel %vm2451, %v2447, %v2367
      %v2453 = vsel %vm2451, %v2448, %v2369
      %v2454 = vsel %vm2451, %v2449, %v2371
      %v2455 = vsel %vm2451, %v2450, %v2373
      %vm2456 = vcmask 130048
      %v2457 = vsel %vm2456, %v2452, %v2383
      %v2458 = vsel %vm2456, %v2453, %v2385
      %v2459 = vsel %vm2456, %v2454, %v2387
      %v2460 = vsel %vm2456, %v2455, %v2389
      %vm2461 = vcmask 162816
      %v2462 = vsel %vm2461, %v2457, %v2399
      %v2463 = vsel %vm2461, %v2458, %v2401
      %v2464 = vsel %vm2461, %v2459, %v2403
      %v2465 = vsel %vm2461, %v2460, %v2405
      %vm2466 = vcmask 195584
      %v2467 = vsel %vm2466, %v2462, %v2415
      %v2468 = vsel %vm2466, %v2463, %v2417
      %v2469 = vsel %vm2466, %v2464, %v2419
      %v2470 = vsel %vm2466, %v2465, %v2421
      %vm2471 = vcmask 228352
      %v2472 = vsel %vm2471, %v2467, %v2431
      %v2473 = vsel %vm2471, %v2468, %v2433
      %v2474 = vsel %vm2471, %v2469, %v2435
      %v2475 = vsel %vm2471, %v2470, %v2437
      %v2476 = vpack.c.bf16 %v2473, %v2472
      %v2477 = vpack.c.bf16 %v2475, %v2474
      %v2478 = vld [vmem:[%s4] sm:$0xf]
      %v2479 = vld [vmem:[%s4 + $0x4] sm:$0xf]
      %v2480 = vld [vmem:[%s4 + $0x8] sm:$0xf]
      %v2481 = vld [vmem:[%s4 + $0xc] sm:$0xf]
      %v2486 = vunpack.c.l.b16 %v2478
      %v2487 = vunpack.c.l.b16 %v2479
      %v2488 = vunpack.c.l.b16 %v2480
      %v2489 = vunpack.c.l.b16 %v2481
      %v2490 = vpack.c.b16 %v2487, %v2486
      %v2491 = vpack.c.b16 %v2489, %v2488
      %vm2494 = vcmask 261120
      %v2496 = vsel %vm2494, %v2476, 0
      %v2499 = vsel %vm2494, %v2477, 0
      %2501 = vmatprep.subr.bf16.mxu0 0
      %2502 = vmatpush1.bf16.msra.mxu0 0
      %2503 = vmatprep.subr.bf16.mxu0 0
      %2504 = vmatpush1.bf16.msra.mxu0 0
      %2505 = vmatprep.subr.bf16.mxu0 0
      %2506 = vmatpush1.bf16.msra.mxu0 0
      %2507 = vmatprep.subr.bf16.mxu0 0
      %2508 = vmatpush1.bf16.msra.mxu0 0
      %2509 = vmatprep.subr.bf16.mxu0 0
      %2510 = vmatpush1.bf16.msra.mxu0 0
      %2511 = vmatprep.subr.bf16.mxu0 0
      %2512 = vmatpush1.bf16.msra.mxu0 0
      %2513 = vmatprep.subr.bf16.mxu0 0
      %2514 = vmatpush1.bf16.msra.mxu0 %v2491
      %2515 = vmatprep.subr.bf16.mxu0 0
      %2516 = vmatpush1.bf16.msra.mxu0 %v2490
      %2517 = vmatprep.subr.bf16.mxu0 0
      %2518 = vmatpush2.bf16.msra.mxu0 0
      %2519 = vmatprep.subr.bf16.mxu0 0
      %2520 = vmatpush2.bf16.msra.mxu0 0
      %2521 = vmatprep.subr.bf16.mxu0 0
      %2522 = vmatpush2.bf16.msra.mxu0 0
      %2523 = vmatprep.subr.bf16.mxu0 0
      %2524 = vmatpush2.bf16.msra.mxu0 0
      %2525 = vmatprep.subr.bf16.mxu0 0
      %2526 = vmatpush2.bf16.msra.mxu0 0
      %2527 = vmatprep.subr.bf16.mxu0 0
      %2528 = vmatpush2.bf16.msra.mxu0 0
      %2529 = vmatprep.subr.bf16.mxu0 0
      %2530 = vmatpush2.bf16.msra.mxu0 0
      %2531 = vmatprep.subr.bf16.mxu0 0
      %2532 = vmatpush2.bf16.msra.mxu0 0
      %2533 = vmatprep.mubr.bf16.mxu0 0
      %2534 = vmatmul.mubr.bf16.gmra.mxu0 %v2496
      %v2535 = vpop.f32.mrf.mxu0
      %v2536 = vadd.f32 0.0, %v2535
      %v2537 = vpop.f32.mrf.mxu0
      %v2538 = vpop.f32.mrf.mxu0
      %v2539 = vadd.f32 0.0, %v2538
      %v2540 = vpop.f32.mrf.mxu0
      %2541 = vmatprep.mubr.bf16.mxu0 0
      %2542 = vmatmul.mubr.bf16.gmra.mxu0 %v2499
      %v2543 = vpop.f32.mrf.mxu0
      %v2544 = vadd.f32 0.0, %v2543
      %v2545 = vpop.f32.mrf.mxu0
      %v2546 = vpop.f32.mrf.mxu0
      %v2547 = vadd.f32 0.0, %v2546
      %v2548 = vpop.f32.mrf.mxu0
      %2549 = vdwg.mxu0
      %v2550 = vld [vmem:[%s524] sm:$0xf]
      %v2551 = vld [vmem:[%s524 + $0x4] sm:$0xf]
      %v2552 = vld [vmem:[%s524 + $0x8] sm:$0xf]
      %v2553 = vld [vmem:[%s524 + $0xc] sm:$0xf]
      %v2554 = vunpack.c.l.bf16 %v2550
      %v2555 = vunpack.c.l.bf16 %v2551
      %v2556 = vunpack.c.l.bf16 %v2552
      %v2557 = vunpack.c.l.bf16 %v2553
      %v2558 = vadd.f32 %v2554, %v2536
      %v2559 = vadd.f32 %v2555, %v2539
      %v2560 = vadd.f32 %v2556, %v2544
      %v2561 = vadd.f32 %v2557, %v2547
      %v2562 = vld [vmem:[%s5] sm:$0x1]
      %v2563 = vld [vmem:[%s6] sm:$0x1]
      %v2564 = vsel %vm2494, %v2558, 0.0
      %2565 = vadd.xlane.f32.xlu0 %v2564
      %v2566 = vpop.xlane.xlu0 %2565
      %v2567 = vsel %vm2494, %v2559, 0.0
      %2568 = vadd.xlane.f32.xlu0 %v2567
      %v2569 = vpop.xlane.xlu0 %2568
      %v2570 = vsel %vm2494, %v2560, 0.0
      %2571 = vadd.xlane.f32.xlu0 %v2570
      %v2572 = vpop.xlane.xlu0 %2571
      %v2573 = vsel %vm2494, %v2561, 0.0
      %2574 = vadd.xlane.f32.xlu0 %v2573
      %v2575 = vpop.xlane.xlu0 %2574
      %v2576 = vrcp.pop 32.0
      %v2577 = vmul.f32 %v2566, %v2576
      %v2578 = vmul.f32 %v2569, %v2576
      %v2579 = vmul.f32 %v2572, %v2576
      %v2580 = vmul.f32 %v2575, %v2576
      %v2581 = vsub.f32 %v2558, %v2577
      %v2582 = vsub.f32 %v2559, %v2578
      %v2583 = vsub.f32 %v2560, %v2579
      %v2584 = vsub.f32 %v2561, %v2580
      %v2585 = vmul.f32 %v2581, %v2581
      %v2586 = vmul.f32 %v2582, %v2582
      %v2587 = vmul.f32 %v2583, %v2583
      %v2588 = vmul.f32 %v2584, %v2584
      %v2589 = vsel %vm2494, %v2585, 0.0
      %2590 = vadd.xlane.f32.xlu0 %v2589
      %v2591 = vpop.xlane.xlu0 %2590
      %v2592 = vsel %vm2494, %v2586, 0.0
      %2593 = vadd.xlane.f32.xlu0 %v2592
      %v2594 = vpop.xlane.xlu0 %2593
      %v2595 = vsel %vm2494, %v2587, 0.0
      %2596 = vadd.xlane.f32.xlu0 %v2595
      %v2597 = vpop.xlane.xlu0 %2596
      %v2598 = vsel %vm2494, %v2588, 0.0
      %2599 = vadd.xlane.f32.xlu0 %v2598
      %v2600 = vpop.xlane.xlu0 %2599
      %v2601 = vmul.f32 %v2591, %v2576
      %v2602 = vmul.f32 %v2594, %v2576
      %v2603 = vmul.f32 %v2597, %v2576
      %v2604 = vmul.f32 %v2600, %v2576
      %v2605 = vadd.f32 %v2601, 1e-05
      %v2606 = vadd.f32 %v2602, 1e-05
      %v2607 = vadd.f32 %v2603, 1e-05
      %v2608 = vadd.f32 %v2604, 1e-05
      %v2609 = vrsqrt.pop %v2605
      %v2610 = vrsqrt.pop %v2606
      %v2611 = vrsqrt.pop %v2607
      %v2612 = vrsqrt.pop %v2608
      %v2613 = vmul.f32 %v2581, %v2609
      %v2614 = vmul.f32 %v2582, %v2610
      %v2615 = vmul.f32 %v2583, %v2611
      %v2616 = vmul.f32 %v2584, %v2612
      %v2618 = vlaneseq
      %v2619 = vshrl.u32 %v2618, 7
      %v2620 = vsub.s32 0, %v2619
      %v2621 = vrot.slane %v2562, %v2620
      %v2623 = vmul.f32 %v2613, %v2621
      %v2624 = vmul.f32 %v2614, %v2621
      %v2625 = vmul.f32 %v2615, %v2621
      %v2626 = vmul.f32 %v2616, %v2621
      %v2628 = vlaneseq
      %v2629 = vshrl.u32 %v2628, 7
      %v2630 = vsub.s32 0, %v2629
      %v2631 = vrot.slane %v2563, %v2630
      %v2633 = vadd.f32 %v2623, %v2631
      %v2634 = vadd.f32 %v2624, %v2631
      %v2635 = vadd.f32 %v2625, %v2631
      %v2636 = vadd.f32 %v2626, %v2631
      %v2637 = vpack.c.bf16 %v2634, %v2633
      %v2638 = vpack.c.bf16 %v2636, %v2635
      %v2639 = vld [vmem:[%s7] sm:$0xf]
      %v2640 = vld [vmem:[%s7 + $0x4] sm:$0xf]
      %v2641 = vld [vmem:[%s7 + $0x8] sm:$0xf]
      %v2642 = vld [vmem:[%s7 + $0xc] sm:$0xf]
      %v2643 = vld [vmem:[%s8] sm:$0x1]
      %v2645 = vlaneseq
      %v2646 = vshrl.u32 %v2645, 7
      %v2647 = vsub.s32 0, %v2646
      %v2648 = vrot.slane %v2643, %v2647
      %v2654 = vunpack.c.l.b16 %v2639
      %v2655 = vunpack.c.l.b16 %v2640
      %v2656 = vunpack.c.l.b16 %v2641
      %v2657 = vunpack.c.l.b16 %v2642
      %v2658 = vpack.c.b16 %v2655, %v2654
      %v2659 = vpack.c.b16 %v2657, %v2656
      %v2663 = vsel %vm2494, %v2637, 0
      %v2666 = vsel %vm2494, %v2638, 0
      %2668 = vmatprep.subr.bf16.mxu0 0
      %2669 = vmatpush1.bf16.msra.mxu0 0
      %2670 = vmatprep.subr.bf16.mxu0 0
      %2671 = vmatpush1.bf16.msra.mxu0 0
      %2672 = vmatprep.subr.bf16.mxu0 0
      %2673 = vmatpush1.bf16.msra.mxu0 0
      %2674 = vmatprep.subr.bf16.mxu0 0
      %2675 = vmatpush1.bf16.msra.mxu0 0
      %2676 = vmatprep.subr.bf16.mxu0 0
      %2677 = vmatpush1.bf16.msra.mxu0 0
      %2678 = vmatprep.subr.bf16.mxu0 0
      %2679 = vmatpush1.bf16.msra.mxu0 0
      %2680 = vmatprep.subr.bf16.mxu0 0
      %2681 = vmatpush1.bf16.msra.mxu0 %v2659
      %2682 = vmatprep.subr.bf16.mxu0 0
      %2683 = vmatpush1.bf16.msra.mxu0 %v2658
      %2684 = vmatprep.subr.bf16.mxu0 0
      %2685 = vmatpush2.bf16.msra.mxu0 0
      %2686 = vmatprep.subr.bf16.mxu0 0
      %2687 = vmatpush2.bf16.msra.mxu0 0
      %2688 = vmatprep.subr.bf16.mxu0 0
      %2689 = vmatpush2.bf16.msra.mxu0 0
      %2690 = vmatprep.subr.bf16.mxu0 0
      %2691 = vmatpush2.bf16.msra.mxu0 0
      %2692 = vmatprep.subr.bf16.mxu0 0
      %2693 = vmatpush2.bf16.msra.mxu0 0
      %2694 = vmatprep.subr.bf16.mxu0 0
      %2695 = vmatpush2.bf16.msra.mxu0 0
      %2696 = vmatprep.subr.bf16.mxu0 0
      %2697 = vmatpush2.bf16.msra.mxu0 0
      %2698 = vmatprep.subr.bf16.mxu0 0
      %2699 = vmatpush2.bf16.msra.mxu0 0
      %2700 = vmatprep.mubr.bf16.mxu0 0
      %2701 = vmatmul.mubr.bf16.gmra.mxu0 %v2663
      %v2702 = vpop.f32.mrf.mxu0
      %v2703 = vadd.f32 %v2648, %v2702
      %v2704 = vpop.f32.mrf.mxu0
      %v2705 = vpop.f32.mrf.mxu0
      %v2706 = vadd.f32 %v2648, %v2705
      %v2707 = vpop.f32.mrf.mxu0
      %2708 = vmatprep.mubr.bf16.mxu0 0
      %2709 = vmatmul.mubr.bf16.gmra.mxu0 %v2666
      %v2710 = vpop.f32.mrf.mxu0
      %v2711 = vadd.f32 %v2648, %v2710
      %v2712 = vpop.f32.mrf.mxu0
      %v2713 = vpop.f32.mrf.mxu0
      %v2714 = vadd.f32 %v2648, %v2713
      %v2715 = vpop.f32.mrf.mxu0
      %2716 = vdwg.mxu0
      %v2717 = vmul.f32 %v2703, 0.70710677
      %v2718 = vmul.f32 %v2706, 0.70710677
      %v2719 = vmul.f32 %v2711, 0.70710677
      %v2720 = vmul.f32 %v2714, 0.70710677
      %vm2721 = vcmp.ge.f32.partialorder %v2717, 0.0
      %vm2722 = vcmp.ge.f32.partialorder %v2718, 0.0
      %vm2723 = vcmp.ge.f32.partialorder %v2719, 0.0
      %vm2724 = vcmp.ge.f32.partialorder %v2720, 0.0
      %v2725 = vsel %vm2721, 1.0, -1.0
      %v2726 = vsel %vm2722, 1.0, -1.0
      %v2727 = vsel %vm2723, 1.0, -1.0
      %v2728 = vsel %vm2724, 1.0, -1.0
      %v2729 = vand.u32 2147483647, %v2717
      %v2730 = vand.u32 2147483647, %v2718
      %v2731 = vand.u32 2147483647, %v2719
      %v2732 = vand.u32 2147483647, %v2720
      %v2733 = vmul.f32 %v2729, 0.3275911
      %v2734 = vmul.f32 %v2730, 0.3275911
      %v2735 = vmul.f32 %v2731, 0.3275911
      %v2736 = vmul.f32 %v2732, 0.3275911
      %v2737 = vadd.f32 %v2733, 1.0
      %v2738 = vadd.f32 %v2734, 1.0
      %v2739 = vadd.f32 %v2735, 1.0
      %v2740 = vadd.f32 %v2736, 1.0
      %v2741 = vrcp.pop %v2737
      %v2742 = vmul.f32 1.0, %v2741
      %v2743 = vrcp.pop %v2738
      %v2744 = vmul.f32 1.0, %v2743
      %v2745 = vrcp.pop %v2739
      %v2746 = vmul.f32 1.0, %v2745
      %v2747 = vrcp.pop %v2740
      %v2748 = vmul.f32 1.0, %v2747
      %v2749 = vmul.f32 %v2742, 1.0614054
      %v2750 = vmul.f32 %v2744, 1.0614054
      %v2751 = vmul.f32 %v2746, 1.0614054
      %v2752 = vmul.f32 %v2748, 1.0614054
      %v2753 = vadd.f32 %v2749, -1.4531521
      %v2754 = vadd.f32 %v2750, -1.4531521
      %v2755 = vadd.f32 %v2751, -1.4531521
      %v2756 = vadd.f32 %v2752, -1.4531521
      %v2757 = vmul.f32 %v2753, %v2742
      %v2758 = vmul.f32 %v2754, %v2744
      %v2759 = vmul.f32 %v2755, %v2746
      %v2760 = vmul.f32 %v2756, %v2748
      %v2761 = vadd.f32 %v2757, 1.4214138
      %v2762 = vadd.f32 %v2758, 1.4214138
      %v2763 = vadd.f32 %v2759, 1.4214138
      %v2764 = vadd.f32 %v2760, 1.4214138
      %v2765 = vmul.f32 %v2761, %v2742
      %v2766 = vmul.f32 %v2762, %v2744
      %v2767 = vmul.f32 %v2763, %v2746
      %v2768 = vmul.f32 %v2764, %v2748
      %v2769 = vadd.f32 %v2765, -0.28449672
      %v2770 = vadd.f32 %v2766, -0.28449672
      %v2771 = vadd.f32 %v2767, -0.28449672
      %v2772 = vadd.f32 %v2768, -0.28449672
      %v2773 = vmul.f32 %v2769, %v2742
      %v2774 = vmul.f32 %v2770, %v2744
      %v2775 = vmul.f32 %v2771, %v2746
      %v2776 = vmul.f32 %v2772, %v2748
      %v2777 = vadd.f32 %v2773, 0.2548296
      %v2778 = vadd.f32 %v2774, 0.2548296
      %v2779 = vadd.f32 %v2775, 0.2548296
      %v2780 = vadd.f32 %v2776, 0.2548296
      %v2781 = vmul.f32 %v2777, %v2742
      %v2782 = vmul.f32 %v2778, %v2744
      %v2783 = vmul.f32 %v2779, %v2746
      %v2784 = vmul.f32 %v2780, %v2748
      %v2785 = vsub.f32 0.0, %v2729
      %v2786 = vsub.f32 0.0, %v2730
      %v2787 = vsub.f32 0.0, %v2731
      %v2788 = vsub.f32 0.0, %v2732
      %v2789 = vmul.f32 %v2785, %v2729
      %v2790 = vmul.f32 %v2786, %v2730
      %v2791 = vmul.f32 %v2787, %v2731
      %v2792 = vmul.f32 %v2788, %v2732
      %v2793 = vmul.f32 %v2789, 1.442695
      %v2794 = vpow.pop %v2793
      %v2795 = vmul.f32 %v2790, 1.442695
      %v2796 = vpow.pop %v2795
      %v2797 = vmul.f32 %v2791, 1.442695
      %v2798 = vpow.pop %v2797
      %v2799 = vmul.f32 %v2792, 1.442695
      %v2800 = vpow.pop %v2799
      %v2801 = vmul.f32 %v2781, %v2794
      %v2802 = vmul.f32 %v2782, %v2796
      %v2803 = vmul.f32 %v2783, %v2798
      %v2804 = vmul.f32 %v2784, %v2800
      %v2805 = vsub.f32 1.0, %v2801
      %v2806 = vsub.f32 1.0, %v2802
      %v2807 = vsub.f32 1.0, %v2803
      %v2808 = vsub.f32 1.0, %v2804
      %v2809 = vmul.f32 %v2725, %v2805
      %v2810 = vmul.f32 %v2726, %v2806
      %v2811 = vmul.f32 %v2727, %v2807
      %v2812 = vmul.f32 %v2728, %v2808
      %v2813 = vmul.f32 %v2703, 0.5
      %v2814 = vmul.f32 %v2706, 0.5
      %v2815 = vmul.f32 %v2711, 0.5
      %v2816 = vmul.f32 %v2714, 0.5
      %v2817 = vadd.f32 %v2809, 1.0
      %v2818 = vadd.f32 %v2810, 1.0
      %v2819 = vadd.f32 %v2811, 1.0
      %v2820 = vadd.f32 %v2812, 1.0
      %v2821 = vmul.f32 %v2813, %v2817
      %v2822 = vmul.f32 %v2814, %v2818
      %v2823 = vmul.f32 %v2815, %v2819
      %v2824 = vmul.f32 %v2816, %v2820
      %v2825 = vpack.c.bf16 %v2822, %v2821
      %v2826 = vpack.c.bf16 %v2824, %v2823
      %v2827 = vld [vmem:[%s9] sm:$0xf]
      %v2828 = vld [vmem:[%s9 + $0x4] sm:$0xf]
      %v2829 = vld [vmem:[%s9 + $0x8] sm:$0xf]
      %v2830 = vld [vmem:[%s9 + $0xc] sm:$0xf]
      %v2831 = vld [vmem:[%s10] sm:$0x1]
      %v2833 = vlaneseq
      %v2834 = vshrl.u32 %v2833, 7
      %v2835 = vsub.s32 0, %v2834
      %v2836 = vrot.slane %v2831, %v2835
      %v2842 = vunpack.c.l.b16 %v2827
      %v2843 = vunpack.c.l.b16 %v2828
      %v2844 = vunpack.c.l.b16 %v2829
      %v2845 = vunpack.c.l.b16 %v2830
      %v2846 = vpack.c.b16 %v2843, %v2842
      %v2847 = vpack.c.b16 %v2845, %v2844
      %v2851 = vsel %vm2494, %v2825, 0
      %v2854 = vsel %vm2494, %v2826, 0
      %2856 = vmatprep.subr.bf16.mxu0 0
      %2857 = vmatpush1.bf16.msra.mxu0 0
      %2858 = vmatprep.subr.bf16.mxu0 0
      %2859 = vmatpush1.bf16.msra.mxu0 0
      %2860 = vmatprep.subr.bf16.mxu0 0
      %2861 = vmatpush1.bf16.msra.mxu0 0
      %2862 = vmatprep.subr.bf16.mxu0 0
      %2863 = vmatpush1.bf16.msra.mxu0 0
      %2864 = vmatprep.subr.bf16.mxu0 0
      %2865 = vmatpush1.bf16.msra.mxu0 0
      %2866 = vmatprep.subr.bf16.mxu0 0
      %2867 = vmatpush1.bf16.msra.mxu0 0
      %2868 = vmatprep.subr.bf16.mxu0 0
      %2869 = vmatpush1.bf16.msra.mxu0 %v2847
      %2870 = vmatprep.subr.bf16.mxu0 0
      %2871 = vmatpush1.bf16.msra.mxu0 %v2846
      %2872 = vmatprep.subr.bf16.mxu0 0
      %2873 = vmatpush2.bf16.msra.mxu0 0
      %2874 = vmatprep.subr.bf16.mxu0 0
      %2875 = vmatpush2.bf16.msra.mxu0 0
      %2876 = vmatprep.subr.bf16.mxu0 0
      %2877 = vmatpush2.bf16.msra.mxu0 0
      %2878 = vmatprep.subr.bf16.mxu0 0
      %2879 = vmatpush2.bf16.msra.mxu0 0
      %2880 = vmatprep.subr.bf16.mxu0 0
      %2881 = vmatpush2.bf16.msra.mxu0 0
      %2882 = vmatprep.subr.bf16.mxu0 0
      %2883 = vmatpush2.bf16.msra.mxu0 0
      %2884 = vmatprep.subr.bf16.mxu0 0
      %2885 = vmatpush2.bf16.msra.mxu0 0
      %2886 = vmatprep.subr.bf16.mxu0 0
      %2887 = vmatpush2.bf16.msra.mxu0 0
      %2888 = vmatprep.mubr.bf16.mxu0 0
      %2889 = vmatmul.mubr.bf16.gmra.mxu0 %v2851
      %v2890 = vpop.f32.mrf.mxu0
      %v2891 = vadd.f32 %v2836, %v2890
      %v2892 = vpop.f32.mrf.mxu0
      %v2893 = vpop.f32.mrf.mxu0
      %v2894 = vadd.f32 %v2836, %v2893
      %v2895 = vpop.f32.mrf.mxu0
      %2896 = vmatprep.mubr.bf16.mxu0 0
      %2897 = vmatmul.mubr.bf16.gmra.mxu0 %v2854
      %v2898 = vpop.f32.mrf.mxu0
      %v2899 = vadd.f32 %v2836, %v2898
      %v2900 = vpop.f32.mrf.mxu0
      %v2901 = vpop.f32.mrf.mxu0
      %v2902 = vadd.f32 %v2836, %v2901
      %v2903 = vpop.f32.mrf.mxu0
      %2904 = vdwg.mxu0
      %v2905 = vadd.f32 %v2633, %v2891
      %v2906 = vadd.f32 %v2634, %v2894
      %v2907 = vadd.f32 %v2635, %v2899
      %v2908 = vadd.f32 %v2636, %v2902
      %v2909 = vld [vmem:[%s11] sm:$0x1]
      %v2910 = vld [vmem:[%s12] sm:$0x1]
      %v2911 = vsel %vm2494, %v2905, 0.0
      %2912 = vadd.xlane.f32.xlu0 %v2911
      %v2913 = vpop.xlane.xlu0 %2912
      %v2914 = vsel %vm2494, %v2906, 0.0
      %2915 = vadd.xlane.f32.xlu0 %v2914
      %v2916 = vpop.xlane.xlu0 %2915
      %v2917 = vsel %vm2494, %v2907, 0.0
      %2918 = vadd.xlane.f32.xlu0 %v2917
      %v2919 = vpop.xlane.xlu0 %2918
      %v2920 = vsel %vm2494, %v2908, 0.0
      %2921 = vadd.xlane.f32.xlu0 %v2920
      %v2922 = vpop.xlane.xlu0 %2921
      %v2923 = vmul.f32 %v2913, %v2576
      %v2924 = vmul.f32 %v2916, %v2576
      %v2925 = vmul.f32 %v2919, %v2576
      %v2926 = vmul.f32 %v2922, %v2576
      %v2927 = vsub.f32 %v2905, %v2923
      %v2928 = vsub.f32 %v2906, %v2924
      %v2929 = vsub.f32 %v2907, %v2925
      %v2930 = vsub.f32 %v2908, %v2926
      %v2931 = vmul.f32 %v2927, %v2927
      %v2932 = vmul.f32 %v2928, %v2928
      %v2933 = vmul.f32 %v2929, %v2929
      %v2934 = vmul.f32 %v2930, %v2930
      %v2935 = vsel %vm2494, %v2931, 0.0
      %2936 = vadd.xlane.f32.xlu0 %v2935
      %v2937 = vpop.xlane.xlu0 %2936
      %v2938 = vsel %vm2494, %v2932, 0.0
      %2939 = vadd.xlane.f32.xlu0 %v2938
      %v2940 = vpop.xlane.xlu0 %2939
      %v2941 = vsel %vm2494, %v2933, 0.0
      %2942 = vadd.xlane.f32.xlu0 %v2941
      %v2943 = vpop.xlane.xlu0 %2942
      %v2944 = vsel %vm2494, %v2934, 0.0
      %2945 = vadd.xlane.f32.xlu0 %v2944
      %v2946 = vpop.xlane.xlu0 %2945
      %v2947 = vmul.f32 %v2937, %v2576
      %v2948 = vmul.f32 %v2940, %v2576
      %v2949 = vmul.f32 %v2943, %v2576
      %v2950 = vmul.f32 %v2946, %v2576
      %v2951 = vadd.f32 %v2947, 1e-05
      %v2952 = vadd.f32 %v2948, 1e-05
      %v2953 = vadd.f32 %v2949, 1e-05
      %v2954 = vadd.f32 %v2950, 1e-05
      %v2955 = vrsqrt.pop %v2951
      %v2956 = vrsqrt.pop %v2952
      %v2957 = vrsqrt.pop %v2953
      %v2958 = vrsqrt.pop %v2954
      %v2959 = vmul.f32 %v2927, %v2955
      %v2960 = vmul.f32 %v2928, %v2956
      %v2961 = vmul.f32 %v2929, %v2957
      %v2962 = vmul.f32 %v2930, %v2958
      %v2964 = vlaneseq
      %v2965 = vshrl.u32 %v2964, 7
      %v2966 = vsub.s32 0, %v2965
      %v2967 = vrot.slane %v2909, %v2966
      %v2969 = vmul.f32 %v2959, %v2967
      %v2970 = vmul.f32 %v2960, %v2967
      %v2971 = vmul.f32 %v2961, %v2967
      %v2972 = vmul.f32 %v2962, %v2967
      %v2974 = vlaneseq
      %v2975 = vshrl.u32 %v2974, 7
      %v2976 = vsub.s32 0, %v2975
      %v2977 = vrot.slane %v2910, %v2976
      %v2979 = vadd.f32 %v2969, %v2977
      %v2980 = vadd.f32 %v2970, %v2977
      %v2981 = vadd.f32 %v2971, %v2977
      %v2982 = vadd.f32 %v2972, %v2977
      %v2983 = vpack.c.bf16 %v2980, %v2979
      %v2984 = vpack.c.bf16 %v2982, %v2981
      %v2987 = vunpack.c.l.b16 %v2983
      %v2988 = vunpack.c.h.b16 %v2983
      %v2989 = vunpack.c.l.b16 %v2984
      %v2990 = vunpack.c.h.b16 %v2984
      %v2991 = vpack.c.b16 %v2987, %v2987
      %v2992 = vpack.c.b16 %v2988, %v2988
      %v2993 = vpack.c.b16 %v2989, %v2989
      %v2994 = vpack.c.b16 %v2990, %v2990
      %vm2999 = vcmask 257024
      %3000 = vst.msk [vmem:[%s554] sm:$0xf] %vm2999, %v2991
      %3001 = vst.msk [vmem:[%s554 + $0x4] sm:$0xf] %vm2999, %v2992
      %3002 = vst.msk [vmem:[%s554 + $0x8] sm:$0xf] %vm2999, %v2993
      %3003 = vst.msk [vmem:[%s554 + $0xc] sm:$0xf] %vm2999, %v2994
      %s3004 = smul.u32 4, %s29
      %p3005 = scmp.lt.s32.totalorder %s28, 1
      %s3006 = scalar_select %p3005, %s28, 1
      %p3007 = scmp.lt.s32.totalorder %s3004, 11
      %s3008 = scalar_select %p3007, %s3004, 11
      %s3009 = smul.addr %s3006, 12
      %s3010 = sadd.s32 %s3008, %s3009
      %s3011 = smul.addr %s3010, 4
      %s3012 = scalar_lea.vmem %s13, %s3011
      // Predicated region
      $region73: #{get_trans_forward.7} parent=71 // pred_check
        %p3013 = pneg %p353
      $region74: #{get_trans_forward.7} parent=71 // pred_check_branch
        %3015 = sbr.rel (%p3013) target = $region76
      $region75: #{get_trans_forward.7} parent=71 // pred_region
        %s3016 = smul.u32 4, %s29
      $region76: #{get_trans_forward.7} parent=71 // pred_fallthru
        _
    $region72: #{get_trans_forward.7} parent=5 // pred_fallthru
      _
    %p3017 = scmp.le.s32.totalorder 2, %s19
    // Predicated region
    $region77: #{get_trans_forward.7} parent=5 // pred_check
      %p3018 = pneg %p3017
    $region78: #{get_trans_forward.7} parent=5 // pred_check_branch
      %3020 = sbr.rel (%p3018) target = $region80
    $region79: #{get_trans_forward.7} parent=5 // pred_region
      %s3021 = ssub.s32 %s19, 2
      // Predicated region
      $region81: #{get_trans_forward.7} parent=79 // pred_check
        %p3022 = pneg %p359
      $region82: #{get_trans_forward.7} parent=79 // pred_check_branch
        %3024 = sbr.rel (%p3022) target = $region84
      $region83: #{get_trans_forward.7} parent=79 // pred_region
        %s3025 = smul.u32 4, %s31
        %p3026 = scmp.lt.s32.totalorder %s30, 1
        %s3027 = scalar_select %p3026, %s30, 1
        %p3028 = scmp.lt.s32.totalorder %s3025, 11
        %s3029 = scalar_select %p3028, %s3025, 11
        %s3030 = smul.addr %s3027, 12
        %s3031 = sadd.s32 %s3029, %s3030
        %s3032 = smul.addr %s3031, 4
        %s3033 = scalar_lea.vmem %s13, %s3032
      $region84: #{get_trans_forward.7} parent=79 // pred_fallthru
        _
    $region80: #{get_trans_forward.7} parent=5 // pred_fallthru
      _
  $region6: #{get_trans_forward.7} parent=0 // loop_footer
    %s23 = sadd.s32 1, %s19
  $region7: #{get_trans_forward.7} parent=0 // loop_footer_branch
    %18 = sbr.rel target = $region3
  $region8: #{get_trans_forward.7} parent=0 // loop_exit
    _

</llo_original>
